<compile_context>
chip_gen: v5e
topology: v5e:2x2
jax: 0.10.0
libtpu: 0.0.40
codegen_flags: <defaults>
</compile_context>

<pallas_src>
import functools

import jax
import jax.numpy as jnp
from jax.experimental import pallas as pl
from jax.experimental.pallas import tpu as pltpu


_VMEM_LIMIT = 32 * 1024 * 1024  # comfortably within scoped VMEM on v5e/v6e/v7x


def _pick_m_tile(m, target=512):
    """Largest tile <= target that divides m (prefers multiples of 128)."""
    if m <= target:
        return m
    for t in (512, 384, 256, 128):
        if t <= target and m % t == 0:
            return t
    return m


# ----------------------------------------------------------------------------
# Pallas kernels
# ----------------------------------------------------------------------------
def _conv_pool_kernel(a00_ref, a01_ref, a10_ref, a11_ref, w_ref, b_ref, o_ref):
    """Fused conv-as-GEMM + bias + ReLU + 2x2 max-pool.

    a??_ref : (K, TM)   bf16 im2col patches^T for pool position (py, px)
    w_ref   : (Cout, K) bf16 flattened conv weight (plain OIHW reshape)
    b_ref   : (Cout, 1) f32 bias
    o_ref   : (Cout, TM) bf16 pooled activations (lanes = B*Ho*Wo, lane-dense)
    """
    w = w_ref[...]

    def gemm(a_ref):
        return jnp.dot(w, a_ref[...], preferred_element_type=jnp.float32)

    y = jnp.maximum(jnp.maximum(gemm(a00_ref), gemm(a01_ref)),
                    jnp.maximum(gemm(a10_ref), gemm(a11_ref)))
    # max(relu(x + b)) == relu(max(x) + b) for a shared bias -> bias/ReLU once.
    y = jnp.maximum(y + b_ref[...], 0.0)
    o_ref[...] = y.astype(o_ref.dtype)


def conv_pool_gemm(a00, a01, a10, a11, wmat, bias_col):
    K, Mo = a00.shape
    Cout = wmat.shape[0]
    tm = _pick_m_tile(Mo)
    a_spec = pl.BlockSpec((K, tm), lambda j: (0, j))
    return pl.pallas_call(
        _conv_pool_kernel,
        out_shape=jax.ShapeDtypeStruct((Cout, Mo), jnp.bfloat16),
        grid=(Mo // tm,),
        in_specs=[a_spec, a_spec, a_spec, a_spec,
                  pl.BlockSpec((Cout, K), lambda j: (0, 0)),   # VMEM-resident weight
                  pl.BlockSpec((Cout, 1), lambda j: (0, 0))],  # VMEM-resident bias
        out_specs=pl.BlockSpec((Cout, tm), lambda j: (0, j)),
        compiler_params=pltpu.CompilerParams(
            dimension_semantics=("parallel",),
            vmem_limit_bytes=_VMEM_LIMIT),
    )(a00, a01, a10, a11, wmat, bias_col)


def _fc_fused_kernel(x_ref, w1_ref, b1_ref, w2_ref, b2_ref, o_ref):
    """relu(x @ W1 + b1) @ W2 + b2, all in one kernel (W2/b2 zero-padded to 128)."""
    h = jnp.dot(x_ref[...], w1_ref[...], preferred_element_type=jnp.float32)
    h = jnp.maximum(h + b1_ref[...], 0.0)
    out = jnp.dot(h.astype(w2_ref.dtype), w2_ref[...],
                  preferred_element_type=jnp.float32)
    o_ref[...] = out + b2_ref[...]


def fc_fused(x, w1, b1, w2p, b2p):
    B, K1 = x.shape
    H = w1.shape[1]
    Np = w2p.shape[1]

    def full(shape):
        return pl.BlockSpec(shape, lambda: (0, 0))

    return pl.pallas_call(
        _fc_fused_kernel,
        out_shape=jax.ShapeDtypeStruct((B, Np), jnp.float32),
        in_specs=[full((B, K1)), full((K1, H)), full((1, H)),
                  full((H, Np)), full((1, Np))],
        out_specs=full((B, Np)),
        compiler_params=pltpu.CompilerParams(vmem_limit_bytes=_VMEM_LIMIT),
    )(x, w1, b1, w2p, b2p)


# ----------------------------------------------------------------------------
# Layer wrappers (thin XLA glue: pad + strided slices feeding the fused kernel)
# ----------------------------------------------------------------------------
def conv_relu_pool(x_cnhw, wmat, bias_col):
    """x: (Cin, B, H, W) bf16 -> pooled (Cout, B, H/2, W/2) bf16."""
    Cin, B, H, W = x_cnhw.shape
    Cout, K = wmat.shape
    assert K == Cin * 9
    Ho, Wo = H // 2, W // 2
    Mo = B * Ho * Wo
    xp = jnp.pad(x_cnhw, ((0, 0), (0, 0), (1, 1), (1, 1)))

    def im2col(py, px):
        # A[ci*9 + ky*3 + kx, b*Ho*Wo + ho*Wo + wo] = xp[ci, b, 2ho+py+ky, 2wo+px+kx]
        slabs = [xp[:, :,
                    py + ky: py + ky + 2 * Ho: 2,
                    px + kx: px + kx + 2 * Wo: 2]
                 for ky in range(3) for kx in range(3)]
        return jnp.stack(slabs, axis=1).reshape(K, Mo)

    y = conv_pool_gemm(im2col(0, 0), im2col(0, 1), im2col(1, 0), im2col(1, 1),
                       wmat, bias_col)
    return y.reshape(Cout, B, Ho, Wo)


# ----------------------------------------------------------------------------
# Parameters
# ----------------------------------------------------------------------------
def init_params(key, num_classes=10):
    """PyTorch-layout f32 parameters (nn.Conv2d / nn.Linear default init)."""
    ks = jax.random.split(key, 10)

    def conv_w(k, cout, cin):
        bound = (1.0 / (cin * 9)) ** 0.5
        return jax.random.uniform(k, (cout, cin, 3, 3), jnp.float32, -bound, bound)

    def lin_w(k, cout, cin):
        bound = (1.0 / cin) ** 0.5
        return jax.random.uniform(k, (cout, cin), jnp.float32, -bound, bound)

    def bias(k, n, fan_in):
        bound = (1.0 / fan_in) ** 0.5
        return jax.random.uniform(k, (n,), jnp.float32, -bound, bound)

    return {
        "conv1_w": conv_w(ks[0], 32, 3),   "conv1_b": bias(ks[1], 32, 27),
        "conv2_w": conv_w(ks[2], 64, 32),  "conv2_b": bias(ks[3], 64, 288),
        "conv3_w": conv_w(ks[4], 64, 64),  "conv3_b": bias(ks[5], 64, 576),
        "fc1_w": lin_w(ks[6], 64, 64 * 4 * 4), "fc1_b": bias(ks[7], 64, 64 * 4 * 4),
        "fc2_w": lin_w(ks[8], num_classes, 64), "fc2_b": bias(ks[9], num_classes, 64),
    }


def prepare_params(p, num_classes=10):
    """One-time repack into kernel-friendly layouts (outside jit, no per-forward cost)."""
    n_pad = ((num_classes + 127) // 128) * 128

    def conv(wname, bname):
        w = p[wname]
        return (w.reshape(w.shape[0], -1).astype(jnp.bfloat16),   # (Cout, Cin*9)
                p[bname].reshape(-1, 1).astype(jnp.float32))      # (Cout, 1)

    c1w, c1b = conv("conv1_w", "conv1_b")
    c2w, c2b = conv("conv2_w", "conv2_b")
    c3w, c3b = conv("conv3_w", "conv3_b")

    fc1_w = jnp.transpose(p["fc1_w"]).astype(jnp.bfloat16)        # (1024, 64)
    fc1_b = p["fc1_b"].reshape(1, -1).astype(jnp.float32)         # (1, 64)
    fc2_w = jnp.zeros((p["fc2_w"].shape[1], n_pad), jnp.bfloat16)
    fc2_w = fc2_w.at[:, :num_classes].set(
        jnp.transpose(p["fc2_w"]).astype(jnp.bfloat16))           # (64, 128)
    fc2_b = jnp.zeros((1, n_pad), jnp.float32)
    fc2_b = fc2_b.at[0, :num_classes].set(p["fc2_b"])             # (1, 128)

    return {"conv1_w": c1w, "conv1_b": c1b,
            "conv2_w": c2w, "conv2_b": c2b,
            "conv3_w": c3w, "conv3_b": c3b,
            "fc1_w": fc1_w, "fc1_b": fc1_b,
            "fc2_w": fc2_w, "fc2_b": fc2_b}


# ----------------------------------------------------------------------------
# Model
# ----------------------------------------------------------------------------
@functools.partial(jax.jit, static_argnames=("num_classes",))
def simple_cnn_forward(prepared, x_nchw, *, num_classes=10):
    # NCHW -> channel-major CNHW, bf16 activations through the conv stack.
    x = jnp.transpose(x_nchw.astype(jnp.bfloat16), (1, 0, 2, 3))      # (3, B, 32, 32)

    x = conv_relu_pool(x, prepared["conv1_w"], prepared["conv1_b"])   # (32, B, 16, 16)
    x = conv_relu_pool(x, prepared["conv2_w"], prepared["conv2_b"])   # (64, B,  8,  8)
    x = conv_relu_pool(x, prepared["conv3_w"], prepared["conv3_b"])   # (64, B,  4,  4)

    # PyTorch x.view(-1, 64*4*4): flatten per batch in (C, H, W) order.
    B = x.shape[1]
    x = jnp.transpose(x, (1, 0, 2, 3)).reshape(B, 64 * 4 * 4)

    out = fc_fused(x, prepared["fc1_w"], prepared["fc1_b"],
                   prepared["fc2_w"], prepared["fc2_b"])              # (B, 128)
    return out[:, :num_classes]


def reference_forward(p, x_nchw):
    """Pure-JAX f32 reference mirroring the PyTorch module."""
    def conv(x, w, b):
        y = jax.lax.conv_general_dilated(
            x, w, window_strides=(1, 1), padding=((1, 1), (1, 1)),
            dimension_numbers=("NCHW", "OIHW", "NCHW"))
        return jax.nn.relu(y + b.reshape(1, -1, 1, 1))

    def pool(x):
        return jax.lax.reduce_window(x, -jnp.inf, jax.lax.max,
                                     (1, 1, 2, 2), (1, 1, 2, 2), "VALID")

    x = pool(conv(x_nchw, p["conv1_w"], p["conv1_b"]))
    x = pool(conv(x, p["conv2_w"], p["conv2_b"]))
    x = pool(conv(x, p["conv3_w"], p["conv3_b"]))
    x = x.reshape(x.shape[0], -1)
    x = jax.nn.relu(x @ p["fc1_w"].T + p["fc1_b"])
    return x @ p["fc2_w"].T + p["fc2_b"]


if __name__ == "__main__":
    key = jax.random.PRNGKey(0)
    pkey, xkey = jax.random.split(key)

    num_classes = 10
    params = init_params(pkey, num_classes=num_classes)
    prepared = prepare_params(params, num_classes=num_classes)

    # SimpleCNN expects 3-channel 32x32 inputs (three 2x pools -> 4x4 for fc1).
    x = jax.random.normal(xkey, (2, 3, 32, 32), dtype=jnp.float32)

    out = simple_cnn_forward(prepared, x, num_classes=num_classes)
    jax.block_until_ready(out)

    assert out.shape == (2, num_classes), out.shape
    assert bool(jnp.all(jnp.isfinite(out)))

    # Sanity-check against the pure-JAX f32 reference (loose tol: bf16 GEMMs).
    ref = reference_forward(params, x)
    err = float(jnp.max(jnp.abs(out - ref)))
    assert err < 0.15, f"max |diff| vs reference too large: {err}"

    print("KERNEL_OK")
</pallas_src>

<mosaic_0001>
module attributes {stable_mosaic.version = 11 : i64} {
  func.func @_conv_pool_kernel(%arg0: i32, %arg1: memref<27x512xbf16, #tpu.memory_space<vmem>>, %arg2: memref<27x512xbf16, #tpu.memory_space<vmem>>, %arg3: memref<27x512xbf16, #tpu.memory_space<vmem>>, %arg4: memref<27x512xbf16, #tpu.memory_space<vmem>>, %arg5: memref<32x27xbf16, #tpu.memory_space<vmem>>, %arg6: memref<32x1xf32, #tpu.memory_space<vmem>>, %arg7: memref<32x512xbf16, #tpu.memory_space<vmem>>) attributes {dimension_semantics = [#tpu.dimension_semantics<parallel>], iteration_bounds = array<i64: 1>, scalar_prefetch = 0 : i64, scratch_operands = 0 : i64, tpu.core_type = #tpu.core_type<tc>, window_params = [{transform_indices = @transform_0, window_bounds = array<i64: 27, 512>}, {transform_indices = @transform_1, window_bounds = array<i64: 27, 512>}, {transform_indices = @transform_2, window_bounds = array<i64: 27, 512>}, {transform_indices = @transform_3, window_bounds = array<i64: 27, 512>}, {pipeline_mode = #tpu.pipeline_mode<synchronous>, transform_indices = @transform_4, window_bounds = array<i64: 32, 27>}, {pipeline_mode = #tpu.pipeline_mode<synchronous>, transform_indices = @transform_5, window_bounds = array<i64: 32, 1>}, {transform_indices = @transform_6, window_bounds = array<i64: 32, 512>}]} {
    %c0 = arith.constant 0 : index
    %c0_0 = arith.constant 0 : index
    %0 = vector.load %arg5[%c0, %c0_0] : memref<32x27xbf16, #tpu.memory_space<vmem>>, vector<32x27xbf16>
    %c0_1 = arith.constant 0 : index
    %c0_2 = arith.constant 0 : index
    %1 = vector.load %arg1[%c0_1, %c0_2] : memref<27x512xbf16, #tpu.memory_space<vmem>>, vector<27x512xbf16>
    %cst = arith.constant dense<0.000000e+00> : vector<32x512xf32>
    %2 = tpu.matmul %0, %1, %cst {dimension_numbers = #tpu.dot_dimension_numbers<[1], [0], [0], [1], [0, 0, 1, 1], [], []>} : vector<32x27xbf16>, vector<27x512xbf16>, vector<32x512xf32> -> vector<32x512xf32>
    %c0_3 = arith.constant 0 : index
    %c0_4 = arith.constant 0 : index
    %3 = vector.load %arg2[%c0_3, %c0_4] : memref<27x512xbf16, #tpu.memory_space<vmem>>, vector<27x512xbf16>
    %cst_5 = arith.constant dense<0.000000e+00> : vector<32x512xf32>
    %4 = tpu.matmul %0, %3, %cst_5 {dimension_numbers = #tpu.dot_dimension_numbers<[1], [0], [0], [1], [0, 0, 1, 1], [], []>} : vector<32x27xbf16>, vector<27x512xbf16>, vector<32x512xf32> -> vector<32x512xf32>
    %5 = arith.maximumf %2, %4 : vector<32x512xf32>
    %c0_6 = arith.constant 0 : index
    %c0_7 = arith.constant 0 : index
    %6 = vector.load %arg3[%c0_6, %c0_7] : memref<27x512xbf16, #tpu.memory_space<vmem>>, vector<27x512xbf16>
    %cst_8 = arith.constant dense<0.000000e+00> : vector<32x512xf32>
    %7 = tpu.matmul %0, %6, %cst_8 {dimension_numbers = #tpu.dot_dimension_numbers<[1], [0], [0], [1], [0, 0, 1, 1], [], []>} : vector<32x27xbf16>, vector<27x512xbf16>, vector<32x512xf32> -> vector<32x512xf32>
    %c0_9 = arith.constant 0 : index
    %c0_10 = arith.constant 0 : index
    %8 = vector.load %arg4[%c0_9, %c0_10] : memref<27x512xbf16, #tpu.memory_space<vmem>>, vector<27x512xbf16>
    %cst_11 = arith.constant dense<0.000000e+00> : vector<32x512xf32>
    %9 = tpu.matmul %0, %8, %cst_11 {dimension_numbers = #tpu.dot_dimension_numbers<[1], [0], [0], [1], [0, 0, 1, 1], [], []>} : vector<32x27xbf16>, vector<27x512xbf16>, vector<32x512xf32> -> vector<32x512xf32>
    %10 = arith.maximumf %7, %9 : vector<32x512xf32>
    %11 = arith.maximumf %5, %10 : vector<32x512xf32>
    %c0_12 = arith.constant 0 : index
    %c0_13 = arith.constant 0 : index
    %12 = vector.load %arg6[%c0_12, %c0_13] : memref<32x1xf32, #tpu.memory_space<vmem>>, vector<32x1xf32>
    %13 = vector.broadcast %12 : vector<32x1xf32> to vector<32x512xf32>
    %14 = arith.addf %11, %13 : vector<32x512xf32>
    %cst_14 = arith.constant 0.000000e+00 : f32
    %15 = vector.broadcast %cst_14 : f32 to vector<32x512xf32>
    %16 = arith.maximumf %14, %15 : vector<32x512xf32>
    %17 = arith.truncf %16 : vector<32x512xf32> to vector<32x512xbf16>
    %c0_15 = arith.constant 0 : index
    %c0_16 = arith.constant 0 : index
    %18 = vector.load %arg7[%c0_15, %c0_16] : memref<32x512xbf16, #tpu.memory_space<vmem>>, vector<32x512xbf16>
    tpu.vector_store %arg7[%c0_15, %c0_16], %17 {strides = array<i32>} : memref<32x512xbf16, #tpu.memory_space<vmem>>, vector<32x512xbf16>,
    return
  }
  func.func @transform_0(%arg0: i32) -> (i32, i32) {
    %c0_i32 = arith.constant 0 : i32
    %c0_i32_0 = arith.constant 0 : i32
    return %c0_i32, %arg0 : i32, i32
  }
  func.func @transform_1(%arg0: i32) -> (i32, i32) {
    %c0_i32 = arith.constant 0 : i32
    %c0_i32_0 = arith.constant 0 : i32
    return %c0_i32, %arg0 : i32, i32
  }
  func.func @transform_2(%arg0: i32) -> (i32, i32) {
    %c0_i32 = arith.constant 0 : i32
    %c0_i32_0 = arith.constant 0 : i32
    return %c0_i32, %arg0 : i32, i32
  }
  func.func @transform_3(%arg0: i32) -> (i32, i32) {
    %c0_i32 = arith.constant 0 : i32
    %c0_i32_0 = arith.constant 0 : i32
    return %c0_i32, %arg0 : i32, i32
  }
  func.func @transform_4(%arg0: i32) -> (i32, i32) {
    %c0_i32 = arith.constant 0 : i32
    %c0_i32_0 = arith.constant 0 : i32
    %c0_i32_1 = arith.constant 0 : i32
    return %c0_i32, %c0_i32_0 : i32, i32
  }
  func.func @transform_5(%arg0: i32) -> (i32, i32) {
    %c0_i32 = arith.constant 0 : i32
    %c0_i32_0 = arith.constant 0 : i32
    %c0_i32_1 = arith.constant 0 : i32
    return %c0_i32, %c0_i32_0 : i32, i32
  }
  func.func @transform_6(%arg0: i32) -> (i32, i32) {
    %c0_i32 = arith.constant 0 : i32
    %c0_i32_0 = arith.constant 0 : i32
    return %c0_i32, %arg0 : i32, i32
  }
}

module attributes {stable_mosaic.version = 11 : i64} {
  func.func @_conv_pool_kernel(%arg0: i32, %arg1: memref<288x128xbf16, #tpu.memory_space<vmem>>, %arg2: memref<288x128xbf16, #tpu.memory_space<vmem>>, %arg3: memref<288x128xbf16, #tpu.memory_space<vmem>>, %arg4: memref<288x128xbf16, #tpu.memory_space<vmem>>, %arg5: memref<64x288xbf16, #tpu.memory_space<vmem>>, %arg6: memref<64x1xf32, #tpu.memory_space<vmem>>, %arg7: memref<64x128xbf16, #tpu.memory_space<vmem>>) attributes {dimension_semantics = [#tpu.dimension_semantics<parallel>], iteration_bounds = array<i64: 1>, scalar_prefetch = 0 : i64, scratch_operands = 0 : i64, tpu.core_type = #tpu.core_type<tc>, window_params = [{transform_indices = @transform_0, window_bounds = array<i64: 288, 128>}, {transform_indices = @transform_1, window_bounds = array<i64: 288, 128>}, {transform_indices = @transform_2, window_bounds = array<i64: 288, 128>}, {transform_indices = @transform_3, window_bounds = array<i64: 288, 128>}, {pipeline_mode = #tpu.pipeline_mode<synchronous>, transform_indices = @transform_4, window_bounds = array<i64: 64, 288>}, {pipeline_mode = #tpu.pipeline_mode<synchronous>, transform_indices = @transform_5, window_bounds = array<i64: 64, 1>}, {transform_indices = @transform_6, window_bounds = array<i64: 64, 128>}]} {
    %c0 = arith.constant 0 : index
    %c0_0 = arith.constant 0 : index
    %0 = vector.load %arg5[%c0, %c0_0] : memref<64x288xbf16, #tpu.memory_space<vmem>>, vector<64x288xbf16>
    %c0_1 = arith.constant 0 : index
    %c0_2 = arith.constant 0 : index
    %1 = vector.load %arg1[%c0_1, %c0_2] : memref<288x128xbf16, #tpu.memory_space<vmem>>, vector<288x128xbf16>
    %cst = arith.constant dense<0.000000e+00> : vector<64x128xf32>
    %2 = tpu.matmul %0, %1, %cst {dimension_numbers = #tpu.dot_dimension_numbers<[1], [0], [0], [1], [0, 0, 1, 1], [], []>} : vector<64x288xbf16>, vector<288x128xbf16>, vector<64x128xf32> -> vector<64x128xf32>
    %c0_3 = arith.constant 0 : index
    %c0_4 = arith.constant 0 : index
    %3 = vector.load %arg2[%c0_3, %c0_4] : memref<288x128xbf16, #tpu.memory_space<vmem>>, vector<288x128xbf16>
    %cst_5 = arith.constant dense<0.000000e+00> : vector<64x128xf32>
    %4 = tpu.matmul %0, %3, %cst_5 {dimension_numbers = #tpu.dot_dimension_numbers<[1], [0], [0], [1], [0, 0, 1, 1], [], []>} : vector<64x288xbf16>, vector<288x128xbf16>, vector<64x128xf32> -> vector<64x128xf32>
    %5 = arith.maximumf %2, %4 : vector<64x128xf32>
    %c0_6 = arith.constant 0 : index
    %c0_7 = arith.constant 0 : index
    %6 = vector.load %arg3[%c0_6, %c0_7] : memref<288x128xbf16, #tpu.memory_space<vmem>>, vector<288x128xbf16>
    %cst_8 = arith.constant dense<0.000000e+00> : vector<64x128xf32>
    %7 = tpu.matmul %0, %6, %cst_8 {dimension_numbers = #tpu.dot_dimension_numbers<[1], [0], [0], [1], [0, 0, 1, 1], [], []>} : vector<64x288xbf16>, vector<288x128xbf16>, vector<64x128xf32> -> vector<64x128xf32>
    %c0_9 = arith.constant 0 : index
    %c0_10 = arith.constant 0 : index
    %8 = vector.load %arg4[%c0_9, %c0_10] : memref<288x128xbf16, #tpu.memory_space<vmem>>, vector<288x128xbf16>
    %cst_11 = arith.constant dense<0.000000e+00> : vector<64x128xf32>
    %9 = tpu.matmul %0, %8, %cst_11 {dimension_numbers = #tpu.dot_dimension_numbers<[1], [0], [0], [1], [0, 0, 1, 1], [], []>} : vector<64x288xbf16>, vector<288x128xbf16>, vector<64x128xf32> -> vector<64x128xf32>
    %10 = arith.maximumf %7, %9 : vector<64x128xf32>
    %11 = arith.maximumf %5, %10 : vector<64x128xf32>
    %c0_12 = arith.constant 0 : index
    %c0_13 = arith.constant 0 : index
    %12 = vector.load %arg6[%c0_12, %c0_13] : memref<64x1xf32, #tpu.memory_space<vmem>>, vector<64x1xf32>
    %13 = vector.broadcast %12 : vector<64x1xf32> to vector<64x128xf32>
    %14 = arith.addf %11, %13 : vector<64x128xf32>
    %cst_14 = arith.constant 0.000000e+00 : f32
    %15 = vector.broadcast %cst_14 : f32 to vector<64x128xf32>
    %16 = arith.maximumf %14, %15 : vector<64x128xf32>
    %17 = arith.truncf %16 : vector<64x128xf32> to vector<64x128xbf16>
    %c0_15 = arith.constant 0 : index
    %c0_16 = arith.constant 0 : index
    %18 = vector.load %arg7[%c0_15, %c0_16] : memref<64x128xbf16, #tpu.memory_space<vmem>>, vector<64x128xbf16>
    tpu.vector_store %arg7[%c0_15, %c0_16], %17 {strides = array<i32>} : memref<64x128xbf16, #tpu.memory_space<vmem>>, vector<64x128xbf16>,
    return
  }
  func.func @transform_0(%arg0: i32) -> (i32, i32) {
    %c0_i32 = arith.constant 0 : i32
    %c0_i32_0 = arith.constant 0 : i32
    return %c0_i32, %arg0 : i32, i32
  }
  func.func @transform_1(%arg0: i32) -> (i32, i32) {
    %c0_i32 = arith.constant 0 : i32
    %c0_i32_0 = arith.constant 0 : i32
    return %c0_i32, %arg0 : i32, i32
  }
  func.func @transform_2(%arg0: i32) -> (i32, i32) {
    %c0_i32 = arith.constant 0 : i32
    %c0_i32_0 = arith.constant 0 : i32
    return %c0_i32, %arg0 : i32, i32
  }
  func.func @transform_3(%arg0: i32) -> (i32, i32) {
    %c0_i32 = arith.constant 0 : i32
    %c0_i32_0 = arith.constant 0 : i32
    return %c0_i32, %arg0 : i32, i32
  }
  func.func @transform_4(%arg0: i32) -> (i32, i32) {
    %c0_i32 = arith.constant 0 : i32
    %c0_i32_0 = arith.constant 0 : i32
    %c0_i32_1 = arith.constant 0 : i32
    return %c0_i32, %c0_i32_0 : i32, i32
  }
  func.func @transform_5(%arg0: i32) -> (i32, i32) {
    %c0_i32 = arith.constant 0 : i32
    %c0_i32_0 = arith.constant 0 : i32
    %c0_i32_1 = arith.constant 0 : i32
    return %c0_i32, %c0_i32_0 : i32, i32
  }
  func.func @transform_6(%arg0: i32) -> (i32, i32) {
    %c0_i32 = arith.constant 0 : i32
    %c0_i32_0 = arith.constant 0 : i32
    return %c0_i32, %arg0 : i32, i32
  }
}

module attributes {stable_mosaic.version = 11 : i64} {
  func.func @_conv_pool_kernel(%arg0: i32, %arg1: memref<576x32xbf16, #tpu.memory_space<vmem>>, %arg2: memref<576x32xbf16, #tpu.memory_space<vmem>>, %arg3: memref<576x32xbf16, #tpu.memory_space<vmem>>, %arg4: memref<576x32xbf16, #tpu.memory_space<vmem>>, %arg5: memref<64x576xbf16, #tpu.memory_space<vmem>>, %arg6: memref<64x1xf32, #tpu.memory_space<vmem>>, %arg7: memref<64x32xbf16, #tpu.memory_space<vmem>>) attributes {dimension_semantics = [#tpu.dimension_semantics<parallel>], iteration_bounds = array<i64: 1>, scalar_prefetch = 0 : i64, scratch_operands = 0 : i64, tpu.core_type = #tpu.core_type<tc>, window_params = [{transform_indices = @transform_0, window_bounds = array<i64: 576, 32>}, {transform_indices = @transform_1, window_bounds = array<i64: 576, 32>}, {transform_indices = @transform_2, window_bounds = array<i64: 576, 32>}, {transform_indices = @transform_3, window_bounds = array<i64: 576, 32>}, {pipeline_mode = #tpu.pipeline_mode<synchronous>, transform_indices = @transform_4, window_bounds = array<i64: 64, 576>}, {pipeline_mode = #tpu.pipeline_mode<synchronous>, transform_indices = @transform_5, window_bounds = array<i64: 64, 1>}, {transform_indices = @transform_6, window_bounds = array<i64: 64, 32>}]} {
    %c0 = arith.constant 0 : index
    %c0_0 = arith.constant 0 : index
    %0 = vector.load %arg5[%c0, %c0_0] : memref<64x576xbf16, #tpu.memory_space<vmem>>, vector<64x576xbf16>
    %c0_1 = arith.constant 0 : index
    %c0_2 = arith.constant 0 : index
    %1 = vector.load %arg1[%c0_1, %c0_2] : memref<576x32xbf16, #tpu.memory_space<vmem>>, vector<576x32xbf16>
    %cst = arith.constant dense<0.000000e+00> : vector<64x32xf32>
    %2 = tpu.matmul %0, %1, %cst {dimension_numbers = #tpu.dot_dimension_numbers<[1], [0], [0], [1], [0, 0, 1, 1], [], []>} : vector<64x576xbf16>, vector<576x32xbf16>, vector<64x32xf32> -> vector<64x32xf32>
    %c0_3 = arith.constant 0 : index
    %c0_4 = arith.constant 0 : index
    %3 = vector.load %arg2[%c0_3, %c0_4] : memref<576x32xbf16, #tpu.memory_space<vmem>>, vector<576x32xbf16>
    %cst_5 = arith.constant dense<0.000000e+00> : vector<64x32xf32>
    %4 = tpu.matmul %0, %3, %cst_5 {dimension_numbers = #tpu.dot_dimension_numbers<[1], [0], [0], [1], [0, 0, 1, 1], [], []>} : vector<64x576xbf16>, vector<576x32xbf16>, vector<64x32xf32> -> vector<64x32xf32>
    %5 = arith.maximumf %2, %4 : vector<64x32xf32>
    %c0_6 = arith.constant 0 : index
    %c0_7 = arith.constant 0 : index
    %6 = vector.load %arg3[%c0_6, %c0_7] : memref<576x32xbf16, #tpu.memory_space<vmem>>, vector<576x32xbf16>
    %cst_8 = arith.constant dense<0.000000e+00> : vector<64x32xf32>
    %7 = tpu.matmul %0, %6, %cst_8 {dimension_numbers = #tpu.dot_dimension_numbers<[1], [0], [0], [1], [0, 0, 1, 1], [], []>} : vector<64x576xbf16>, vector<576x32xbf16>, vector<64x32xf32> -> vector<64x32xf32>
    %c0_9 = arith.constant 0 : index
    %c0_10 = arith.constant 0 : index
    %8 = vector.load %arg4[%c0_9, %c0_10] : memref<576x32xbf16, #tpu.memory_space<vmem>>, vector<576x32xbf16>
    %cst_11 = arith.constant dense<0.000000e+00> : vector<64x32xf32>
    %9 = tpu.matmul %0, %8, %cst_11 {dimension_numbers = #tpu.dot_dimension_numbers<[1], [0], [0], [1], [0, 0, 1, 1], [], []>} : vector<64x576xbf16>, vector<576x32xbf16>, vector<64x32xf32> -> vector<64x32xf32>
    %10 = arith.maximumf %7, %9 : vector<64x32xf32>
    %11 = arith.maximumf %5, %10 : vector<64x32xf32>
    %c0_12 = arith.constant 0 : index
    %c0_13 = arith.constant 0 : index
    %12 = vector.load %arg6[%c0_12, %c0_13] : memref<64x1xf32, #tpu.memory_space<vmem>>, vector<64x1xf32>
    %13 = vector.broadcast %12 : vector<64x1xf32> to vector<64x32xf32>
    %14 = arith.addf %11, %13 : vector<64x32xf32>
    %cst_14 = arith.constant 0.000000e+00 : f32
    %15 = vector.broadcast %cst_14 : f32 to vector<64x32xf32>
    %16 = arith.maximumf %14, %15 : vector<64x32xf32>
    %17 = arith.truncf %16 : vector<64x32xf32> to vector<64x32xbf16>
    %c0_15 = arith.constant 0 : index
    %c0_16 = arith.constant 0 : index
    %18 = vector.load %arg7[%c0_15, %c0_16] : memref<64x32xbf16, #tpu.memory_space<vmem>>, vector<64x32xbf16>
    tpu.vector_store %arg7[%c0_15, %c0_16], %17 {strides = array<i32>} : memref<64x32xbf16, #tpu.memory_space<vmem>>, vector<64x32xbf16>,
    return
  }
  func.func @transform_0(%arg0: i32) -> (i32, i32) {
    %c0_i32 = arith.constant 0 : i32
    %c0_i32_0 = arith.constant 0 : i32
    return %c0_i32, %arg0 : i32, i32
  }
  func.func @transform_1(%arg0: i32) -> (i32, i32) {
    %c0_i32 = arith.constant 0 : i32
    %c0_i32_0 = arith.constant 0 : i32
    return %c0_i32, %arg0 : i32, i32
  }
  func.func @transform_2(%arg0: i32) -> (i32, i32) {
    %c0_i32 = arith.constant 0 : i32
    %c0_i32_0 = arith.constant 0 : i32
    return %c0_i32, %arg0 : i32, i32
  }
  func.func @transform_3(%arg0: i32) -> (i32, i32) {
    %c0_i32 = arith.constant 0 : i32
    %c0_i32_0 = arith.constant 0 : i32
    return %c0_i32, %arg0 : i32, i32
  }
  func.func @transform_4(%arg0: i32) -> (i32, i32) {
    %c0_i32 = arith.constant 0 : i32
    %c0_i32_0 = arith.constant 0 : i32
    %c0_i32_1 = arith.constant 0 : i32
    return %c0_i32, %c0_i32_0 : i32, i32
  }
  func.func @transform_5(%arg0: i32) -> (i32, i32) {
    %c0_i32 = arith.constant 0 : i32
    %c0_i32_0 = arith.constant 0 : i32
    %c0_i32_1 = arith.constant 0 : i32
    return %c0_i32, %c0_i32_0 : i32, i32
  }
  func.func @transform_6(%arg0: i32) -> (i32, i32) {
    %c0_i32 = arith.constant 0 : i32
    %c0_i32_0 = arith.constant 0 : i32
    return %c0_i32, %arg0 : i32, i32
  }
}

module attributes {stable_mosaic.version = 11 : i64} {
  func.func @_fc_fused_kernel(%arg0: memref<2x1024xbf16, #tpu.memory_space<vmem>>, %arg1: memref<1024x64xbf16, #tpu.memory_space<vmem>>, %arg2: memref<1x64xf32, #tpu.memory_space<vmem>>, %arg3: memref<64x128xbf16, #tpu.memory_space<vmem>>, %arg4: memref<1x128xf32, #tpu.memory_space<vmem>>, %arg5: memref<2x128xf32, #tpu.memory_space<vmem>>) attributes {dimension_semantics = [], scalar_prefetch = 0 : i64, scratch_operands = 0 : i64, tpu.core_type = #tpu.core_type<tc>} {
    %c0 = arith.constant 0 : index
    %c0_0 = arith.constant 0 : index
    %0 = vector.load %arg0[%c0, %c0_0] : memref<2x1024xbf16, #tpu.memory_space<vmem>>, vector<2x1024xbf16>
    %c0_1 = arith.constant 0 : index
    %c0_2 = arith.constant 0 : index
    %1 = vector.load %arg1[%c0_1, %c0_2] : memref<1024x64xbf16, #tpu.memory_space<vmem>>, vector<1024x64xbf16>
    %cst = arith.constant dense<0.000000e+00> : vector<2x64xf32>
    %2 = tpu.matmul %0, %1, %cst {dimension_numbers = #tpu.dot_dimension_numbers<[1], [0], [0], [1], [0, 0, 1, 1], [], []>} : vector<2x1024xbf16>, vector<1024x64xbf16>, vector<2x64xf32> -> vector<2x64xf32>
    %c0_3 = arith.constant 0 : index
    %c0_4 = arith.constant 0 : index
    %3 = vector.load %arg2[%c0_3, %c0_4] : memref<1x64xf32, #tpu.memory_space<vmem>>, vector<1x64xf32>
    %4 = vector.broadcast %3 : vector<1x64xf32> to vector<2x64xf32>
    %5 = arith.addf %2, %4 : vector<2x64xf32>
    %cst_5 = arith.constant 0.000000e+00 : f32
    %6 = vector.broadcast %cst_5 : f32 to vector<2x64xf32>
    %7 = arith.maximumf %5, %6 : vector<2x64xf32>
    %8 = arith.truncf %7 : vector<2x64xf32> to vector<2x64xbf16>
    %c0_6 = arith.constant 0 : index
    %c0_7 = arith.constant 0 : index
    %9 = vector.load %arg3[%c0_6, %c0_7] : memref<64x128xbf16, #tpu.memory_space<vmem>>, vector<64x128xbf16>
    %cst_8 = arith.constant dense<0.000000e+00> : vector<2x128xf32>
    %10 = tpu.matmul %8, %9, %cst_8 {dimension_numbers = #tpu.dot_dimension_numbers<[1], [0], [0], [1], [0, 0, 1, 1], [], []>} : vector<2x64xbf16>, vector<64x128xbf16>, vector<2x128xf32> -> vector<2x128xf32>
    %c0_9 = arith.constant 0 : index
    %c0_10 = arith.constant 0 : index
    %11 = vector.load %arg4[%c0_9, %c0_10] : memref<1x128xf32, #tpu.memory_space<vmem>>, vector<1x128xf32>
    %12 = vector.broadcast %11 : vector<1x128xf32> to vector<2x128xf32>
    %13 = arith.addf %10, %12 : vector<2x128xf32>
    %c0_11 = arith.constant 0 : index
    %c0_12 = arith.constant 0 : index
    %14 = vector.load %arg5[%c0_11, %c0_12] : memref<2x128xf32, #tpu.memory_space<vmem>>, vector<2x128xf32>
    tpu.vector_store %arg5[%c0_11, %c0_12], %13 {strides = array<i32>} : memref<2x128xf32, #tpu.memory_space<vmem>>, vector<2x128xf32>,
    return
  }
}

</mosaic_0001>

<llo_original>
// kernel: simple_cnn_forward.4
$region0: #{simple_cnn_forward.4}
  #allocation0 [shape = 'u32[]', space=smem, size = 0x4, offset = 0x4, fixed_abs, tag = 'smem constant byte address 0x4 - core index']
  #allocation1 [shape = 'u32[72,128]{1,0:T(1,128)}', space=vmem, size = 0x9000, scoped, tag = 'internal scratch']
  %s0 = inlined_call_operand.vmem [shape: bf16[27,512], index: 0, kind: input, shape index: {}]
  %s1 = inlined_call_operand.vmem [shape: bf16[27,512], index: 1, kind: input, shape index: {}]
  %s2 = inlined_call_operand.vmem [shape: bf16[27,512], index: 2, kind: input, shape index: {}]
  %s3 = inlined_call_operand.vmem [shape: bf16[27,512], index: 3, kind: input, shape index: {}]
  %s4 = inlined_call_operand.vmem [shape: bf16[32,27], index: 4, kind: input, shape index: {}]
  %s5 = inlined_call_operand.vmem [shape: f32[32,1], index: 5, kind: input, shape index: {}]
  %s6 = inlined_call_operand.vmem [shape: bf16[32,512], index: 6, kind: output, shape index: {}]
  %s7 = sld [smem:[#allocation0]]
  $region34: #{simple_cnn_forward.4} parent=0
    _
  %s9 = ssub.s32 1, %s7
  %s10 = scalar_select 0, %s9, %s7
  // Predicated region
  $region2: #{simple_cnn_forward.4} parent=0 // pred_check
    _
  $region3: #{simple_cnn_forward.4} parent=0 // pred_check_branch
    %12 = sbr.rel (0) target = $region5
  $region4: #{simple_cnn_forward.4} parent=0 // pred_region
    _
  $region5: #{simple_cnn_forward.4} parent=0 // pred_fallthru
    _
  // Predicated region
  $region6: #{simple_cnn_forward.4} parent=0 // pred_check
    _
  $region7: #{simple_cnn_forward.4} parent=0 // pred_check_branch
    %14 = sbr.rel (0) target = $region9
  $region8: #{simple_cnn_forward.4} parent=0 // pred_region
    _
  $region9: #{simple_cnn_forward.4} parent=0 // pred_fallthru
    _
  // Predicated region
  $region10: #{simple_cnn_forward.4} parent=0 // pred_check
    _
  $region11: #{simple_cnn_forward.4} parent=0 // pred_check_branch
    %16 = sbr.rel (0) target = $region13
  $region12: #{simple_cnn_forward.4} parent=0 // pred_region
    _
  $region13: #{simple_cnn_forward.4} parent=0 // pred_fallthru
    _
  // Predicated region
  $region14: #{simple_cnn_forward.4} parent=0 // pred_check
    _
  $region15: #{simple_cnn_forward.4} parent=0 // pred_check_branch
    %18 = sbr.rel (0) target = $region17
  $region16: #{simple_cnn_forward.4} parent=0 // pred_region
    _
  $region17: #{simple_cnn_forward.4} parent=0 // pred_fallthru
    _
  // Predicated region
  $region18: #{simple_cnn_forward.4} parent=0 // pred_check
    _
  $region19: #{simple_cnn_forward.4} parent=0 // pred_check_branch
    %20 = sbr.rel (0) target = $region21
  $region20: #{simple_cnn_forward.4} parent=0 // pred_region
    _
  $region21: #{simple_cnn_forward.4} parent=0 // pred_fallthru
    _
  // Predicated region
  $region22: #{simple_cnn_forward.4} parent=0 // pred_check
    _
  $region23: #{simple_cnn_forward.4} parent=0 // pred_check_branch
    %22 = sbr.rel (0) target = $region25
  $region24: #{simple_cnn_forward.4} parent=0 // pred_region
    _
  $region25: #{simple_cnn_forward.4} parent=0 // pred_fallthru
    _
  %v24 = vld [vmem:[%s4] sm:$0xf]
  %v25 = vld [vmem:[%s4 + $0x4] sm:$0xf]
  %v26 = vld [vmem:[%s4 + $0x8] sm:$0xf]
  %v27 = vld [vmem:[%s4 + $0xc] sm:$0xf]
  %v28 = vld [vmem:[%s0] sm:$0xff]
  %v29 = vld [vmem:[%s0 + $0x8] sm:$0xff]
  %v30 = vld [vmem:[%s0 + $0x10] sm:$0xff]
  %v31 = vld [vmem:[%s0 + $0x18] sm:$0xff]
  %v32 = vld [vmem:[%s0 + $0x20] sm:$0xff]
  %v33 = vld [vmem:[%s0 + $0x28] sm:$0xff]
  %v34 = vld [vmem:[%s0 + $0x30] sm:$0x33]
  %v35 = vld [vmem:[%s0 + $0x38] sm:$0x33]
  %v40 = vunpack.c.l.b16 %v24
  %v41 = vunpack.c.l.b16 %v25
  %v42 = vunpack.c.l.b16 %v26
  %v43 = vunpack.c.l.b16 %v27
  %v44 = vpack.c.b16 %v41, %v40
  %v45 = vpack.c.b16 %v43, %v42
  %v54 = vunpack.c.l.b16 %v28
  %v55 = vunpack.c.h.b16 %v28
  %v56 = vunpack.c.l.b16 %v29
  %v57 = vunpack.c.h.b16 %v29
  %v58 = vunpack.c.l.b16 %v30
  %v59 = vunpack.c.h.b16 %v30
  %v60 = vunpack.c.l.b16 %v31
  %v61 = vunpack.c.h.b16 %v31
  %v62 = vunpack.c.l.b16 %v32
  %v63 = vunpack.c.h.b16 %v32
  %v64 = vunpack.c.l.b16 %v33
  %v65 = vunpack.c.h.b16 %v33
  %v66 = vunpack.c.l.b16 %v34
  %v67 = vunpack.c.h.b16 %v34
  %v68 = vunpack.c.l.b16 %v35
  %v69 = vunpack.c.h.b16 %v35
  %v70 = vpack.c.b16 %v58, %v54
  %v71 = vpack.c.b16 %v59, %v55
  %v72 = vpack.c.b16 %v60, %v56
  %v73 = vpack.c.b16 %v61, %v57
  %v74 = vpack.c.b16 %v66, %v62
  %v75 = vpack.c.b16 %v67, %v63
  %v76 = vpack.c.b16 %v68, %v64
  %v77 = vpack.c.b16 %v69, %v65
  %vm82 = vcmask 220160
  %v84 = vsel %vm82, %v44, 0
  %v87 = vsel %vm82, %v45, 0
  %vm89 = vcmask 1044480
  %vm90 = vcmask 1045504
  %v91 = vsel %vm89, 4294967295, 65535
  %v92 = vsel %vm90, %v91, 0
  %v94 = vand.u32 %v74, %v92
  %v97 = vand.u32 %v75, %v92
  %v100 = vand.u32 %v76, %v92
  %v103 = vand.u32 %v77, %v92
  %105 = vmatpush.bf16.msra.mxu0 0
  %106 = vmatpush.bf16.msra.mxu0 0
  %107 = vmatpush.bf16.msra.mxu0 0
  %108 = vmatpush.bf16.msra.mxu0 0
  %109 = vmatpush.bf16.msra.mxu0 0
  %110 = vmatpush.bf16.msra.mxu0 0
  %111 = vmatpush.bf16.msra.mxu0 %v94
  %112 = vmatpush.bf16.msra.mxu0 %v70
  %113 = vmatmul.bf16.gmra.mxu0 %v84
  %v114 = vpop.f32.mrf.mxu0
  %v115 = vadd.f32 0.0, %v114
  %v116 = vpop.f32.mrf.mxu0
  %v117 = vadd.f32 0.0, %v116
  %118 = vmatmul.bf16.gmra.mxu0 %v87
  %v119 = vpop.f32.mrf.mxu0
  %v120 = vadd.f32 0.0, %v119
  %v121 = vpop.f32.mrf.mxu0
  %v122 = vadd.f32 0.0, %v121
  %123 = vdwg.mxu0
  %124 = vmatpush.bf16.msra.mxu0 0
  %125 = vmatpush.bf16.msra.mxu0 0
  %126 = vmatpush.bf16.msra.mxu0 0
  %127 = vmatpush.bf16.msra.mxu0 0
  %128 = vmatpush.bf16.msra.mxu0 0
  %129 = vmatpush.bf16.msra.mxu0 0
  %130 = vmatpush.bf16.msra.mxu0 %v97
  %131 = vmatpush.bf16.msra.mxu0 %v71
  %132 = vmatmul.bf16.gmra.mxu0 %v84
  %v133 = vpop.f32.mrf.mxu0
  %v134 = vadd.f32 0.0, %v133
  %v135 = vpop.f32.mrf.mxu0
  %v136 = vadd.f32 0.0, %v135
  %137 = vmatmul.bf16.gmra.mxu0 %v87
  %v138 = vpop.f32.mrf.mxu0
  %v139 = vadd.f32 0.0, %v138
  %v140 = vpop.f32.mrf.mxu0
  %v141 = vadd.f32 0.0, %v140
  %142 = vdwg.mxu0
  %143 = vmatpush.bf16.msra.mxu0 0
  %144 = vmatpush.bf16.msra.mxu0 0
  %145 = vmatpush.bf16.msra.mxu0 0
  %146 = vmatpush.bf16.msra.mxu0 0
  %147 = vmatpush.bf16.msra.mxu0 0
  %148 = vmatpush.bf16.msra.mxu0 0
  %149 = vmatpush.bf16.msra.mxu0 %v100
  %150 = vmatpush.bf16.msra.mxu0 %v72
  %151 = vmatmul.bf16.gmra.mxu0 %v84
  %v152 = vpop.f32.mrf.mxu0
  %v153 = vadd.f32 0.0, %v152
  %v154 = vpop.f32.mrf.mxu0
  %v155 = vadd.f32 0.0, %v154
  %156 = vmatmul.bf16.gmra.mxu0 %v87
  %v157 = vpop.f32.mrf.mxu0
  %v158 = vadd.f32 0.0, %v157
  %v159 = vpop.f32.mrf.mxu0
  %v160 = vadd.f32 0.0, %v159
  %161 = vdwg.mxu0
  %162 = vmatpush.bf16.msra.mxu0 0
  %163 = vmatpush.bf16.msra.mxu0 0
  %164 = vmatpush.bf16.msra.mxu0 0
  %165 = vmatpush.bf16.msra.mxu0 0
  %166 = vmatpush.bf16.msra.mxu0 0
  %167 = vmatpush.bf16.msra.mxu0 0
  %168 = vmatpush.bf16.msra.mxu0 %v103
  %169 = vmatpush.bf16.msra.mxu0 %v73
  %170 = vmatmul.bf16.gmra.mxu0 %v84
  %v171 = vpop.f32.mrf.mxu0
  %v172 = vadd.f32 0.0, %v171
  %v173 = vpop.f32.mrf.mxu0
  %v174 = vadd.f32 0.0, %v173
  %175 = vmatmul.bf16.gmra.mxu0 %v87
  %v176 = vpop.f32.mrf.mxu0
  %v177 = vadd.f32 0.0, %v176
  %v178 = vpop.f32.mrf.mxu0
  %v179 = vadd.f32 0.0, %v178
  %180 = vdwg.mxu0
  %v181 = vld [vmem:[%s1] sm:$0xff]
  %v182 = vld [vmem:[%s1 + $0x8] sm:$0xff]
  %v183 = vld [vmem:[%s1 + $0x10] sm:$0xff]
  %v184 = vld [vmem:[%s1 + $0x18] sm:$0xff]
  %v185 = vld [vmem:[%s1 + $0x20] sm:$0xff]
  %v186 = vld [vmem:[%s1 + $0x28] sm:$0xff]
  %v187 = vld [vmem:[%s1 + $0x30] sm:$0x33]
  %v188 = vld [vmem:[%s1 + $0x38] sm:$0x33]
  %v197 = vunpack.c.l.b16 %v181
  %v198 = vunpack.c.h.b16 %v181
  %v199 = vunpack.c.l.b16 %v182
  %v200 = vunpack.c.h.b16 %v182
  %v201 = vunpack.c.l.b16 %v183
  %v202 = vunpack.c.h.b16 %v183
  %v203 = vunpack.c.l.b16 %v184
  %v204 = vunpack.c.h.b16 %v184
  %v205 = vunpack.c.l.b16 %v185
  %v206 = vunpack.c.h.b16 %v185
  %v207 = vunpack.c.l.b16 %v186
  %v208 = vunpack.c.h.b16 %v186
  %v209 = vunpack.c.l.b16 %v187
  %v210 = vunpack.c.h.b16 %v187
  %v211 = vunpack.c.l.b16 %v188
  %v212 = vunpack.c.h.b16 %v188
  %v213 = vpack.c.b16 %v201, %v197
  %v214 = vpack.c.b16 %v202, %v198
  %v215 = vpack.c.b16 %v203, %v199
  %v216 = vpack.c.b16 %v204, %v200
  %v217 = vpack.c.b16 %v209, %v205
  %v218 = vpack.c.b16 %v210, %v206
  %v219 = vpack.c.b16 %v211, %v207
  %v220 = vpack.c.b16 %v212, %v208
  %v226 = vand.u32 %v217, %v92
  %v229 = vand.u32 %v218, %v92
  %v232 = vand.u32 %v219, %v92
  %v235 = vand.u32 %v220, %v92
  %237 = vmatpush.bf16.msra.mxu0 0
  %238 = vmatpush.bf16.msra.mxu0 0
  %239 = vmatpush.bf16.msra.mxu0 0
  %240 = vmatpush.bf16.msra.mxu0 0
  %241 = vmatpush.bf16.msra.mxu0 0
  %242 = vmatpush.bf16.msra.mxu0 0
  %243 = vmatpush.bf16.msra.mxu0 %v226
  %244 = vmatpush.bf16.msra.mxu0 %v213
  %245 = vmatmul.bf16.gmra.mxu0 %v84
  %v246 = vpop.f32.mrf.mxu0
  %v247 = vadd.f32 0.0, %v246
  %v248 = vpop.f32.mrf.mxu0
  %v249 = vadd.f32 0.0, %v248
  %250 = vmatmul.bf16.gmra.mxu0 %v87
  %v251 = vpop.f32.mrf.mxu0
  %v252 = vadd.f32 0.0, %v251
  %v253 = vpop.f32.mrf.mxu0
  %v254 = vadd.f32 0.0, %v253
  %255 = vdwg.mxu0
  %256 = vmatpush.bf16.msra.mxu0 0
  %257 = vmatpush.bf16.msra.mxu0 0
  %258 = vmatpush.bf16.msra.mxu0 0
  %259 = vmatpush.bf16.msra.mxu0 0
  %260 = vmatpush.bf16.msra.mxu0 0
  %261 = vmatpush.bf16.msra.mxu0 0
  %262 = vmatpush.bf16.msra.mxu0 %v229
  %263 = vmatpush.bf16.msra.mxu0 %v214
  %264 = vmatmul.bf16.gmra.mxu0 %v84
  %v265 = vpop.f32.mrf.mxu0
  %v266 = vadd.f32 0.0, %v265
  %v267 = vpop.f32.mrf.mxu0
  %v268 = vadd.f32 0.0, %v267
  %269 = vmatmul.bf16.gmra.mxu0 %v87
  %v270 = vpop.f32.mrf.mxu0
  %v271 = vadd.f32 0.0, %v270
  %v272 = vpop.f32.mrf.mxu0
  %v273 = vadd.f32 0.0, %v272
  %274 = vdwg.mxu0
  %275 = vmatpush.bf16.msra.mxu0 0
  %276 = vmatpush.bf16.msra.mxu0 0
  %277 = vmatpush.bf16.msra.mxu0 0
  %278 = vmatpush.bf16.msra.mxu0 0
  %279 = vmatpush.bf16.msra.mxu0 0
  %280 = vmatpush.bf16.msra.mxu0 0
  %281 = vmatpush.bf16.msra.mxu0 %v232
  %282 = vmatpush.bf16.msra.mxu0 %v215
  %283 = vmatmul.bf16.gmra.mxu0 %v84
  %v284 = vpop.f32.mrf.mxu0
  %v285 = vadd.f32 0.0, %v284
  %v286 = vpop.f32.mrf.mxu0
  %v287 = vadd.f32 0.0, %v286
  %288 = vmatmul.bf16.gmra.mxu0 %v87
  %v289 = vpop.f32.mrf.mxu0
  %v290 = vadd.f32 0.0, %v289
  %v291 = vpop.f32.mrf.mxu0
  %v292 = vadd.f32 0.0, %v291
  %293 = vdwg.mxu0
  %294 = vmatpush.bf16.msra.mxu0 0
  %295 = vmatpush.bf16.msra.mxu0 0
  %296 = vmatpush.bf16.msra.mxu0 0
  %297 = vmatpush.bf16.msra.mxu0 0
  %298 = vmatpush.bf16.msra.mxu0 0
  %299 = vmatpush.bf16.msra.mxu0 0
  %300 = vmatpush.bf16.msra.mxu0 %v235
  %301 = vmatpush.bf16.msra.mxu0 %v216
  %302 = vmatmul.bf16.gmra.mxu0 %v84
  %v303 = vpop.f32.mrf.mxu0
  %v304 = vadd.f32 0.0, %v303
  %v305 = vpop.f32.mrf.mxu0
  %v306 = vadd.f32 0.0, %v305
  %307 = vmatmul.bf16.gmra.mxu0 %v87
  %v308 = vpop.f32.mrf.mxu0
  %v309 = vadd.f32 0.0, %v308
  %v310 = vpop.f32.mrf.mxu0
  %v311 = vadd.f32 0.0, %v310
  %312 = vdwg.mxu0
  %v313 = vmax.f32 %v115, %v247
  %v314 = vmax.f32 %v134, %v266
  %v315 = vmax.f32 %v153, %v285
  %v316 = vmax.f32 %v172, %v304
  %v317 = vmax.f32 %v117, %v249
  %v318 = vmax.f32 %v136, %v268
  %v319 = vmax.f32 %v155, %v287
  %v320 = vmax.f32 %v174, %v306
  %v321 = vmax.f32 %v120, %v252
  %v322 = vmax.f32 %v139, %v271
  %v323 = vmax.f32 %v158, %v290
  %v324 = vmax.f32 %v177, %v309
  %v325 = vmax.f32 %v122, %v254
  %v326 = vmax.f32 %v141, %v273
  %v327 = vmax.f32 %v160, %v292
  %v328 = vmax.f32 %v179, %v311
  %v329 = vld [vmem:[%s2] sm:$0xff]
  %v330 = vld [vmem:[%s2 + $0x8] sm:$0xff]
  %v331 = vld [vmem:[%s2 + $0x10] sm:$0xff]
  %v332 = vld [vmem:[%s2 + $0x18] sm:$0xff]
  %v333 = vld [vmem:[%s2 + $0x20] sm:$0xff]
  %v334 = vld [vmem:[%s2 + $0x28] sm:$0xff]
  %v335 = vld [vmem:[%s2 + $0x30] sm:$0x33]
  %v336 = vld [vmem:[%s2 + $0x38] sm:$0x33]
  %v345 = vunpack.c.l.b16 %v329
  %v346 = vunpack.c.h.b16 %v329
  %v347 = vunpack.c.l.b16 %v330
  %v348 = vunpack.c.h.b16 %v330
  %v349 = vunpack.c.l.b16 %v331
  %v350 = vunpack.c.h.b16 %v331
  %v351 = vunpack.c.l.b16 %v332
  %v352 = vunpack.c.h.b16 %v332
  %v353 = vunpack.c.l.b16 %v333
  %v354 = vunpack.c.h.b16 %v333
  %v355 = vunpack.c.l.b16 %v334
  %v356 = vunpack.c.h.b16 %v334
  %v357 = vunpack.c.l.b16 %v335
  %v358 = vunpack.c.h.b16 %v335
  %v359 = vunpack.c.l.b16 %v336
  %v360 = vunpack.c.h.b16 %v336
  %v361 = vpack.c.b16 %v349, %v345
  %v362 = vpack.c.b16 %v350, %v346
  %v363 = vpack.c.b16 %v351, %v347
  %v364 = vpack.c.b16 %v352, %v348
  %v365 = vpack.c.b16 %v357, %v353
  %v366 = vpack.c.b16 %v358, %v354
  %v367 = vpack.c.b16 %v359, %v355
  %v368 = vpack.c.b16 %v360, %v356
  %v374 = vand.u32 %v365, %v92
  %v377 = vand.u32 %v366, %v92
  %v380 = vand.u32 %v367, %v92
  %v383 = vand.u32 %v368, %v92
  %385 = vmatpush.bf16.msra.mxu0 0
  %386 = vmatpush.bf16.msra.mxu0 0
  %387 = vmatpush.bf16.msra.mxu0 0
  %388 = vmatpush.bf16.msra.mxu0 0
  %389 = vmatpush.bf16.msra.mxu0 0
  %390 = vmatpush.bf16.msra.mxu0 0
  %391 = vmatpush.bf16.msra.mxu0 %v374
  %392 = vmatpush.bf16.msra.mxu0 %v361
  %393 = vmatmul.bf16.gmra.mxu0 %v84
  %v394 = vpop.f32.mrf.mxu0
  %v395 = vadd.f32 0.0, %v394
  %v396 = vpop.f32.mrf.mxu0
  %v397 = vadd.f32 0.0, %v396
  %398 = vmatmul.bf16.gmra.mxu0 %v87
  %v399 = vpop.f32.mrf.mxu0
  %v400 = vadd.f32 0.0, %v399
  %v401 = vpop.f32.mrf.mxu0
  %v402 = vadd.f32 0.0, %v401
  %403 = vdwg.mxu0
  %404 = vmatpush.bf16.msra.mxu0 0
  %405 = vmatpush.bf16.msra.mxu0 0
  %406 = vmatpush.bf16.msra.mxu0 0
  %407 = vmatpush.bf16.msra.mxu0 0
  %408 = vmatpush.bf16.msra.mxu0 0
  %409 = vmatpush.bf16.msra.mxu0 0
  %410 = vmatpush.bf16.msra.mxu0 %v377
  %411 = vmatpush.bf16.msra.mxu0 %v362
  %412 = vmatmul.bf16.gmra.mxu0 %v84
  %v413 = vpop.f32.mrf.mxu0
  %v414 = vadd.f32 0.0, %v413
  %v415 = vpop.f32.mrf.mxu0
  %v416 = vadd.f32 0.0, %v415
  %417 = vmatmul.bf16.gmra.mxu0 %v87
  %v418 = vpop.f32.mrf.mxu0
  %v419 = vadd.f32 0.0, %v418
  %v420 = vpop.f32.mrf.mxu0
  %v421 = vadd.f32 0.0, %v420
  %422 = vdwg.mxu0
  %423 = vmatpush.bf16.msra.mxu0 0
  %424 = vmatpush.bf16.msra.mxu0 0
  %425 = vmatpush.bf16.msra.mxu0 0
  %426 = vmatpush.bf16.msra.mxu0 0
  %427 = vmatpush.bf16.msra.mxu0 0
  %428 = vmatpush.bf16.msra.mxu0 0
  %429 = vmatpush.bf16.msra.mxu0 %v380
  %430 = vmatpush.bf16.msra.mxu0 %v363
  %431 = vmatmul.bf16.gmra.mxu0 %v84
  %v432 = vpop.f32.mrf.mxu0
  %v433 = vadd.f32 0.0, %v432
  %v434 = vpop.f32.mrf.mxu0
  %v435 = vadd.f32 0.0, %v434
  %436 = vmatmul.bf16.gmra.mxu0 %v87
  %v437 = vpop.f32.mrf.mxu0
  %v438 = vadd.f32 0.0, %v437
  %v439 = vpop.f32.mrf.mxu0
  %v440 = vadd.f32 0.0, %v439
  %441 = vdwg.mxu0
  %442 = vmatpush.bf16.msra.mxu0 0
  %443 = vmatpush.bf16.msra.mxu0 0
  %444 = vmatpush.bf16.msra.mxu0 0
  %445 = vmatpush.bf16.msra.mxu0 0
  %446 = vmatpush.bf16.msra.mxu0 0
  %447 = vmatpush.bf16.msra.mxu0 0
  %448 = vmatpush.bf16.msra.mxu0 %v383
  %449 = vmatpush.bf16.msra.mxu0 %v364
  %450 = vmatmul.bf16.gmra.mxu0 %v84
  %v451 = vpop.f32.mrf.mxu0
  %v452 = vadd.f32 0.0, %v451
  %v453 = vpop.f32.mrf.mxu0
  %v454 = vadd.f32 0.0, %v453
  %455 = vmatmul.bf16.gmra.mxu0 %v87
  %v456 = vpop.f32.mrf.mxu0
  %v457 = vadd.f32 0.0, %v456
  %v458 = vpop.f32.mrf.mxu0
  %v459 = vadd.f32 0.0, %v458
  %460 = vdwg.mxu0
  %v461 = vld [vmem:[%s3] sm:$0xff]
  %v462 = vld [vmem:[%s3 + $0x8] sm:$0xff]
  %v463 = vld [vmem:[%s3 + $0x10] sm:$0xff]
  %v464 = vld [vmem:[%s3 + $0x18] sm:$0xff]
  %v465 = vld [vmem:[%s3 + $0x20] sm:$0xff]
  %v466 = vld [vmem:[%s3 + $0x28] sm:$0xff]
  %v467 = vld [vmem:[%s3 + $0x30] sm:$0x33]
  %v468 = vld [vmem:[%s3 + $0x38] sm:$0x33]
  %v477 = vunpack.c.l.b16 %v461
  %v478 = vunpack.c.h.b16 %v461
  %v479 = vunpack.c.l.b16 %v462
  %v480 = vunpack.c.h.b16 %v462
  %v481 = vunpack.c.l.b16 %v463
  %v482 = vunpack.c.h.b16 %v463
  %v483 = vunpack.c.l.b16 %v464
  %v484 = vunpack.c.h.b16 %v464
  %v485 = vunpack.c.l.b16 %v465
  %v486 = vunpack.c.h.b16 %v465
  %v487 = vunpack.c.l.b16 %v466
  %v488 = vunpack.c.h.b16 %v466
  %v489 = vunpack.c.l.b16 %v467
  %v490 = vunpack.c.h.b16 %v467
  %v491 = vunpack.c.l.b16 %v468
  %v492 = vunpack.c.h.b16 %v468
  %v493 = vpack.c.b16 %v481, %v477
  %v494 = vpack.c.b16 %v482, %v478
  %v495 = vpack.c.b16 %v483, %v479
  %v496 = vpack.c.b16 %v484, %v480
  %v497 = vpack.c.b16 %v489, %v485
  %v498 = vpack.c.b16 %v490, %v486
  %v499 = vpack.c.b16 %v491, %v487
  %v500 = vpack.c.b16 %v492, %v488
  %v506 = vand.u32 %v497, %v92
  %v509 = vand.u32 %v498, %v92
  %v512 = vand.u32 %v499, %v92
  %v515 = vand.u32 %v500, %v92
  %517 = vmatpush.bf16.msra.mxu0 0
  %518 = vmatpush.bf16.msra.mxu0 0
  %519 = vmatpush.bf16.msra.mxu0 0
  %520 = vmatpush.bf16.msra.mxu0 0
  %521 = vmatpush.bf16.msra.mxu0 0
  %522 = vmatpush.bf16.msra.mxu0 0
  %523 = vmatpush.bf16.msra.mxu0 %v506
  %524 = vmatpush.bf16.msra.mxu0 %v493
  %525 = vmatmul.bf16.gmra.mxu0 %v84
  %v526 = vpop.f32.mrf.mxu0
  %v527 = vadd.f32 0.0, %v526
  %v528 = vpop.f32.mrf.mxu0
  %v529 = vadd.f32 0.0, %v528
  %530 = vmatmul.bf16.gmra.mxu0 %v87
  %v531 = vpop.f32.mrf.mxu0
  %v532 = vadd.f32 0.0, %v531
  %v533 = vpop.f32.mrf.mxu0
  %v534 = vadd.f32 0.0, %v533
  %535 = vdwg.mxu0
  %536 = vmatpush.bf16.msra.mxu0 0
  %537 = vmatpush.bf16.msra.mxu0 0
  %538 = vmatpush.bf16.msra.mxu0 0
  %539 = vmatpush.bf16.msra.mxu0 0
  %540 = vmatpush.bf16.msra.mxu0 0
  %541 = vmatpush.bf16.msra.mxu0 0
  %542 = vmatpush.bf16.msra.mxu0 %v509
  %543 = vmatpush.bf16.msra.mxu0 %v494
  %544 = vmatmul.bf16.gmra.mxu0 %v84
  %v545 = vpop.f32.mrf.mxu0
  %v546 = vadd.f32 0.0, %v545
  %v547 = vpop.f32.mrf.mxu0
  %v548 = vadd.f32 0.0, %v547
  %549 = vmatmul.bf16.gmra.mxu0 %v87
  %v550 = vpop.f32.mrf.mxu0
  %v551 = vadd.f32 0.0, %v550
  %v552 = vpop.f32.mrf.mxu0
  %v553 = vadd.f32 0.0, %v552
  %554 = vdwg.mxu0
  %555 = vmatpush.bf16.msra.mxu0 0
  %556 = vmatpush.bf16.msra.mxu0 0
  %557 = vmatpush.bf16.msra.mxu0 0
  %558 = vmatpush.bf16.msra.mxu0 0
  %559 = vmatpush.bf16.msra.mxu0 0
  %560 = vmatpush.bf16.msra.mxu0 0
  %561 = vmatpush.bf16.msra.mxu0 %v512
  %562 = vmatpush.bf16.msra.mxu0 %v495
  %563 = vmatmul.bf16.gmra.mxu0 %v84
  %v564 = vpop.f32.mrf.mxu0
  %v565 = vadd.f32 0.0, %v564
  %v566 = vpop.f32.mrf.mxu0
  %v567 = vadd.f32 0.0, %v566
  %568 = vmatmul.bf16.gmra.mxu0 %v87
  %v569 = vpop.f32.mrf.mxu0
  %v570 = vadd.f32 0.0, %v569
  %v571 = vpop.f32.mrf.mxu0
  %v572 = vadd.f32 0.0, %v571
  %573 = vdwg.mxu0
  %574 = vmatpush.bf16.msra.mxu0 0
  %575 = vmatpush.bf16.msra.mxu0 0
  %576 = vmatpush.bf16.msra.mxu0 0
  %577 = vmatpush.bf16.msra.mxu0 0
  %578 = vmatpush.bf16.msra.mxu0 0
  %579 = vmatpush.bf16.msra.mxu0 0
  %580 = vmatpush.bf16.msra.mxu0 %v515
  %581 = vmatpush.bf16.msra.mxu0 %v496
  %582 = vmatmul.bf16.gmra.mxu0 %v84
  %v583 = vpop.f32.mrf.mxu0
  %v584 = vadd.f32 0.0, %v583
  %v585 = vpop.f32.mrf.mxu0
  %v586 = vadd.f32 0.0, %v585
  %587 = vmatmul.bf16.gmra.mxu0 %v87
  %v588 = vpop.f32.mrf.mxu0
  %v589 = vadd.f32 0.0, %v588
  %v590 = vpop.f32.mrf.mxu0
  %v591 = vadd.f32 0.0, %v590
  %592 = vdwg.mxu0
  %v593 = vmax.f32 %v395, %v527
  %v594 = vmax.f32 %v414, %v546
  %v595 = vmax.f32 %v433, %v565
  %v596 = vmax.f32 %v452, %v584
  %v597 = vmax.f32 %v397, %v529
  %v598 = vmax.f32 %v416, %v548
  %v599 = vmax.f32 %v435, %v567
  %v600 = vmax.f32 %v454, %v586
  %v601 = vmax.f32 %v400, %v532
  %v602 = vmax.f32 %v419, %v551
  %v603 = vmax.f32 %v438, %v570
  %v604 = vmax.f32 %v457, %v589
  %v605 = vmax.f32 %v402, %v534
  %v606 = vmax.f32 %v421, %v553
  %v607 = vmax.f32 %v440, %v572
  %v608 = vmax.f32 %v459, %v591
  %v609 = vmax.f32 %v313, %v593
  %v610 = vmax.f32 %v314, %v594
  %v611 = vmax.f32 %v315, %v595
  %v612 = vmax.f32 %v316, %v596
  %v613 = vmax.f32 %v317, %v597
  %v614 = vmax.f32 %v318, %v598
  %v615 = vmax.f32 %v319, %v599
  %v616 = vmax.f32 %v320, %v600
  %v617 = vmax.f32 %v321, %v601
  %v618 = vmax.f32 %v322, %v602
  %v619 = vmax.f32 %v323, %v603
  %v620 = vmax.f32 %v324, %v604
  %v621 = vmax.f32 %v325, %v605
  %v622 = vmax.f32 %v326, %v606
  %v623 = vmax.f32 %v327, %v607
  %v624 = vmax.f32 %v328, %v608
  %v625 = vld [vmem:[%s5] sm:$0xff]
  %v626 = vld [vmem:[%s5 + $0x8] sm:$0xff]
  %v627 = vld [vmem:[%s5 + $0x10] sm:$0xff]
  %v628 = vld [vmem:[%s5 + $0x18] sm:$0xff]
  %630 = vset.pattern.permute.xlu0 0
  %631 = vperm.xlu0 %630, %v625
  %v632 = vpop.permute.xlu0 %631
  %635 = vset.pattern.permute.xlu0 0
  %636 = vperm.xlu0 %635, %v626
  %v637 = vpop.permute.xlu0 %636
  %640 = vset.pattern.permute.xlu0 0
  %641 = vperm.xlu0 %640, %v627
  %v642 = vpop.permute.xlu0 %641
  %645 = vset.pattern.permute.xlu0 0
  %646 = vperm.xlu0 %645, %v628
  %v647 = vpop.permute.xlu0 %646
  %v649 = vadd.f32 %v609, %v632
  %v650 = vadd.f32 %v610, %v632
  %v651 = vadd.f32 %v611, %v632
  %v652 = vadd.f32 %v612, %v632
  %v653 = vadd.f32 %v613, %v637
  %v654 = vadd.f32 %v614, %v637
  %v655 = vadd.f32 %v615, %v637
  %v656 = vadd.f32 %v616, %v637
  %v657 = vadd.f32 %v617, %v642
  %v658 = vadd.f32 %v618, %v642
  %v659 = vadd.f32 %v619, %v642
  %v660 = vadd.f32 %v620, %v642
  %v661 = vadd.f32 %v621, %v647
  %v662 = vadd.f32 %v622, %v647
  %v663 = vadd.f32 %v623, %v647
  %v664 = vadd.f32 %v624, %v647
  %v665 = vmax.f32 %v649, 0.0
  %v666 = vmax.f32 %v650, 0.0
  %v667 = vmax.f32 %v651, 0.0
  %v668 = vmax.f32 %v652, 0.0
  %v669 = vmax.f32 %v653, 0.0
  %v670 = vmax.f32 %v654, 0.0
  %v671 = vmax.f32 %v655, 0.0
  %v672 = vmax.f32 %v656, 0.0
  %v673 = vmax.f32 %v657, 0.0
  %v674 = vmax.f32 %v658, 0.0
  %v675 = vmax.f32 %v659, 0.0
  %v676 = vmax.f32 %v660, 0.0
  %v677 = vmax.f32 %v661, 0.0
  %v678 = vmax.f32 %v662, 0.0
  %v679 = vmax.f32 %v663, 0.0
  %v680 = vmax.f32 %v664, 0.0
  %v681 = vpack.c.bf16 %v666, %v665
  %v682 = vpack.c.bf16 %v668, %v667
  %v683 = vpack.c.bf16 %v670, %v669
  %v684 = vpack.c.bf16 %v672, %v671
  %v685 = vpack.c.bf16 %v674, %v673
  %v686 = vpack.c.bf16 %v676, %v675
  %v687 = vpack.c.bf16 %v678, %v677
  %v688 = vpack.c.bf16 %v680, %v679
  %689 = vst [vmem:[%s6] sm:$0xff] %v681
  %690 = vst [vmem:[%s6 + $0x8] sm:$0xff] %v682
  %691 = vst [vmem:[%s6 + $0x10] sm:$0xff] %v683
  %692 = vst [vmem:[%s6 + $0x18] sm:$0xff] %v684
  %693 = vst [vmem:[%s6 + $0x20] sm:$0xff] %v685
  %694 = vst [vmem:[%s6 + $0x28] sm:$0xff] %v686
  %695 = vst [vmem:[%s6 + $0x30] sm:$0xff] %v687
  %696 = vst [vmem:[%s6 + $0x38] sm:$0xff] %v688
  // Predicated region
  $region26: #{simple_cnn_forward.4} parent=0 // pred_check
    _
  $region27: #{simple_cnn_forward.4} parent=0 // pred_check_branch
    %698 = sbr.rel (0) target = $region29
  $region28: #{simple_cnn_forward.4} parent=0 // pred_region
    _
  $region29: #{simple_cnn_forward.4} parent=0 // pred_fallthru
    _
  // Predicated region
  $region30: #{simple_cnn_forward.4} parent=0 // pred_check
    _
  $region31: #{simple_cnn_forward.4} parent=0 // pred_check_branch
    %700 = sbr.rel (0) target = $region33
  $region32: #{simple_cnn_forward.4} parent=0 // pred_region
    _
  $region33: #{simple_cnn_forward.4} parent=0 // pred_fallthru
    _

// kernel: simple_cnn_forward.5
$region0: #{simple_cnn_forward.5}
  #allocation0 [shape = 'u32[]', space=smem, size = 0x4, offset = 0x4, fixed_abs, tag = 'smem constant byte address 0x4 - core index']
  #allocation1 [shape = 'u32[72,128]{1,0:T(1,128)}', space=vmem, size = 0x9000, scoped, tag = 'internal scratch']
  %s0 = inlined_call_operand.vmem [shape: bf16[288,128], index: 0, kind: input, shape index: {}]
  %s1 = inlined_call_operand.vmem [shape: bf16[288,128], index: 1, kind: input, shape index: {}]
  %s2 = inlined_call_operand.vmem [shape: bf16[288,128], index: 2, kind: input, shape index: {}]
  %s3 = inlined_call_operand.vmem [shape: bf16[288,128], index: 3, kind: input, shape index: {}]
  %s4 = inlined_call_operand.vmem [shape: bf16[64,288], index: 4, kind: input, shape index: {}]
  %s5 = inlined_call_operand.vmem [shape: f32[64,1], index: 5, kind: input, shape index: {}]
  %s6 = inlined_call_operand.vmem [shape: bf16[64,128], index: 6, kind: output, shape index: {}]
  %s7 = sld [smem:[#allocation0]]
  $region34: #{simple_cnn_forward.5} parent=0
    _
  %s9 = ssub.s32 1, %s7
  %s10 = scalar_select 0, %s9, %s7
  // Predicated region
  $region2: #{simple_cnn_forward.5} parent=0 // pred_check
    _
  $region3: #{simple_cnn_forward.5} parent=0 // pred_check_branch
    %12 = sbr.rel (0) target = $region5
  $region4: #{simple_cnn_forward.5} parent=0 // pred_region
    _
  $region5: #{simple_cnn_forward.5} parent=0 // pred_fallthru
    _
  // Predicated region
  $region6: #{simple_cnn_forward.5} parent=0 // pred_check
    _
  $region7: #{simple_cnn_forward.5} parent=0 // pred_check_branch
    %14 = sbr.rel (0) target = $region9
  $region8: #{simple_cnn_forward.5} parent=0 // pred_region
    _
  $region9: #{simple_cnn_forward.5} parent=0 // pred_fallthru
    _
  // Predicated region
  $region10: #{simple_cnn_forward.5} parent=0 // pred_check
    _
  $region11: #{simple_cnn_forward.5} parent=0 // pred_check_branch
    %16 = sbr.rel (0) target = $region13
  $region12: #{simple_cnn_forward.5} parent=0 // pred_region
    _
  $region13: #{simple_cnn_forward.5} parent=0 // pred_fallthru
    _
  // Predicated region
  $region14: #{simple_cnn_forward.5} parent=0 // pred_check
    _
  $region15: #{simple_cnn_forward.5} parent=0 // pred_check_branch
    %18 = sbr.rel (0) target = $region17
  $region16: #{simple_cnn_forward.5} parent=0 // pred_region
    _
  $region17: #{simple_cnn_forward.5} parent=0 // pred_fallthru
    _
  // Predicated region
  $region18: #{simple_cnn_forward.5} parent=0 // pred_check
    _
  $region19: #{simple_cnn_forward.5} parent=0 // pred_check_branch
    %20 = sbr.rel (0) target = $region21
  $region20: #{simple_cnn_forward.5} parent=0 // pred_region
    _
  $region21: #{simple_cnn_forward.5} parent=0 // pred_fallthru
    _
  // Predicated region
  $region22: #{simple_cnn_forward.5} parent=0 // pred_check
    _
  $region23: #{simple_cnn_forward.5} parent=0 // pred_check_branch
    %22 = sbr.rel (0) target = $region25
  $region24: #{simple_cnn_forward.5} parent=0 // pred_region
    _
  $region25: #{simple_cnn_forward.5} parent=0 // pred_fallthru
    _
  %v24 = vld [vmem:[%s4] sm:$0xff]
  %v25 = vld [vmem:[%s4 + $0x8] sm:$0xf]
  %v26 = vld [vmem:[%s4 + $0xc] sm:$0xff]
  %v27 = vld [vmem:[%s4 + $0x14] sm:$0xf]
  %v28 = vld [vmem:[%s4 + $0x18] sm:$0xff]
  %v29 = vld [vmem:[%s4 + $0x20] sm:$0xf]
  %v30 = vld [vmem:[%s4 + $0x24] sm:$0xff]
  %v31 = vld [vmem:[%s4 + $0x2c] sm:$0xf]
  %v32 = vld [vmem:[%s4 + $0x30] sm:$0xff]
  %v33 = vld [vmem:[%s4 + $0x38] sm:$0xf]
  %v34 = vld [vmem:[%s4 + $0x3c] sm:$0xff]
  %v35 = vld [vmem:[%s4 + $0x44] sm:$0xf]
  %v36 = vld [vmem:[%s4 + $0x48] sm:$0xff]
  %v37 = vld [vmem:[%s4 + $0x50] sm:$0xf]
  %v38 = vld [vmem:[%s4 + $0x54] sm:$0xff]
  %v39 = vld [vmem:[%s4 + $0x5c] sm:$0xf]
  %v40 = vld [vmem:[%s0] sm:$0xf]
  %v41 = vld [vmem:[%s0 + $0x4] sm:$0xf]
  %v42 = vld [vmem:[%s0 + $0x8] sm:$0xf]
  %v43 = vld [vmem:[%s0 + $0xc] sm:$0xf]
  %v44 = vld [vmem:[%s0 + $0x10] sm:$0xf]
  %v45 = vld [vmem:[%s0 + $0x14] sm:$0xf]
  %v46 = vld [vmem:[%s0 + $0x18] sm:$0xf]
  %v47 = vld [vmem:[%s0 + $0x1c] sm:$0xf]
  %v48 = vld [vmem:[%s0 + $0x20] sm:$0xf]
  %v49 = vld [vmem:[%s0 + $0x24] sm:$0xf]
  %v50 = vld [vmem:[%s0 + $0x28] sm:$0xf]
  %v51 = vld [vmem:[%s0 + $0x2c] sm:$0xf]
  %v52 = vld [vmem:[%s0 + $0x30] sm:$0xf]
  %v53 = vld [vmem:[%s0 + $0x34] sm:$0xf]
  %v54 = vld [vmem:[%s0 + $0x38] sm:$0xf]
  %v55 = vld [vmem:[%s0 + $0x3c] sm:$0xf]
  %v56 = vld [vmem:[%s0 + $0x40] sm:$0xf]
  %v57 = vld [vmem:[%s0 + $0x44] sm:$0xf]
  %v58 = vld [vmem:[%s0 + $0x48] sm:$0xf]
  %v59 = vld [vmem:[%s0 + $0x4c] sm:$0xf]
  %v60 = vld [vmem:[%s0 + $0x50] sm:$0xf]
  %v61 = vld [vmem:[%s0 + $0x54] sm:$0xf]
  %v62 = vld [vmem:[%s0 + $0x58] sm:$0xf]
  %v63 = vld [vmem:[%s0 + $0x5c] sm:$0xf]
  %v64 = vld [vmem:[%s0 + $0x60] sm:$0xf]
  %v65 = vld [vmem:[%s0 + $0x64] sm:$0xf]
  %v66 = vld [vmem:[%s0 + $0x68] sm:$0xf]
  %v67 = vld [vmem:[%s0 + $0x6c] sm:$0xf]
  %v68 = vld [vmem:[%s0 + $0x70] sm:$0xf]
  %v69 = vld [vmem:[%s0 + $0x74] sm:$0xf]
  %v70 = vld [vmem:[%s0 + $0x78] sm:$0xf]
  %v71 = vld [vmem:[%s0 + $0x7c] sm:$0xf]
  %v72 = vld [vmem:[%s0 + $0x80] sm:$0xf]
  %v73 = vld [vmem:[%s0 + $0x84] sm:$0xf]
  %v74 = vld [vmem:[%s0 + $0x88] sm:$0xf]
  %v75 = vld [vmem:[%s0 + $0x8c] sm:$0xf]
  %v92 = vunpack.c.l.b16 %v24
  %v93 = vunpack.c.h.b16 %v24
  %v94 = vunpack.c.l.b16 %v25
  %v95 = vunpack.c.l.b16 %v26
  %v96 = vunpack.c.h.b16 %v26
  %v97 = vunpack.c.l.b16 %v27
  %v98 = vunpack.c.l.b16 %v28
  %v99 = vunpack.c.h.b16 %v28
  %v100 = vunpack.c.l.b16 %v29
  %v101 = vunpack.c.l.b16 %v30
  %v102 = vunpack.c.h.b16 %v30
  %v103 = vunpack.c.l.b16 %v31
  %v104 = vunpack.c.l.b16 %v32
  %v105 = vunpack.c.h.b16 %v32
  %v106 = vunpack.c.l.b16 %v33
  %v107 = vunpack.c.l.b16 %v34
  %v108 = vunpack.c.h.b16 %v34
  %v109 = vunpack.c.l.b16 %v35
  %v110 = vunpack.c.l.b16 %v36
  %v111 = vunpack.c.h.b16 %v36
  %v112 = vunpack.c.l.b16 %v37
  %v113 = vunpack.c.l.b16 %v38
  %v114 = vunpack.c.h.b16 %v38
  %v115 = vunpack.c.l.b16 %v39
  %v116 = vpack.c.b16 %v95, %v92
  %v117 = vpack.c.b16 %v96, %v93
  %v118 = vpack.c.b16 %v97, %v94
  %v119 = vpack.c.b16 %v101, %v98
  %v120 = vpack.c.b16 %v102, %v99
  %v121 = vpack.c.b16 %v103, %v100
  %v122 = vpack.c.b16 %v107, %v104
  %v123 = vpack.c.b16 %v108, %v105
  %v124 = vpack.c.b16 %v109, %v106
  %v125 = vpack.c.b16 %v113, %v110
  %v126 = vpack.c.b16 %v114, %v111
  %v127 = vpack.c.b16 %v115, %v112
  %v172 = vunpack.c.l.b16 %v40
  %v173 = vunpack.c.l.b16 %v41
  %v174 = vunpack.c.l.b16 %v42
  %v175 = vunpack.c.l.b16 %v43
  %v176 = vunpack.c.l.b16 %v44
  %v177 = vunpack.c.l.b16 %v45
  %v178 = vunpack.c.l.b16 %v46
  %v179 = vunpack.c.l.b16 %v47
  %v180 = vunpack.c.l.b16 %v48
  %v181 = vunpack.c.l.b16 %v49
  %v182 = vunpack.c.l.b16 %v50
  %v183 = vunpack.c.l.b16 %v51
  %v184 = vunpack.c.l.b16 %v52
  %v185 = vunpack.c.l.b16 %v53
  %v186 = vunpack.c.l.b16 %v54
  %v187 = vunpack.c.l.b16 %v55
  %v188 = vunpack.c.l.b16 %v56
  %v189 = vunpack.c.l.b16 %v57
  %v190 = vunpack.c.l.b16 %v58
  %v191 = vunpack.c.l.b16 %v59
  %v192 = vunpack.c.l.b16 %v60
  %v193 = vunpack.c.l.b16 %v61
  %v194 = vunpack.c.l.b16 %v62
  %v195 = vunpack.c.l.b16 %v63
  %v196 = vunpack.c.l.b16 %v64
  %v197 = vunpack.c.l.b16 %v65
  %v198 = vunpack.c.l.b16 %v66
  %v199 = vunpack.c.l.b16 %v67
  %v200 = vunpack.c.l.b16 %v68
  %v201 = vunpack.c.l.b16 %v69
  %v202 = vunpack.c.l.b16 %v70
  %v203 = vunpack.c.l.b16 %v71
  %v204 = vunpack.c.l.b16 %v72
  %v205 = vunpack.c.l.b16 %v73
  %v206 = vunpack.c.l.b16 %v74
  %v207 = vunpack.c.l.b16 %v75
  %v208 = vpack.c.b16 %v173, %v172
  %v209 = vpack.c.b16 %v175, %v174
  %v210 = vpack.c.b16 %v177, %v176
  %v211 = vpack.c.b16 %v179, %v178
  %v212 = vpack.c.b16 %v181, %v180
  %v213 = vpack.c.b16 %v183, %v182
  %v214 = vpack.c.b16 %v185, %v184
  %v215 = vpack.c.b16 %v187, %v186
  %v216 = vpack.c.b16 %v189, %v188
  %v217 = vpack.c.b16 %v191, %v190
  %v218 = vpack.c.b16 %v193, %v192
  %v219 = vpack.c.b16 %v195, %v194
  %v220 = vpack.c.b16 %v197, %v196
  %v221 = vpack.c.b16 %v199, %v198
  %v222 = vpack.c.b16 %v201, %v200
  %v223 = vpack.c.b16 %v203, %v202
  %v224 = vpack.c.b16 %v205, %v204
  %v225 = vpack.c.b16 %v207, %v206
  %vm244 = vcmask 261120
  %v246 = vsel %vm244, %v118, 0
  %v249 = vsel %vm244, %v121, 0
  %v252 = vsel %vm244, %v124, 0
  %v255 = vsel %vm244, %v127, 0
  %257 = vmatpush.bf16.msra.mxu0 %v215
  %258 = vmatpush.bf16.msra.mxu0 %v214
  %259 = vmatpush.bf16.msra.mxu0 %v213
  %260 = vmatpush.bf16.msra.mxu0 %v212
  %261 = vmatpush.bf16.msra.mxu0 %v211
  %262 = vmatpush.bf16.msra.mxu0 %v210
  %263 = vmatpush.bf16.msra.mxu0 %v209
  %264 = vmatpush.bf16.msra.mxu0 %v208
  %265 = vmatmul.bf16.gmra.mxu0 %v116
  %v266 = vpop.f32.mrf.mxu0
  %v267 = vadd.f32 0.0, %v266
  %v268 = vpop.f32.mrf.mxu0
  %v269 = vadd.f32 0.0, %v268
  %270 = vmatmul.bf16.gmra.mxu0 %v119
  %v271 = vpop.f32.mrf.mxu0
  %v272 = vadd.f32 0.0, %v271
  %v273 = vpop.f32.mrf.mxu0
  %v274 = vadd.f32 0.0, %v273
  %275 = vmatmul.bf16.gmra.mxu0 %v122
  %v276 = vpop.f32.mrf.mxu0
  %v277 = vadd.f32 0.0, %v276
  %v278 = vpop.f32.mrf.mxu0
  %v279 = vadd.f32 0.0, %v278
  %280 = vmatmul.bf16.gmra.mxu0 %v125
  %v281 = vpop.f32.mrf.mxu0
  %v282 = vadd.f32 0.0, %v281
  %v283 = vpop.f32.mrf.mxu0
  %v284 = vadd.f32 0.0, %v283
  %285 = vdwg.mxu0
  %286 = vmatpush.bf16.msra.mxu0 %v223
  %287 = vmatpush.bf16.msra.mxu0 %v222
  %288 = vmatpush.bf16.msra.mxu0 %v221
  %289 = vmatpush.bf16.msra.mxu0 %v220
  %290 = vmatpush.bf16.msra.mxu0 %v219
  %291 = vmatpush.bf16.msra.mxu0 %v218
  %292 = vmatpush.bf16.msra.mxu0 %v217
  %293 = vmatpush.bf16.msra.mxu0 %v216
  %294 = vmatmul.bf16.gmra.mxu0 %v117
  %v295 = vpop.f32.mrf.mxu0
  %v296 = vadd.f32 %v267, %v295
  %v297 = vpop.f32.mrf.mxu0
  %v298 = vadd.f32 %v269, %v297
  %299 = vmatmul.bf16.gmra.mxu0 %v120
  %v300 = vpop.f32.mrf.mxu0
  %v301 = vadd.f32 %v272, %v300
  %v302 = vpop.f32.mrf.mxu0
  %v303 = vadd.f32 %v274, %v302
  %304 = vmatmul.bf16.gmra.mxu0 %v123
  %v305 = vpop.f32.mrf.mxu0
  %v306 = vadd.f32 %v277, %v305
  %v307 = vpop.f32.mrf.mxu0
  %v308 = vadd.f32 %v279, %v307
  %309 = vmatmul.bf16.gmra.mxu0 %v126
  %v310 = vpop.f32.mrf.mxu0
  %v311 = vadd.f32 %v282, %v310
  %v312 = vpop.f32.mrf.mxu0
  %v313 = vadd.f32 %v284, %v312
  %314 = vdwg.mxu0
  %315 = vmatpush.bf16.msra.mxu0 0
  %316 = vmatpush.bf16.msra.mxu0 0
  %317 = vmatpush.bf16.msra.mxu0 0
  %318 = vmatpush.bf16.msra.mxu0 0
  %319 = vmatpush.bf16.msra.mxu0 0
  %320 = vmatpush.bf16.msra.mxu0 0
  %321 = vmatpush.bf16.msra.mxu0 %v225
  %322 = vmatpush.bf16.msra.mxu0 %v224
  %323 = vmatmul.bf16.gmra.mxu0 %v246
  %v324 = vpop.f32.mrf.mxu0
  %v325 = vadd.f32 %v296, %v324
  %v326 = vpop.f32.mrf.mxu0
  %v327 = vadd.f32 %v298, %v326
  %328 = vmatmul.bf16.gmra.mxu0 %v249
  %v329 = vpop.f32.mrf.mxu0
  %v330 = vadd.f32 %v301, %v329
  %v331 = vpop.f32.mrf.mxu0
  %v332 = vadd.f32 %v303, %v331
  %333 = vmatmul.bf16.gmra.mxu0 %v252
  %v334 = vpop.f32.mrf.mxu0
  %v335 = vadd.f32 %v306, %v334
  %v336 = vpop.f32.mrf.mxu0
  %v337 = vadd.f32 %v308, %v336
  %338 = vmatmul.bf16.gmra.mxu0 %v255
  %v339 = vpop.f32.mrf.mxu0
  %v340 = vadd.f32 %v311, %v339
  %v341 = vpop.f32.mrf.mxu0
  %v342 = vadd.f32 %v313, %v341
  %343 = vdwg.mxu0
  %v344 = vld [vmem:[%s1] sm:$0xf]
  %v345 = vld [vmem:[%s1 + $0x4] sm:$0xf]
  %v346 = vld [vmem:[%s1 + $0x8] sm:$0xf]
  %v347 = vld [vmem:[%s1 + $0xc] sm:$0xf]
  %v348 = vld [vmem:[%s1 + $0x10] sm:$0xf]
  %v349 = vld [vmem:[%s1 + $0x14] sm:$0xf]
  %v350 = vld [vmem:[%s1 + $0x18] sm:$0xf]
  %v351 = vld [vmem:[%s1 + $0x1c] sm:$0xf]
  %v352 = vld [vmem:[%s1 + $0x20] sm:$0xf]
  %v353 = vld [vmem:[%s1 + $0x24] sm:$0xf]
  %v354 = vld [vmem:[%s1 + $0x28] sm:$0xf]
  %v355 = vld [vmem:[%s1 + $0x2c] sm:$0xf]
  %v356 = vld [vmem:[%s1 + $0x30] sm:$0xf]
  %v357 = vld [vmem:[%s1 + $0x34] sm:$0xf]
  %v358 = vld [vmem:[%s1 + $0x38] sm:$0xf]
  %v359 = vld [vmem:[%s1 + $0x3c] sm:$0xf]
  %v360 = vld [vmem:[%s1 + $0x40] sm:$0xf]
  %v361 = vld [vmem:[%s1 + $0x44] sm:$0xf]
  %v362 = vld [vmem:[%s1 + $0x48] sm:$0xf]
  %v363 = vld [vmem:[%s1 + $0x4c] sm:$0xf]
  %v364 = vld [vmem:[%s1 + $0x50] sm:$0xf]
  %v365 = vld [vmem:[%s1 + $0x54] sm:$0xf]
  %v366 = vld [vmem:[%s1 + $0x58] sm:$0xf]
  %v367 = vld [vmem:[%s1 + $0x5c] sm:$0xf]
  %v368 = vld [vmem:[%s1 + $0x60] sm:$0xf]
  %v369 = vld [vmem:[%s1 + $0x64] sm:$0xf]
  %v370 = vld [vmem:[%s1 + $0x68] sm:$0xf]
  %v371 = vld [vmem:[%s1 + $0x6c] sm:$0xf]
  %v372 = vld [vmem:[%s1 + $0x70] sm:$0xf]
  %v373 = vld [vmem:[%s1 + $0x74] sm:$0xf]
  %v374 = vld [vmem:[%s1 + $0x78] sm:$0xf]
  %v375 = vld [vmem:[%s1 + $0x7c] sm:$0xf]
  %v376 = vld [vmem:[%s1 + $0x80] sm:$0xf]
  %v377 = vld [vmem:[%s1 + $0x84] sm:$0xf]
  %v378 = vld [vmem:[%s1 + $0x88] sm:$0xf]
  %v379 = vld [vmem:[%s1 + $0x8c] sm:$0xf]
  %v416 = vunpack.c.l.b16 %v344
  %v417 = vunpack.c.l.b16 %v345
  %v418 = vunpack.c.l.b16 %v346
  %v419 = vunpack.c.l.b16 %v347
  %v420 = vunpack.c.l.b16 %v348
  %v421 = vunpack.c.l.b16 %v349
  %v422 = vunpack.c.l.b16 %v350
  %v423 = vunpack.c.l.b16 %v351
  %v424 = vunpack.c.l.b16 %v352
  %v425 = vunpack.c.l.b16 %v353
  %v426 = vunpack.c.l.b16 %v354
  %v427 = vunpack.c.l.b16 %v355
  %v428 = vunpack.c.l.b16 %v356
  %v429 = vunpack.c.l.b16 %v357
  %v430 = vunpack.c.l.b16 %v358
  %v431 = vunpack.c.l.b16 %v359
  %v432 = vunpack.c.l.b16 %v360
  %v433 = vunpack.c.l.b16 %v361
  %v434 = vunpack.c.l.b16 %v362
  %v435 = vunpack.c.l.b16 %v363
  %v436 = vunpack.c.l.b16 %v364
  %v437 = vunpack.c.l.b16 %v365
  %v438 = vunpack.c.l.b16 %v366
  %v439 = vunpack.c.l.b16 %v367
  %v440 = vunpack.c.l.b16 %v368
  %v441 = vunpack.c.l.b16 %v369
  %v442 = vunpack.c.l.b16 %v370
  %v443 = vunpack.c.l.b16 %v371
  %v444 = vunpack.c.l.b16 %v372
  %v445 = vunpack.c.l.b16 %v373
  %v446 = vunpack.c.l.b16 %v374
  %v447 = vunpack.c.l.b16 %v375
  %v448 = vunpack.c.l.b16 %v376
  %v449 = vunpack.c.l.b16 %v377
  %v450 = vunpack.c.l.b16 %v378
  %v451 = vunpack.c.l.b16 %v379
  %v452 = vpack.c.b16 %v417, %v416
  %v453 = vpack.c.b16 %v419, %v418
  %v454 = vpack.c.b16 %v421, %v420
  %v455 = vpack.c.b16 %v423, %v422
  %v456 = vpack.c.b16 %v425, %v424
  %v457 = vpack.c.b16 %v427, %v426
  %v458 = vpack.c.b16 %v429, %v428
  %v459 = vpack.c.b16 %v431, %v430
  %v460 = vpack.c.b16 %v433, %v432
  %v461 = vpack.c.b16 %v435, %v434
  %v462 = vpack.c.b16 %v437, %v436
  %v463 = vpack.c.b16 %v439, %v438
  %v464 = vpack.c.b16 %v441, %v440
  %v465 = vpack.c.b16 %v443, %v442
  %v466 = vpack.c.b16 %v445, %v444
  %v467 = vpack.c.b16 %v447, %v446
  %v468 = vpack.c.b16 %v449, %v448
  %v469 = vpack.c.b16 %v451, %v450
  %488 = vmatpush.bf16.msra.mxu0 %v459
  %489 = vmatpush.bf16.msra.mxu0 %v458
  %490 = vmatpush.bf16.msra.mxu0 %v457
  %491 = vmatpush.bf16.msra.mxu0 %v456
  %492 = vmatpush.bf16.msra.mxu0 %v455
  %493 = vmatpush.bf16.msra.mxu0 %v454
  %494 = vmatpush.bf16.msra.mxu0 %v453
  %495 = vmatpush.bf16.msra.mxu0 %v452
  %496 = vmatmul.bf16.gmra.mxu0 %v116
  %v497 = vpop.f32.mrf.mxu0
  %v498 = vadd.f32 0.0, %v497
  %v499 = vpop.f32.mrf.mxu0
  %v500 = vadd.f32 0.0, %v499
  %501 = vmatmul.bf16.gmra.mxu0 %v119
  %v502 = vpop.f32.mrf.mxu0
  %v503 = vadd.f32 0.0, %v502
  %v504 = vpop.f32.mrf.mxu0
  %v505 = vadd.f32 0.0, %v504
  %506 = vmatmul.bf16.gmra.mxu0 %v122
  %v507 = vpop.f32.mrf.mxu0
  %v508 = vadd.f32 0.0, %v507
  %v509 = vpop.f32.mrf.mxu0
  %v510 = vadd.f32 0.0, %v509
  %511 = vmatmul.bf16.gmra.mxu0 %v125
  %v512 = vpop.f32.mrf.mxu0
  %v513 = vadd.f32 0.0, %v512
  %v514 = vpop.f32.mrf.mxu0
  %v515 = vadd.f32 0.0, %v514
  %516 = vdwg.mxu0
  %517 = vmatpush.bf16.msra.mxu0 %v467
  %518 = vmatpush.bf16.msra.mxu0 %v466
  %519 = vmatpush.bf16.msra.mxu0 %v465
  %520 = vmatpush.bf16.msra.mxu0 %v464
  %521 = vmatpush.bf16.msra.mxu0 %v463
  %522 = vmatpush.bf16.msra.mxu0 %v462
  %523 = vmatpush.bf16.msra.mxu0 %v461
  %524 = vmatpush.bf16.msra.mxu0 %v460
  %525 = vmatmul.bf16.gmra.mxu0 %v117
  %v526 = vpop.f32.mrf.mxu0
  %v527 = vadd.f32 %v498, %v526
  %v528 = vpop.f32.mrf.mxu0
  %v529 = vadd.f32 %v500, %v528
  %530 = vmatmul.bf16.gmra.mxu0 %v120
  %v531 = vpop.f32.mrf.mxu0
  %v532 = vadd.f32 %v503, %v531
  %v533 = vpop.f32.mrf.mxu0
  %v534 = vadd.f32 %v505, %v533
  %535 = vmatmul.bf16.gmra.mxu0 %v123
  %v536 = vpop.f32.mrf.mxu0
  %v537 = vadd.f32 %v508, %v536
  %v538 = vpop.f32.mrf.mxu0
  %v539 = vadd.f32 %v510, %v538
  %540 = vmatmul.bf16.gmra.mxu0 %v126
  %v541 = vpop.f32.mrf.mxu0
  %v542 = vadd.f32 %v513, %v541
  %v543 = vpop.f32.mrf.mxu0
  %v544 = vadd.f32 %v515, %v543
  %545 = vdwg.mxu0
  %546 = vmatpush.bf16.msra.mxu0 0
  %547 = vmatpush.bf16.msra.mxu0 0
  %548 = vmatpush.bf16.msra.mxu0 0
  %549 = vmatpush.bf16.msra.mxu0 0
  %550 = vmatpush.bf16.msra.mxu0 0
  %551 = vmatpush.bf16.msra.mxu0 0
  %552 = vmatpush.bf16.msra.mxu0 %v469
  %553 = vmatpush.bf16.msra.mxu0 %v468
  %554 = vmatmul.bf16.gmra.mxu0 %v246
  %v555 = vpop.f32.mrf.mxu0
  %v556 = vadd.f32 %v527, %v555
  %v557 = vpop.f32.mrf.mxu0
  %v558 = vadd.f32 %v529, %v557
  %559 = vmatmul.bf16.gmra.mxu0 %v249
  %v560 = vpop.f32.mrf.mxu0
  %v561 = vadd.f32 %v532, %v560
  %v562 = vpop.f32.mrf.mxu0
  %v563 = vadd.f32 %v534, %v562
  %564 = vmatmul.bf16.gmra.mxu0 %v252
  %v565 = vpop.f32.mrf.mxu0
  %v566 = vadd.f32 %v537, %v565
  %v567 = vpop.f32.mrf.mxu0
  %v568 = vadd.f32 %v539, %v567
  %569 = vmatmul.bf16.gmra.mxu0 %v255
  %v570 = vpop.f32.mrf.mxu0
  %v571 = vadd.f32 %v542, %v570
  %v572 = vpop.f32.mrf.mxu0
  %v573 = vadd.f32 %v544, %v572
  %574 = vdwg.mxu0
  %v575 = vmax.f32 %v325, %v556
  %v576 = vmax.f32 %v327, %v558
  %v577 = vmax.f32 %v330, %v561
  %v578 = vmax.f32 %v332, %v563
  %v579 = vmax.f32 %v335, %v566
  %v580 = vmax.f32 %v337, %v568
  %v581 = vmax.f32 %v340, %v571
  %v582 = vmax.f32 %v342, %v573
  %v583 = vld [vmem:[%s2] sm:$0xf]
  %v584 = vld [vmem:[%s2 + $0x4] sm:$0xf]
  %v585 = vld [vmem:[%s2 + $0x8] sm:$0xf]
  %v586 = vld [vmem:[%s2 + $0xc] sm:$0xf]
  %v587 = vld [vmem:[%s2 + $0x10] sm:$0xf]
  %v588 = vld [vmem:[%s2 + $0x14] sm:$0xf]
  %v589 = vld [vmem:[%s2 + $0x18] sm:$0xf]
  %v590 = vld [vmem:[%s2 + $0x1c] sm:$0xf]
  %v591 = vld [vmem:[%s2 + $0x20] sm:$0xf]
  %v592 = vld [vmem:[%s2 + $0x24] sm:$0xf]
  %v593 = vld [vmem:[%s2 + $0x28] sm:$0xf]
  %v594 = vld [vmem:[%s2 + $0x2c] sm:$0xf]
  %v595 = vld [vmem:[%s2 + $0x30] sm:$0xf]
  %v596 = vld [vmem:[%s2 + $0x34] sm:$0xf]
  %v597 = vld [vmem:[%s2 + $0x38] sm:$0xf]
  %v598 = vld [vmem:[%s2 + $0x3c] sm:$0xf]
  %v599 = vld [vmem:[%s2 + $0x40] sm:$0xf]
  %v600 = vld [vmem:[%s2 + $0x44] sm:$0xf]
  %v601 = vld [vmem:[%s2 + $0x48] sm:$0xf]
  %v602 = vld [vmem:[%s2 + $0x4c] sm:$0xf]
  %v603 = vld [vmem:[%s2 + $0x50] sm:$0xf]
  %v604 = vld [vmem:[%s2 + $0x54] sm:$0xf]
  %v605 = vld [vmem:[%s2 + $0x58] sm:$0xf]
  %v606 = vld [vmem:[%s2 + $0x5c] sm:$0xf]
  %v607 = vld [vmem:[%s2 + $0x60] sm:$0xf]
  %v608 = vld [vmem:[%s2 + $0x64] sm:$0xf]
  %v609 = vld [vmem:[%s2 + $0x68] sm:$0xf]
  %v610 = vld [vmem:[%s2 + $0x6c] sm:$0xf]
  %v611 = vld [vmem:[%s2 + $0x70] sm:$0xf]
  %v612 = vld [vmem:[%s2 + $0x74] sm:$0xf]
  %v613 = vld [vmem:[%s2 + $0x78] sm:$0xf]
  %v614 = vld [vmem:[%s2 + $0x7c] sm:$0xf]
  %v615 = vld [vmem:[%s2 + $0x80] sm:$0xf]
  %v616 = vld [vmem:[%s2 + $0x84] sm:$0xf]
  %v617 = vld [vmem:[%s2 + $0x88] sm:$0xf]
  %v618 = vld [vmem:[%s2 + $0x8c] sm:$0xf]
  %v655 = vunpack.c.l.b16 %v583
  %v656 = vunpack.c.l.b16 %v584
  %v657 = vunpack.c.l.b16 %v585
  %v658 = vunpack.c.l.b16 %v586
  %v659 = vunpack.c.l.b16 %v587
  %v660 = vunpack.c.l.b16 %v588
  %v661 = vunpack.c.l.b16 %v589
  %v662 = vunpack.c.l.b16 %v590
  %v663 = vunpack.c.l.b16 %v591
  %v664 = vunpack.c.l.b16 %v592
  %v665 = vunpack.c.l.b16 %v593
  %v666 = vunpack.c.l.b16 %v594
  %v667 = vunpack.c.l.b16 %v595
  %v668 = vunpack.c.l.b16 %v596
  %v669 = vunpack.c.l.b16 %v597
  %v670 = vunpack.c.l.b16 %v598
  %v671 = vunpack.c.l.b16 %v599
  %v672 = vunpack.c.l.b16 %v600
  %v673 = vunpack.c.l.b16 %v601
  %v674 = vunpack.c.l.b16 %v602
  %v675 = vunpack.c.l.b16 %v603
  %v676 = vunpack.c.l.b16 %v604
  %v677 = vunpack.c.l.b16 %v605
  %v678 = vunpack.c.l.b16 %v606
  %v679 = vunpack.c.l.b16 %v607
  %v680 = vunpack.c.l.b16 %v608
  %v681 = vunpack.c.l.b16 %v609
  %v682 = vunpack.c.l.b16 %v610
  %v683 = vunpack.c.l.b16 %v611
  %v684 = vunpack.c.l.b16 %v612
  %v685 = vunpack.c.l.b16 %v613
  %v686 = vunpack.c.l.b16 %v614
  %v687 = vunpack.c.l.b16 %v615
  %v688 = vunpack.c.l.b16 %v616
  %v689 = vunpack.c.l.b16 %v617
  %v690 = vunpack.c.l.b16 %v618
  %v691 = vpack.c.b16 %v656, %v655
  %v692 = vpack.c.b16 %v658, %v657
  %v693 = vpack.c.b16 %v660, %v659
  %v694 = vpack.c.b16 %v662, %v661
  %v695 = vpack.c.b16 %v664, %v663
  %v696 = vpack.c.b16 %v666, %v665
  %v697 = vpack.c.b16 %v668, %v667
  %v698 = vpack.c.b16 %v670, %v669
  %v699 = vpack.c.b16 %v672, %v671
  %v700 = vpack.c.b16 %v674, %v673
  %v701 = vpack.c.b16 %v676, %v675
  %v702 = vpack.c.b16 %v678, %v677
  %v703 = vpack.c.b16 %v680, %v679
  %v704 = vpack.c.b16 %v682, %v681
  %v705 = vpack.c.b16 %v684, %v683
  %v706 = vpack.c.b16 %v686, %v685
  %v707 = vpack.c.b16 %v688, %v687
  %v708 = vpack.c.b16 %v690, %v689
  %727 = vmatpush.bf16.msra.mxu0 %v698
  %728 = vmatpush.bf16.msra.mxu0 %v697
  %729 = vmatpush.bf16.msra.mxu0 %v696
  %730 = vmatpush.bf16.msra.mxu0 %v695
  %731 = vmatpush.bf16.msra.mxu0 %v694
  %732 = vmatpush.bf16.msra.mxu0 %v693
  %733 = vmatpush.bf16.msra.mxu0 %v692
  %734 = vmatpush.bf16.msra.mxu0 %v691
  %735 = vmatmul.bf16.gmra.mxu0 %v116
  %v736 = vpop.f32.mrf.mxu0
  %v737 = vadd.f32 0.0, %v736
  %v738 = vpop.f32.mrf.mxu0
  %v739 = vadd.f32 0.0, %v738
  %740 = vmatmul.bf16.gmra.mxu0 %v119
  %v741 = vpop.f32.mrf.mxu0
  %v742 = vadd.f32 0.0, %v741
  %v743 = vpop.f32.mrf.mxu0
  %v744 = vadd.f32 0.0, %v743
  %745 = vmatmul.bf16.gmra.mxu0 %v122
  %v746 = vpop.f32.mrf.mxu0
  %v747 = vadd.f32 0.0, %v746
  %v748 = vpop.f32.mrf.mxu0
  %v749 = vadd.f32 0.0, %v748
  %750 = vmatmul.bf16.gmra.mxu0 %v125
  %v751 = vpop.f32.mrf.mxu0
  %v752 = vadd.f32 0.0, %v751
  %v753 = vpop.f32.mrf.mxu0
  %v754 = vadd.f32 0.0, %v753
  %755 = vdwg.mxu0
  %756 = vmatpush.bf16.msra.mxu0 %v706
  %757 = vmatpush.bf16.msra.mxu0 %v705
  %758 = vmatpush.bf16.msra.mxu0 %v704
  %759 = vmatpush.bf16.msra.mxu0 %v703
  %760 = vmatpush.bf16.msra.mxu0 %v702
  %761 = vmatpush.bf16.msra.mxu0 %v701
  %762 = vmatpush.bf16.msra.mxu0 %v700
  %763 = vmatpush.bf16.msra.mxu0 %v699
  %764 = vmatmul.bf16.gmra.mxu0 %v117
  %v765 = vpop.f32.mrf.mxu0
  %v766 = vadd.f32 %v737, %v765
  %v767 = vpop.f32.mrf.mxu0
  %v768 = vadd.f32 %v739, %v767
  %769 = vmatmul.bf16.gmra.mxu0 %v120
  %v770 = vpop.f32.mrf.mxu0
  %v771 = vadd.f32 %v742, %v770
  %v772 = vpop.f32.mrf.mxu0
  %v773 = vadd.f32 %v744, %v772
  %774 = vmatmul.bf16.gmra.mxu0 %v123
  %v775 = vpop.f32.mrf.mxu0
  %v776 = vadd.f32 %v747, %v775
  %v777 = vpop.f32.mrf.mxu0
  %v778 = vadd.f32 %v749, %v777
  %779 = vmatmul.bf16.gmra.mxu0 %v126
  %v780 = vpop.f32.mrf.mxu0
  %v781 = vadd.f32 %v752, %v780
  %v782 = vpop.f32.mrf.mxu0
  %v783 = vadd.f32 %v754, %v782
  %784 = vdwg.mxu0
  %785 = vmatpush.bf16.msra.mxu0 0
  %786 = vmatpush.bf16.msra.mxu0 0
  %787 = vmatpush.bf16.msra.mxu0 0
  %788 = vmatpush.bf16.msra.mxu0 0
  %789 = vmatpush.bf16.msra.mxu0 0
  %790 = vmatpush.bf16.msra.mxu0 0
  %791 = vmatpush.bf16.msra.mxu0 %v708
  %792 = vmatpush.bf16.msra.mxu0 %v707
  %793 = vmatmul.bf16.gmra.mxu0 %v246
  %v794 = vpop.f32.mrf.mxu0
  %v795 = vadd.f32 %v766, %v794
  %v796 = vpop.f32.mrf.mxu0
  %v797 = vadd.f32 %v768, %v796
  %798 = vmatmul.bf16.gmra.mxu0 %v249
  %v799 = vpop.f32.mrf.mxu0
  %v800 = vadd.f32 %v771, %v799
  %v801 = vpop.f32.mrf.mxu0
  %v802 = vadd.f32 %v773, %v801
  %803 = vmatmul.bf16.gmra.mxu0 %v252
  %v804 = vpop.f32.mrf.mxu0
  %v805 = vadd.f32 %v776, %v804
  %v806 = vpop.f32.mrf.mxu0
  %v807 = vadd.f32 %v778, %v806
  %808 = vmatmul.bf16.gmra.mxu0 %v255
  %v809 = vpop.f32.mrf.mxu0
  %v810 = vadd.f32 %v781, %v809
  %v811 = vpop.f32.mrf.mxu0
  %v812 = vadd.f32 %v783, %v811
  %813 = vdwg.mxu0
  %v814 = vld [vmem:[%s3] sm:$0xf]
  %v815 = vld [vmem:[%s3 + $0x4] sm:$0xf]
  %v816 = vld [vmem:[%s3 + $0x8] sm:$0xf]
  %v817 = vld [vmem:[%s3 + $0xc] sm:$0xf]
  %v818 = vld [vmem:[%s3 + $0x10] sm:$0xf]
  %v819 = vld [vmem:[%s3 + $0x14] sm:$0xf]
  %v820 = vld [vmem:[%s3 + $0x18] sm:$0xf]
  %v821 = vld [vmem:[%s3 + $0x1c] sm:$0xf]
  %v822 = vld [vmem:[%s3 + $0x20] sm:$0xf]
  %v823 = vld [vmem:[%s3 + $0x24] sm:$0xf]
  %v824 = vld [vmem:[%s3 + $0x28] sm:$0xf]
  %v825 = vld [vmem:[%s3 + $0x2c] sm:$0xf]
  %v826 = vld [vmem:[%s3 + $0x30] sm:$0xf]
  %v827 = vld [vmem:[%s3 + $0x34] sm:$0xf]
  %v828 = vld [vmem:[%s3 + $0x38] sm:$0xf]
  %v829 = vld [vmem:[%s3 + $0x3c] sm:$0xf]
  %v830 = vld [vmem:[%s3 + $0x40] sm:$0xf]
  %v831 = vld [vmem:[%s3 + $0x44] sm:$0xf]
  %v832 = vld [vmem:[%s3 + $0x48] sm:$0xf]
  %v833 = vld [vmem:[%s3 + $0x4c] sm:$0xf]
  %v834 = vld [vmem:[%s3 + $0x50] sm:$0xf]
  %v835 = vld [vmem:[%s3 + $0x54] sm:$0xf]
  %v836 = vld [vmem:[%s3 + $0x58] sm:$0xf]
  %v837 = vld [vmem:[%s3 + $0x5c] sm:$0xf]
  %v838 = vld [vmem:[%s3 + $0x60] sm:$0xf]
  %v839 = vld [vmem:[%s3 + $0x64] sm:$0xf]
  %v840 = vld [vmem:[%s3 + $0x68] sm:$0xf]
  %v841 = vld [vmem:[%s3 + $0x6c] sm:$0xf]
  %v842 = vld [vmem:[%s3 + $0x70] sm:$0xf]
  %v843 = vld [vmem:[%s3 + $0x74] sm:$0xf]
  %v844 = vld [vmem:[%s3 + $0x78] sm:$0xf]
  %v845 = vld [vmem:[%s3 + $0x7c] sm:$0xf]
  %v846 = vld [vmem:[%s3 + $0x80] sm:$0xf]
  %v847 = vld [vmem:[%s3 + $0x84] sm:$0xf]
  %v848 = vld [vmem:[%s3 + $0x88] sm:$0xf]
  %v849 = vld [vmem:[%s3 + $0x8c] sm:$0xf]
  %v886 = vunpack.c.l.b16 %v814
  %v887 = vunpack.c.l.b16 %v815
  %v888 = vunpack.c.l.b16 %v816
  %v889 = vunpack.c.l.b16 %v817
  %v890 = vunpack.c.l.b16 %v818
  %v891 = vunpack.c.l.b16 %v819
  %v892 = vunpack.c.l.b16 %v820
  %v893 = vunpack.c.l.b16 %v821
  %v894 = vunpack.c.l.b16 %v822
  %v895 = vunpack.c.l.b16 %v823
  %v896 = vunpack.c.l.b16 %v824
  %v897 = vunpack.c.l.b16 %v825
  %v898 = vunpack.c.l.b16 %v826
  %v899 = vunpack.c.l.b16 %v827
  %v900 = vunpack.c.l.b16 %v828
  %v901 = vunpack.c.l.b16 %v829
  %v902 = vunpack.c.l.b16 %v830
  %v903 = vunpack.c.l.b16 %v831
  %v904 = vunpack.c.l.b16 %v832
  %v905 = vunpack.c.l.b16 %v833
  %v906 = vunpack.c.l.b16 %v834
  %v907 = vunpack.c.l.b16 %v835
  %v908 = vunpack.c.l.b16 %v836
  %v909 = vunpack.c.l.b16 %v837
  %v910 = vunpack.c.l.b16 %v838
  %v911 = vunpack.c.l.b16 %v839
  %v912 = vunpack.c.l.b16 %v840
  %v913 = vunpack.c.l.b16 %v841
  %v914 = vunpack.c.l.b16 %v842
  %v915 = vunpack.c.l.b16 %v843
  %v916 = vunpack.c.l.b16 %v844
  %v917 = vunpack.c.l.b16 %v845
  %v918 = vunpack.c.l.b16 %v846
  %v919 = vunpack.c.l.b16 %v847
  %v920 = vunpack.c.l.b16 %v848
  %v921 = vunpack.c.l.b16 %v849
  %v922 = vpack.c.b16 %v887, %v886
  %v923 = vpack.c.b16 %v889, %v888
  %v924 = vpack.c.b16 %v891, %v890
  %v925 = vpack.c.b16 %v893, %v892
  %v926 = vpack.c.b16 %v895, %v894
  %v927 = vpack.c.b16 %v897, %v896
  %v928 = vpack.c.b16 %v899, %v898
  %v929 = vpack.c.b16 %v901, %v900
  %v930 = vpack.c.b16 %v903, %v902
  %v931 = vpack.c.b16 %v905, %v904
  %v932 = vpack.c.b16 %v907, %v906
  %v933 = vpack.c.b16 %v909, %v908
  %v934 = vpack.c.b16 %v911, %v910
  %v935 = vpack.c.b16 %v913, %v912
  %v936 = vpack.c.b16 %v915, %v914
  %v937 = vpack.c.b16 %v917, %v916
  %v938 = vpack.c.b16 %v919, %v918
  %v939 = vpack.c.b16 %v921, %v920
  %958 = vmatpush.bf16.msra.mxu0 %v929
  %959 = vmatpush.bf16.msra.mxu0 %v928
  %960 = vmatpush.bf16.msra.mxu0 %v927
  %961 = vmatpush.bf16.msra.mxu0 %v926
  %962 = vmatpush.bf16.msra.mxu0 %v925
  %963 = vmatpush.bf16.msra.mxu0 %v924
  %964 = vmatpush.bf16.msra.mxu0 %v923
  %965 = vmatpush.bf16.msra.mxu0 %v922
  %966 = vmatmul.bf16.gmra.mxu0 %v116
  %v967 = vpop.f32.mrf.mxu0
  %v968 = vadd.f32 0.0, %v967
  %v969 = vpop.f32.mrf.mxu0
  %v970 = vadd.f32 0.0, %v969
  %971 = vmatmul.bf16.gmra.mxu0 %v119
  %v972 = vpop.f32.mrf.mxu0
  %v973 = vadd.f32 0.0, %v972
  %v974 = vpop.f32.mrf.mxu0
  %v975 = vadd.f32 0.0, %v974
  %976 = vmatmul.bf16.gmra.mxu0 %v122
  %v977 = vpop.f32.mrf.mxu0
  %v978 = vadd.f32 0.0, %v977
  %v979 = vpop.f32.mrf.mxu0
  %v980 = vadd.f32 0.0, %v979
  %981 = vmatmul.bf16.gmra.mxu0 %v125
  %v982 = vpop.f32.mrf.mxu0
  %v983 = vadd.f32 0.0, %v982
  %v984 = vpop.f32.mrf.mxu0
  %v985 = vadd.f32 0.0, %v984
  %986 = vdwg.mxu0
  %987 = vmatpush.bf16.msra.mxu0 %v937
  %988 = vmatpush.bf16.msra.mxu0 %v936
  %989 = vmatpush.bf16.msra.mxu0 %v935
  %990 = vmatpush.bf16.msra.mxu0 %v934
  %991 = vmatpush.bf16.msra.mxu0 %v933
  %992 = vmatpush.bf16.msra.mxu0 %v932
  %993 = vmatpush.bf16.msra.mxu0 %v931
  %994 = vmatpush.bf16.msra.mxu0 %v930
  %995 = vmatmul.bf16.gmra.mxu0 %v117
  %v996 = vpop.f32.mrf.mxu0
  %v997 = vadd.f32 %v968, %v996
  %v998 = vpop.f32.mrf.mxu0
  %v999 = vadd.f32 %v970, %v998
  %1000 = vmatmul.bf16.gmra.mxu0 %v120
  %v1001 = vpop.f32.mrf.mxu0
  %v1002 = vadd.f32 %v973, %v1001
  %v1003 = vpop.f32.mrf.mxu0
  %v1004 = vadd.f32 %v975, %v1003
  %1005 = vmatmul.bf16.gmra.mxu0 %v123
  %v1006 = vpop.f32.mrf.mxu0
  %v1007 = vadd.f32 %v978, %v1006
  %v1008 = vpop.f32.mrf.mxu0
  %v1009 = vadd.f32 %v980, %v1008
  %1010 = vmatmul.bf16.gmra.mxu0 %v126
  %v1011 = vpop.f32.mrf.mxu0
  %v1012 = vadd.f32 %v983, %v1011
  %v1013 = vpop.f32.mrf.mxu0
  %v1014 = vadd.f32 %v985, %v1013
  %1015 = vdwg.mxu0
  %1016 = vmatpush.bf16.msra.mxu0 0
  %1017 = vmatpush.bf16.msra.mxu0 0
  %1018 = vmatpush.bf16.msra.mxu0 0
  %1019 = vmatpush.bf16.msra.mxu0 0
  %1020 = vmatpush.bf16.msra.mxu0 0
  %1021 = vmatpush.bf16.msra.mxu0 0
  %1022 = vmatpush.bf16.msra.mxu0 %v939
  %1023 = vmatpush.bf16.msra.mxu0 %v938
  %1024 = vmatmul.bf16.gmra.mxu0 %v246
  %v1025 = vpop.f32.mrf.mxu0
  %v1026 = vadd.f32 %v997, %v1025
  %v1027 = vpop.f32.mrf.mxu0
  %v1028 = vadd.f32 %v999, %v1027
  %1029 = vmatmul.bf16.gmra.mxu0 %v249
  %v1030 = vpop.f32.mrf.mxu0
  %v1031 = vadd.f32 %v1002, %v1030
  %v1032 = vpop.f32.mrf.mxu0
  %v1033 = vadd.f32 %v1004, %v1032
  %1034 = vmatmul.bf16.gmra.mxu0 %v252
  %v1035 = vpop.f32.mrf.mxu0
  %v1036 = vadd.f32 %v1007, %v1035
  %v1037 = vpop.f32.mrf.mxu0
  %v1038 = vadd.f32 %v1009, %v1037
  %1039 = vmatmul.bf16.gmra.mxu0 %v255
  %v1040 = vpop.f32.mrf.mxu0
  %v1041 = vadd.f32 %v1012, %v1040
  %v1042 = vpop.f32.mrf.mxu0
  %v1043 = vadd.f32 %v1014, %v1042
  %1044 = vdwg.mxu0
  %v1045 = vmax.f32 %v795, %v1026
  %v1046 = vmax.f32 %v797, %v1028
  %v1047 = vmax.f32 %v800, %v1031
  %v1048 = vmax.f32 %v802, %v1033
  %v1049 = vmax.f32 %v805, %v1036
  %v1050 = vmax.f32 %v807, %v1038
  %v1051 = vmax.f32 %v810, %v1041
  %v1052 = vmax.f32 %v812, %v1043
  %v1053 = vmax.f32 %v575, %v1045
  %v1054 = vmax.f32 %v576, %v1046
  %v1055 = vmax.f32 %v577, %v1047
  %v1056 = vmax.f32 %v578, %v1048
  %v1057 = vmax.f32 %v579, %v1049
  %v1058 = vmax.f32 %v580, %v1050
  %v1059 = vmax.f32 %v581, %v1051
  %v1060 = vmax.f32 %v582, %v1052
  %v1061 = vld [vmem:[%s5] sm:$0xff]
  %v1062 = vld [vmem:[%s5 + $0x8] sm:$0xff]
  %v1063 = vld [vmem:[%s5 + $0x10] sm:$0xff]
  %v1064 = vld [vmem:[%s5 + $0x18] sm:$0xff]
  %v1065 = vld [vmem:[%s5 + $0x20] sm:$0xff]
  %v1066 = vld [vmem:[%s5 + $0x28] sm:$0xff]
  %v1067 = vld [vmem:[%s5 + $0x30] sm:$0xff]
  %v1068 = vld [vmem:[%s5 + $0x38] sm:$0xff]
  %1070 = vset.pattern.permute.xlu0 0
  %1071 = vperm.xlu0 %1070, %v1061
  %v1072 = vpop.permute.xlu0 %1071
  %1075 = vset.pattern.permute.xlu0 0
  %1076 = vperm.xlu0 %1075, %v1062
  %v1077 = vpop.permute.xlu0 %1076
  %1080 = vset.pattern.permute.xlu0 0
  %1081 = vperm.xlu0 %1080, %v1063
  %v1082 = vpop.permute.xlu0 %1081
  %1085 = vset.pattern.permute.xlu0 0
  %1086 = vperm.xlu0 %1085, %v1064
  %v1087 = vpop.permute.xlu0 %1086
  %1090 = vset.pattern.permute.xlu0 0
  %1091 = vperm.xlu0 %1090, %v1065
  %v1092 = vpop.permute.xlu0 %1091
  %1095 = vset.pattern.permute.xlu0 0
  %1096 = vperm.xlu0 %1095, %v1066
  %v1097 = vpop.permute.xlu0 %1096
  %1100 = vset.pattern.permute.xlu0 0
  %1101 = vperm.xlu0 %1100, %v1067
  %v1102 = vpop.permute.xlu0 %1101
  %1105 = vset.pattern.permute.xlu0 0
  %1106 = vperm.xlu0 %1105, %v1068
  %v1107 = vpop.permute.xlu0 %1106
  %v1109 = vadd.f32 %v1053, %v1072
  %v1110 = vadd.f32 %v1054, %v1077
  %v1111 = vadd.f32 %v1055, %v1082
  %v1112 = vadd.f32 %v1056, %v1087
  %v1113 = vadd.f32 %v1057, %v1092
  %v1114 = vadd.f32 %v1058, %v1097
  %v1115 = vadd.f32 %v1059, %v1102
  %v1116 = vadd.f32 %v1060, %v1107
  %v1117 = vmax.f32 %v1109, 0.0
  %v1118 = vmax.f32 %v1110, 0.0
  %v1119 = vmax.f32 %v1111, 0.0
  %v1120 = vmax.f32 %v1112, 0.0
  %v1121 = vmax.f32 %v1113, 0.0
  %v1122 = vmax.f32 %v1114, 0.0
  %v1123 = vmax.f32 %v1115, 0.0
  %v1124 = vmax.f32 %v1116, 0.0
  %v1125 = vpack.c.bf16 %v1117, %v1117
  %v1126 = vpack.c.bf16 %v1118, %v1118
  %v1127 = vpack.c.bf16 %v1119, %v1119
  %v1128 = vpack.c.bf16 %v1120, %v1120
  %v1129 = vpack.c.bf16 %v1121, %v1121
  %v1130 = vpack.c.bf16 %v1122, %v1122
  %v1131 = vpack.c.bf16 %v1123, %v1123
  %v1132 = vpack.c.bf16 %v1124, %v1124
  %1133 = vst [vmem:[%s6] sm:$0xf] %v1125
  %1134 = vst [vmem:[%s6 + $0x4] sm:$0xf] %v1126
  %1135 = vst [vmem:[%s6 + $0x8] sm:$0xf] %v1127
  %1136 = vst [vmem:[%s6 + $0xc] sm:$0xf] %v1128
  %1137 = vst [vmem:[%s6 + $0x10] sm:$0xf] %v1129
  %1138 = vst [vmem:[%s6 + $0x14] sm:$0xf] %v1130
  %1139 = vst [vmem:[%s6 + $0x18] sm:$0xf] %v1131
  %1140 = vst [vmem:[%s6 + $0x1c] sm:$0xf] %v1132
  // Predicated region
  $region26: #{simple_cnn_forward.5} parent=0 // pred_check
    _
  $region27: #{simple_cnn_forward.5} parent=0 // pred_check_branch
    %1142 = sbr.rel (0) target = $region29
  $region28: #{simple_cnn_forward.5} parent=0 // pred_region
    _
  $region29: #{simple_cnn_forward.5} parent=0 // pred_fallthru
    _
  // Predicated region
  $region30: #{simple_cnn_forward.5} parent=0 // pred_check
    _
  $region31: #{simple_cnn_forward.5} parent=0 // pred_check_branch
    %1144 = sbr.rel (0) target = $region33
  $region32: #{simple_cnn_forward.5} parent=0 // pred_region
    _
  $region33: #{simple_cnn_forward.5} parent=0 // pred_fallthru
    _

// kernel: simple_cnn_forward.6
$region0: #{simple_cnn_forward.6}
  #allocation0 [shape = 'u32[]', space=smem, size = 0x4, offset = 0x4, fixed_abs, tag = 'smem constant byte address 0x4 - core index']
  #allocation1 [shape = 'u32[72,128]{1,0:T(1,128)}', space=vmem, size = 0x9000, scoped, tag = 'internal scratch']
  %s0 = inlined_call_operand.vmem [shape: bf16[576,32], index: 0, kind: input, shape index: {}]
  %s1 = inlined_call_operand.vmem [shape: bf16[576,32], index: 1, kind: input, shape index: {}]
  %s2 = inlined_call_operand.vmem [shape: bf16[576,32], index: 2, kind: input, shape index: {}]
  %s3 = inlined_call_operand.vmem [shape: bf16[576,32], index: 3, kind: input, shape index: {}]
  %s4 = inlined_call_operand.vmem [shape: bf16[64,576], index: 4, kind: input, shape index: {}]
  %s5 = inlined_call_operand.vmem [shape: f32[64,1], index: 5, kind: input, shape index: {}]
  %s6 = inlined_call_operand.vmem [shape: bf16[64,32], index: 6, kind: output, shape index: {}]
  %s7 = sld [smem:[#allocation0]]
  $region34: #{simple_cnn_forward.6} parent=0
    _
  %s9 = ssub.s32 1, %s7
  %s10 = scalar_select 0, %s9, %s7
  // Predicated region
  $region2: #{simple_cnn_forward.6} parent=0 // pred_check
    _
  $region3: #{simple_cnn_forward.6} parent=0 // pred_check_branch
    %12 = sbr.rel (0) target = $region5
  $region4: #{simple_cnn_forward.6} parent=0 // pred_region
    _
  $region5: #{simple_cnn_forward.6} parent=0 // pred_fallthru
    _
  // Predicated region
  $region6: #{simple_cnn_forward.6} parent=0 // pred_check
    _
  $region7: #{simple_cnn_forward.6} parent=0 // pred_check_branch
    %14 = sbr.rel (0) target = $region9
  $region8: #{simple_cnn_forward.6} parent=0 // pred_region
    _
  $region9: #{simple_cnn_forward.6} parent=0 // pred_fallthru
    _
  // Predicated region
  $region10: #{simple_cnn_forward.6} parent=0 // pred_check
    _
  $region11: #{simple_cnn_forward.6} parent=0 // pred_check_branch
    %16 = sbr.rel (0) target = $region13
  $region12: #{simple_cnn_forward.6} parent=0 // pred_region
    _
  $region13: #{simple_cnn_forward.6} parent=0 // pred_fallthru
    _
  // Predicated region
  $region14: #{simple_cnn_forward.6} parent=0 // pred_check
    _
  $region15: #{simple_cnn_forward.6} parent=0 // pred_check_branch
    %18 = sbr.rel (0) target = $region17
  $region16: #{simple_cnn_forward.6} parent=0 // pred_region
    _
  $region17: #{simple_cnn_forward.6} parent=0 // pred_fallthru
    _
  // Predicated region
  $region18: #{simple_cnn_forward.6} parent=0 // pred_check
    _
  $region19: #{simple_cnn_forward.6} parent=0 // pred_check_branch
    %20 = sbr.rel (0) target = $region21
  $region20: #{simple_cnn_forward.6} parent=0 // pred_region
    _
  $region21: #{simple_cnn_forward.6} parent=0 // pred_fallthru
    _
  // Predicated region
  $region22: #{simple_cnn_forward.6} parent=0 // pred_check
    _
  $region23: #{simple_cnn_forward.6} parent=0 // pred_check_branch
    %22 = sbr.rel (0) target = $region25
  $region24: #{simple_cnn_forward.6} parent=0 // pred_region
    _
  $region25: #{simple_cnn_forward.6} parent=0 // pred_fallthru
    _
  %v24 = vld [vmem:[%s4] sm:$0xff]
  %v25 = vld [vmem:[%s4 + $0x8] sm:$0xff]
  %v26 = vld [vmem:[%s4 + $0x10] sm:$0xf]
  %v27 = vld [vmem:[%s4 + $0x14] sm:$0xff]
  %v28 = vld [vmem:[%s4 + $0x1c] sm:$0xff]
  %v29 = vld [vmem:[%s4 + $0x24] sm:$0xf]
  %v30 = vld [vmem:[%s4 + $0x28] sm:$0xff]
  %v31 = vld [vmem:[%s4 + $0x30] sm:$0xff]
  %v32 = vld [vmem:[%s4 + $0x38] sm:$0xf]
  %v33 = vld [vmem:[%s4 + $0x3c] sm:$0xff]
  %v34 = vld [vmem:[%s4 + $0x44] sm:$0xff]
  %v35 = vld [vmem:[%s4 + $0x4c] sm:$0xf]
  %v36 = vld [vmem:[%s4 + $0x50] sm:$0xff]
  %v37 = vld [vmem:[%s4 + $0x58] sm:$0xff]
  %v38 = vld [vmem:[%s4 + $0x60] sm:$0xf]
  %v39 = vld [vmem:[%s4 + $0x64] sm:$0xff]
  %v40 = vld [vmem:[%s4 + $0x6c] sm:$0xff]
  %v41 = vld [vmem:[%s4 + $0x74] sm:$0xf]
  %v42 = vld [vmem:[%s4 + $0x78] sm:$0xff]
  %v43 = vld [vmem:[%s4 + $0x80] sm:$0xff]
  %v44 = vld [vmem:[%s4 + $0x88] sm:$0xf]
  %v45 = vld [vmem:[%s4 + $0x8c] sm:$0xff]
  %v46 = vld [vmem:[%s4 + $0x94] sm:$0xff]
  %v47 = vld [vmem:[%s4 + $0x9c] sm:$0xf]
  %v48 = vld [vmem:[%s0] sm:$0xf]
  %v49 = vld [vmem:[%s0 + $0x4] sm:$0xf]
  %v50 = vld [vmem:[%s0 + $0x8] sm:$0xf]
  %v51 = vld [vmem:[%s0 + $0xc] sm:$0xf]
  %v52 = vld [vmem:[%s0 + $0x10] sm:$0xf]
  %v53 = vld [vmem:[%s0 + $0x14] sm:$0xf]
  %v54 = vld [vmem:[%s0 + $0x18] sm:$0xf]
  %v55 = vld [vmem:[%s0 + $0x1c] sm:$0xf]
  %v56 = vld [vmem:[%s0 + $0x20] sm:$0xf]
  %v57 = vld [vmem:[%s0 + $0x24] sm:$0xf]
  %v58 = vld [vmem:[%s0 + $0x28] sm:$0xf]
  %v59 = vld [vmem:[%s0 + $0x2c] sm:$0xf]
  %v60 = vld [vmem:[%s0 + $0x30] sm:$0xf]
  %v61 = vld [vmem:[%s0 + $0x34] sm:$0xf]
  %v62 = vld [vmem:[%s0 + $0x38] sm:$0xf]
  %v63 = vld [vmem:[%s0 + $0x3c] sm:$0xf]
  %v64 = vld [vmem:[%s0 + $0x40] sm:$0xf]
  %v65 = vld [vmem:[%s0 + $0x44] sm:$0xf]
  %v66 = vld [vmem:[%s0 + $0x48] sm:$0xf]
  %v67 = vld [vmem:[%s0 + $0x4c] sm:$0xf]
  %v68 = vld [vmem:[%s0 + $0x50] sm:$0xf]
  %v69 = vld [vmem:[%s0 + $0x54] sm:$0xf]
  %v70 = vld [vmem:[%s0 + $0x58] sm:$0xf]
  %v71 = vld [vmem:[%s0 + $0x5c] sm:$0xf]
  %v72 = vld [vmem:[%s0 + $0x60] sm:$0xf]
  %v73 = vld [vmem:[%s0 + $0x64] sm:$0xf]
  %v74 = vld [vmem:[%s0 + $0x68] sm:$0xf]
  %v75 = vld [vmem:[%s0 + $0x6c] sm:$0xf]
  %v76 = vld [vmem:[%s0 + $0x70] sm:$0xf]
  %v77 = vld [vmem:[%s0 + $0x74] sm:$0xf]
  %v78 = vld [vmem:[%s0 + $0x78] sm:$0xf]
  %v79 = vld [vmem:[%s0 + $0x7c] sm:$0xf]
  %v80 = vld [vmem:[%s0 + $0x80] sm:$0xf]
  %v81 = vld [vmem:[%s0 + $0x84] sm:$0xf]
  %v82 = vld [vmem:[%s0 + $0x88] sm:$0xf]
  %v83 = vld [vmem:[%s0 + $0x8c] sm:$0xf]
  %v84 = vld [vmem:[%s0 + $0x90] sm:$0xf]
  %v85 = vld [vmem:[%s0 + $0x94] sm:$0xf]
  %v86 = vld [vmem:[%s0 + $0x98] sm:$0xf]
  %v87 = vld [vmem:[%s0 + $0x9c] sm:$0xf]
  %v88 = vld [vmem:[%s0 + $0xa0] sm:$0xf]
  %v89 = vld [vmem:[%s0 + $0xa4] sm:$0xf]
  %v90 = vld [vmem:[%s0 + $0xa8] sm:$0xf]
  %v91 = vld [vmem:[%s0 + $0xac] sm:$0xf]
  %v92 = vld [vmem:[%s0 + $0xb0] sm:$0xf]
  %v93 = vld [vmem:[%s0 + $0xb4] sm:$0xf]
  %v94 = vld [vmem:[%s0 + $0xb8] sm:$0xf]
  %v95 = vld [vmem:[%s0 + $0xbc] sm:$0xf]
  %v96 = vld [vmem:[%s0 + $0xc0] sm:$0xf]
  %v97 = vld [vmem:[%s0 + $0xc4] sm:$0xf]
  %v98 = vld [vmem:[%s0 + $0xc8] sm:$0xf]
  %v99 = vld [vmem:[%s0 + $0xcc] sm:$0xf]
  %v100 = vld [vmem:[%s0 + $0xd0] sm:$0xf]
  %v101 = vld [vmem:[%s0 + $0xd4] sm:$0xf]
  %v102 = vld [vmem:[%s0 + $0xd8] sm:$0xf]
  %v103 = vld [vmem:[%s0 + $0xdc] sm:$0xf]
  %v104 = vld [vmem:[%s0 + $0xe0] sm:$0xf]
  %v105 = vld [vmem:[%s0 + $0xe4] sm:$0xf]
  %v106 = vld [vmem:[%s0 + $0xe8] sm:$0xf]
  %v107 = vld [vmem:[%s0 + $0xec] sm:$0xf]
  %v108 = vld [vmem:[%s0 + $0xf0] sm:$0xf]
  %v109 = vld [vmem:[%s0 + $0xf4] sm:$0xf]
  %v110 = vld [vmem:[%s0 + $0xf8] sm:$0xf]
  %v111 = vld [vmem:[%s0 + $0xfc] sm:$0xf]
  %v112 = vld [vmem:[%s0 + $0x100] sm:$0xf]
  %v113 = vld [vmem:[%s0 + $0x104] sm:$0xf]
  %v114 = vld [vmem:[%s0 + $0x108] sm:$0xf]
  %v115 = vld [vmem:[%s0 + $0x10c] sm:$0xf]
  %v116 = vld [vmem:[%s0 + $0x110] sm:$0xf]
  %v117 = vld [vmem:[%s0 + $0x114] sm:$0xf]
  %v118 = vld [vmem:[%s0 + $0x118] sm:$0xf]
  %v119 = vld [vmem:[%s0 + $0x11c] sm:$0xf]
  %v144 = vunpack.c.l.b16 %v24
  %v145 = vunpack.c.h.b16 %v24
  %v146 = vunpack.c.l.b16 %v25
  %v147 = vunpack.c.h.b16 %v25
  %v148 = vunpack.c.l.b16 %v26
  %v149 = vunpack.c.l.b16 %v27
  %v150 = vunpack.c.h.b16 %v27
  %v151 = vunpack.c.l.b16 %v28
  %v152 = vunpack.c.h.b16 %v28
  %v153 = vunpack.c.l.b16 %v29
  %v154 = vunpack.c.l.b16 %v30
  %v155 = vunpack.c.h.b16 %v30
  %v156 = vunpack.c.l.b16 %v31
  %v157 = vunpack.c.h.b16 %v31
  %v158 = vunpack.c.l.b16 %v32
  %v159 = vunpack.c.l.b16 %v33
  %v160 = vunpack.c.h.b16 %v33
  %v161 = vunpack.c.l.b16 %v34
  %v162 = vunpack.c.h.b16 %v34
  %v163 = vunpack.c.l.b16 %v35
  %v164 = vunpack.c.l.b16 %v36
  %v165 = vunpack.c.h.b16 %v36
  %v166 = vunpack.c.l.b16 %v37
  %v167 = vunpack.c.h.b16 %v37
  %v168 = vunpack.c.l.b16 %v38
  %v169 = vunpack.c.l.b16 %v39
  %v170 = vunpack.c.h.b16 %v39
  %v171 = vunpack.c.l.b16 %v40
  %v172 = vunpack.c.h.b16 %v40
  %v173 = vunpack.c.l.b16 %v41
  %v174 = vunpack.c.l.b16 %v42
  %v175 = vunpack.c.h.b16 %v42
  %v176 = vunpack.c.l.b16 %v43
  %v177 = vunpack.c.h.b16 %v43
  %v178 = vunpack.c.l.b16 %v44
  %v179 = vunpack.c.l.b16 %v45
  %v180 = vunpack.c.h.b16 %v45
  %v181 = vunpack.c.l.b16 %v46
  %v182 = vunpack.c.h.b16 %v46
  %v183 = vunpack.c.l.b16 %v47
  %v184 = vpack.c.b16 %v149, %v144
  %v185 = vpack.c.b16 %v150, %v145
  %v186 = vpack.c.b16 %v151, %v146
  %v187 = vpack.c.b16 %v152, %v147
  %v188 = vpack.c.b16 %v153, %v148
  %v189 = vpack.c.b16 %v159, %v154
  %v190 = vpack.c.b16 %v160, %v155
  %v191 = vpack.c.b16 %v161, %v156
  %v192 = vpack.c.b16 %v162, %v157
  %v193 = vpack.c.b16 %v163, %v158
  %v194 = vpack.c.b16 %v169, %v164
  %v195 = vpack.c.b16 %v170, %v165
  %v196 = vpack.c.b16 %v171, %v166
  %v197 = vpack.c.b16 %v172, %v167
  %v198 = vpack.c.b16 %v173, %v168
  %v199 = vpack.c.b16 %v179, %v174
  %v200 = vpack.c.b16 %v180, %v175
  %v201 = vpack.c.b16 %v181, %v176
  %v202 = vpack.c.b16 %v182, %v177
  %v203 = vpack.c.b16 %v183, %v178
  %v292 = vunpack.c.l.b16 %v48
  %v293 = vunpack.c.l.b16 %v49
  %v294 = vunpack.c.l.b16 %v50
  %v295 = vunpack.c.l.b16 %v51
  %v296 = vunpack.c.l.b16 %v52
  %v297 = vunpack.c.l.b16 %v53
  %v298 = vunpack.c.l.b16 %v54
  %v299 = vunpack.c.l.b16 %v55
  %v300 = vunpack.c.l.b16 %v56
  %v301 = vunpack.c.l.b16 %v57
  %v302 = vunpack.c.l.b16 %v58
  %v303 = vunpack.c.l.b16 %v59
  %v304 = vunpack.c.l.b16 %v60
  %v305 = vunpack.c.l.b16 %v61
  %v306 = vunpack.c.l.b16 %v62
  %v307 = vunpack.c.l.b16 %v63
  %v308 = vunpack.c.l.b16 %v64
  %v309 = vunpack.c.l.b16 %v65
  %v310 = vunpack.c.l.b16 %v66
  %v311 = vunpack.c.l.b16 %v67
  %v312 = vunpack.c.l.b16 %v68
  %v313 = vunpack.c.l.b16 %v69
  %v314 = vunpack.c.l.b16 %v70
  %v315 = vunpack.c.l.b16 %v71
  %v316 = vunpack.c.l.b16 %v72
  %v317 = vunpack.c.l.b16 %v73
  %v318 = vunpack.c.l.b16 %v74
  %v319 = vunpack.c.l.b16 %v75
  %v320 = vunpack.c.l.b16 %v76
  %v321 = vunpack.c.l.b16 %v77
  %v322 = vunpack.c.l.b16 %v78
  %v323 = vunpack.c.l.b16 %v79
  %v324 = vunpack.c.l.b16 %v80
  %v325 = vunpack.c.l.b16 %v81
  %v326 = vunpack.c.l.b16 %v82
  %v327 = vunpack.c.l.b16 %v83
  %v328 = vunpack.c.l.b16 %v84
  %v329 = vunpack.c.l.b16 %v85
  %v330 = vunpack.c.l.b16 %v86
  %v331 = vunpack.c.l.b16 %v87
  %v332 = vunpack.c.l.b16 %v88
  %v333 = vunpack.c.l.b16 %v89
  %v334 = vunpack.c.l.b16 %v90
  %v335 = vunpack.c.l.b16 %v91
  %v336 = vunpack.c.l.b16 %v92
  %v337 = vunpack.c.l.b16 %v93
  %v338 = vunpack.c.l.b16 %v94
  %v339 = vunpack.c.l.b16 %v95
  %v340 = vunpack.c.l.b16 %v96
  %v341 = vunpack.c.l.b16 %v97
  %v342 = vunpack.c.l.b16 %v98
  %v343 = vunpack.c.l.b16 %v99
  %v344 = vunpack.c.l.b16 %v100
  %v345 = vunpack.c.l.b16 %v101
  %v346 = vunpack.c.l.b16 %v102
  %v347 = vunpack.c.l.b16 %v103
  %v348 = vunpack.c.l.b16 %v104
  %v349 = vunpack.c.l.b16 %v105
  %v350 = vunpack.c.l.b16 %v106
  %v351 = vunpack.c.l.b16 %v107
  %v352 = vunpack.c.l.b16 %v108
  %v353 = vunpack.c.l.b16 %v109
  %v354 = vunpack.c.l.b16 %v110
  %v355 = vunpack.c.l.b16 %v111
  %v356 = vunpack.c.l.b16 %v112
  %v357 = vunpack.c.l.b16 %v113
  %v358 = vunpack.c.l.b16 %v114
  %v359 = vunpack.c.l.b16 %v115
  %v360 = vunpack.c.l.b16 %v116
  %v361 = vunpack.c.l.b16 %v117
  %v362 = vunpack.c.l.b16 %v118
  %v363 = vunpack.c.l.b16 %v119
  %v364 = vpack.c.b16 %v293, %v292
  %v365 = vpack.c.b16 %v295, %v294
  %v366 = vpack.c.b16 %v297, %v296
  %v367 = vpack.c.b16 %v299, %v298
  %v368 = vpack.c.b16 %v301, %v300
  %v369 = vpack.c.b16 %v303, %v302
  %v370 = vpack.c.b16 %v305, %v304
  %v371 = vpack.c.b16 %v307, %v306
  %v372 = vpack.c.b16 %v309, %v308
  %v373 = vpack.c.b16 %v311, %v310
  %v374 = vpack.c.b16 %v313, %v312
  %v375 = vpack.c.b16 %v315, %v314
  %v376 = vpack.c.b16 %v317, %v316
  %v377 = vpack.c.b16 %v319, %v318
  %v378 = vpack.c.b16 %v321, %v320
  %v379 = vpack.c.b16 %v323, %v322
  %v380 = vpack.c.b16 %v325, %v324
  %v381 = vpack.c.b16 %v327, %v326
  %v382 = vpack.c.b16 %v329, %v328
  %v383 = vpack.c.b16 %v331, %v330
  %v384 = vpack.c.b16 %v333, %v332
  %v385 = vpack.c.b16 %v335, %v334
  %v386 = vpack.c.b16 %v337, %v336
  %v387 = vpack.c.b16 %v339, %v338
  %v388 = vpack.c.b16 %v341, %v340
  %v389 = vpack.c.b16 %v343, %v342
  %v390 = vpack.c.b16 %v345, %v344
  %v391 = vpack.c.b16 %v347, %v346
  %v392 = vpack.c.b16 %v349, %v348
  %v393 = vpack.c.b16 %v351, %v350
  %v394 = vpack.c.b16 %v353, %v352
  %v395 = vpack.c.b16 %v355, %v354
  %v396 = vpack.c.b16 %v357, %v356
  %v397 = vpack.c.b16 %v359, %v358
  %v398 = vpack.c.b16 %v361, %v360
  %v399 = vpack.c.b16 %v363, %v362
  %vm436 = vcmask 523264
  %v438 = vsel %vm436, %v188, 0
  %v441 = vsel %vm436, %v193, 0
  %v444 = vsel %vm436, %v198, 0
  %v447 = vsel %vm436, %v203, 0
  %449 = vmatpush.bf16.msra.mxu0 %v371
  %450 = vmatpush.bf16.msra.mxu0 %v370
  %451 = vmatpush.bf16.msra.mxu0 %v369
  %452 = vmatpush.bf16.msra.mxu0 %v368
  %453 = vmatpush.bf16.msra.mxu0 %v367
  %454 = vmatpush.bf16.msra.mxu0 %v366
  %455 = vmatpush.bf16.msra.mxu0 %v365
  %456 = vmatpush.bf16.msra.mxu0 %v364
  %457 = vmatmul.bf16.gmra.mxu0 %v184
  %v458 = vpop.f32.mrf.mxu0
  %v459 = vadd.f32 0.0, %v458
  %v460 = vpop.f32.mrf.mxu0
  %v461 = vadd.f32 0.0, %v460
  %462 = vmatmul.bf16.gmra.mxu0 %v189
  %v463 = vpop.f32.mrf.mxu0
  %v464 = vadd.f32 0.0, %v463
  %v465 = vpop.f32.mrf.mxu0
  %v466 = vadd.f32 0.0, %v465
  %467 = vmatmul.bf16.gmra.mxu0 %v194
  %v468 = vpop.f32.mrf.mxu0
  %v469 = vadd.f32 0.0, %v468
  %v470 = vpop.f32.mrf.mxu0
  %v471 = vadd.f32 0.0, %v470
  %472 = vmatmul.bf16.gmra.mxu0 %v199
  %v473 = vpop.f32.mrf.mxu0
  %v474 = vadd.f32 0.0, %v473
  %v475 = vpop.f32.mrf.mxu0
  %v476 = vadd.f32 0.0, %v475
  %477 = vdwg.mxu0
  %478 = vmatpush.bf16.msra.mxu0 %v379
  %479 = vmatpush.bf16.msra.mxu0 %v378
  %480 = vmatpush.bf16.msra.mxu0 %v377
  %481 = vmatpush.bf16.msra.mxu0 %v376
  %482 = vmatpush.bf16.msra.mxu0 %v375
  %483 = vmatpush.bf16.msra.mxu0 %v374
  %484 = vmatpush.bf16.msra.mxu0 %v373
  %485 = vmatpush.bf16.msra.mxu0 %v372
  %486 = vmatmul.bf16.gmra.mxu0 %v185
  %v487 = vpop.f32.mrf.mxu0
  %v488 = vadd.f32 %v459, %v487
  %v489 = vpop.f32.mrf.mxu0
  %v490 = vadd.f32 %v461, %v489
  %491 = vmatmul.bf16.gmra.mxu0 %v190
  %v492 = vpop.f32.mrf.mxu0
  %v493 = vadd.f32 %v464, %v492
  %v494 = vpop.f32.mrf.mxu0
  %v495 = vadd.f32 %v466, %v494
  %496 = vmatmul.bf16.gmra.mxu0 %v195
  %v497 = vpop.f32.mrf.mxu0
  %v498 = vadd.f32 %v469, %v497
  %v499 = vpop.f32.mrf.mxu0
  %v500 = vadd.f32 %v471, %v499
  %501 = vmatmul.bf16.gmra.mxu0 %v200
  %v502 = vpop.f32.mrf.mxu0
  %v503 = vadd.f32 %v474, %v502
  %v504 = vpop.f32.mrf.mxu0
  %v505 = vadd.f32 %v476, %v504
  %506 = vdwg.mxu0
  %507 = vmatpush.bf16.msra.mxu0 %v387
  %508 = vmatpush.bf16.msra.mxu0 %v386
  %509 = vmatpush.bf16.msra.mxu0 %v385
  %510 = vmatpush.bf16.msra.mxu0 %v384
  %511 = vmatpush.bf16.msra.mxu0 %v383
  %512 = vmatpush.bf16.msra.mxu0 %v382
  %513 = vmatpush.bf16.msra.mxu0 %v381
  %514 = vmatpush.bf16.msra.mxu0 %v380
  %515 = vmatmul.bf16.gmra.mxu0 %v186
  %v516 = vpop.f32.mrf.mxu0
  %v517 = vadd.f32 %v488, %v516
  %v518 = vpop.f32.mrf.mxu0
  %v519 = vadd.f32 %v490, %v518
  %520 = vmatmul.bf16.gmra.mxu0 %v191
  %v521 = vpop.f32.mrf.mxu0
  %v522 = vadd.f32 %v493, %v521
  %v523 = vpop.f32.mrf.mxu0
  %v524 = vadd.f32 %v495, %v523
  %525 = vmatmul.bf16.gmra.mxu0 %v196
  %v526 = vpop.f32.mrf.mxu0
  %v527 = vadd.f32 %v498, %v526
  %v528 = vpop.f32.mrf.mxu0
  %v529 = vadd.f32 %v500, %v528
  %530 = vmatmul.bf16.gmra.mxu0 %v201
  %v531 = vpop.f32.mrf.mxu0
  %v532 = vadd.f32 %v503, %v531
  %v533 = vpop.f32.mrf.mxu0
  %v534 = vadd.f32 %v505, %v533
  %535 = vdwg.mxu0
  %536 = vmatpush.bf16.msra.mxu0 %v395
  %537 = vmatpush.bf16.msra.mxu0 %v394
  %538 = vmatpush.bf16.msra.mxu0 %v393
  %539 = vmatpush.bf16.msra.mxu0 %v392
  %540 = vmatpush.bf16.msra.mxu0 %v391
  %541 = vmatpush.bf16.msra.mxu0 %v390
  %542 = vmatpush.bf16.msra.mxu0 %v389
  %543 = vmatpush.bf16.msra.mxu0 %v388
  %544 = vmatmul.bf16.gmra.mxu0 %v187
  %v545 = vpop.f32.mrf.mxu0
  %v546 = vadd.f32 %v517, %v545
  %v547 = vpop.f32.mrf.mxu0
  %v548 = vadd.f32 %v519, %v547
  %549 = vmatmul.bf16.gmra.mxu0 %v192
  %v550 = vpop.f32.mrf.mxu0
  %v551 = vadd.f32 %v522, %v550
  %v552 = vpop.f32.mrf.mxu0
  %v553 = vadd.f32 %v524, %v552
  %554 = vmatmul.bf16.gmra.mxu0 %v197
  %v555 = vpop.f32.mrf.mxu0
  %v556 = vadd.f32 %v527, %v555
  %v557 = vpop.f32.mrf.mxu0
  %v558 = vadd.f32 %v529, %v557
  %559 = vmatmul.bf16.gmra.mxu0 %v202
  %v560 = vpop.f32.mrf.mxu0
  %v561 = vadd.f32 %v532, %v560
  %v562 = vpop.f32.mrf.mxu0
  %v563 = vadd.f32 %v534, %v562
  %564 = vdwg.mxu0
  %565 = vmatpush.bf16.msra.mxu0 0
  %566 = vmatpush.bf16.msra.mxu0 0
  %567 = vmatpush.bf16.msra.mxu0 0
  %568 = vmatpush.bf16.msra.mxu0 0
  %569 = vmatpush.bf16.msra.mxu0 %v399
  %570 = vmatpush.bf16.msra.mxu0 %v398
  %571 = vmatpush.bf16.msra.mxu0 %v397
  %572 = vmatpush.bf16.msra.mxu0 %v396
  %573 = vmatmul.bf16.gmra.mxu0 %v438
  %v574 = vpop.f32.mrf.mxu0
  %v575 = vadd.f32 %v546, %v574
  %v576 = vpop.f32.mrf.mxu0
  %v577 = vadd.f32 %v548, %v576
  %578 = vmatmul.bf16.gmra.mxu0 %v441
  %v579 = vpop.f32.mrf.mxu0
  %v580 = vadd.f32 %v551, %v579
  %v581 = vpop.f32.mrf.mxu0
  %v582 = vadd.f32 %v553, %v581
  %583 = vmatmul.bf16.gmra.mxu0 %v444
  %v584 = vpop.f32.mrf.mxu0
  %v585 = vadd.f32 %v556, %v584
  %v586 = vpop.f32.mrf.mxu0
  %v587 = vadd.f32 %v558, %v586
  %588 = vmatmul.bf16.gmra.mxu0 %v447
  %v589 = vpop.f32.mrf.mxu0
  %v590 = vadd.f32 %v561, %v589
  %v591 = vpop.f32.mrf.mxu0
  %v592 = vadd.f32 %v563, %v591
  %593 = vdwg.mxu0
  %v594 = vld [vmem:[%s1] sm:$0xf]
  %v595 = vld [vmem:[%s1 + $0x4] sm:$0xf]
  %v596 = vld [vmem:[%s1 + $0x8] sm:$0xf]
  %v597 = vld [vmem:[%s1 + $0xc] sm:$0xf]
  %v598 = vld [vmem:[%s1 + $0x10] sm:$0xf]
  %v599 = vld [vmem:[%s1 + $0x14] sm:$0xf]
  %v600 = vld [vmem:[%s1 + $0x18] sm:$0xf]
  %v601 = vld [vmem:[%s1 + $0x1c] sm:$0xf]
  %v602 = vld [vmem:[%s1 + $0x20] sm:$0xf]
  %v603 = vld [vmem:[%s1 + $0x24] sm:$0xf]
  %v604 = vld [vmem:[%s1 + $0x28] sm:$0xf]
  %v605 = vld [vmem:[%s1 + $0x2c] sm:$0xf]
  %v606 = vld [vmem:[%s1 + $0x30] sm:$0xf]
  %v607 = vld [vmem:[%s1 + $0x34] sm:$0xf]
  %v608 = vld [vmem:[%s1 + $0x38] sm:$0xf]
  %v609 = vld [vmem:[%s1 + $0x3c] sm:$0xf]
  %v610 = vld [vmem:[%s1 + $0x40] sm:$0xf]
  %v611 = vld [vmem:[%s1 + $0x44] sm:$0xf]
  %v612 = vld [vmem:[%s1 + $0x48] sm:$0xf]
  %v613 = vld [vmem:[%s1 + $0x4c] sm:$0xf]
  %v614 = vld [vmem:[%s1 + $0x50] sm:$0xf]
  %v615 = vld [vmem:[%s1 + $0x54] sm:$0xf]
  %v616 = vld [vmem:[%s1 + $0x58] sm:$0xf]
  %v617 = vld [vmem:[%s1 + $0x5c] sm:$0xf]
  %v618 = vld [vmem:[%s1 + $0x60] sm:$0xf]
  %v619 = vld [vmem:[%s1 + $0x64] sm:$0xf]
  %v620 = vld [vmem:[%s1 + $0x68] sm:$0xf]
  %v621 = vld [vmem:[%s1 + $0x6c] sm:$0xf]
  %v622 = vld [vmem:[%s1 + $0x70] sm:$0xf]
  %v623 = vld [vmem:[%s1 + $0x74] sm:$0xf]
  %v624 = vld [vmem:[%s1 + $0x78] sm:$0xf]
  %v625 = vld [vmem:[%s1 + $0x7c] sm:$0xf]
  %v626 = vld [vmem:[%s1 + $0x80] sm:$0xf]
  %v627 = vld [vmem:[%s1 + $0x84] sm:$0xf]
  %v628 = vld [vmem:[%s1 + $0x88] sm:$0xf]
  %v629 = vld [vmem:[%s1 + $0x8c] sm:$0xf]
  %v630 = vld [vmem:[%s1 + $0x90] sm:$0xf]
  %v631 = vld [vmem:[%s1 + $0x94] sm:$0xf]
  %v632 = vld [vmem:[%s1 + $0x98] sm:$0xf]
  %v633 = vld [vmem:[%s1 + $0x9c] sm:$0xf]
  %v634 = vld [vmem:[%s1 + $0xa0] sm:$0xf]
  %v635 = vld [vmem:[%s1 + $0xa4] sm:$0xf]
  %v636 = vld [vmem:[%s1 + $0xa8] sm:$0xf]
  %v637 = vld [vmem:[%s1 + $0xac] sm:$0xf]
  %v638 = vld [vmem:[%s1 + $0xb0] sm:$0xf]
  %v639 = vld [vmem:[%s1 + $0xb4] sm:$0xf]
  %v640 = vld [vmem:[%s1 + $0xb8] sm:$0xf]
  %v641 = vld [vmem:[%s1 + $0xbc] sm:$0xf]
  %v642 = vld [vmem:[%s1 + $0xc0] sm:$0xf]
  %v643 = vld [vmem:[%s1 + $0xc4] sm:$0xf]
  %v644 = vld [vmem:[%s1 + $0xc8] sm:$0xf]
  %v645 = vld [vmem:[%s1 + $0xcc] sm:$0xf]
  %v646 = vld [vmem:[%s1 + $0xd0] sm:$0xf]
  %v647 = vld [vmem:[%s1 + $0xd4] sm:$0xf]
  %v648 = vld [vmem:[%s1 + $0xd8] sm:$0xf]
  %v649 = vld [vmem:[%s1 + $0xdc] sm:$0xf]
  %v650 = vld [vmem:[%s1 + $0xe0] sm:$0xf]
  %v651 = vld [vmem:[%s1 + $0xe4] sm:$0xf]
  %v652 = vld [vmem:[%s1 + $0xe8] sm:$0xf]
  %v653 = vld [vmem:[%s1 + $0xec] sm:$0xf]
  %v654 = vld [vmem:[%s1 + $0xf0] sm:$0xf]
  %v655 = vld [vmem:[%s1 + $0xf4] sm:$0xf]
  %v656 = vld [vmem:[%s1 + $0xf8] sm:$0xf]
  %v657 = vld [vmem:[%s1 + $0xfc] sm:$0xf]
  %v658 = vld [vmem:[%s1 + $0x100] sm:$0xf]
  %v659 = vld [vmem:[%s1 + $0x104] sm:$0xf]
  %v660 = vld [vmem:[%s1 + $0x108] sm:$0xf]
  %v661 = vld [vmem:[%s1 + $0x10c] sm:$0xf]
  %v662 = vld [vmem:[%s1 + $0x110] sm:$0xf]
  %v663 = vld [vmem:[%s1 + $0x114] sm:$0xf]
  %v664 = vld [vmem:[%s1 + $0x118] sm:$0xf]
  %v665 = vld [vmem:[%s1 + $0x11c] sm:$0xf]
  %v738 = vunpack.c.l.b16 %v594
  %v739 = vunpack.c.l.b16 %v595
  %v740 = vunpack.c.l.b16 %v596
  %v741 = vunpack.c.l.b16 %v597
  %v742 = vunpack.c.l.b16 %v598
  %v743 = vunpack.c.l.b16 %v599
  %v744 = vunpack.c.l.b16 %v600
  %v745 = vunpack.c.l.b16 %v601
  %v746 = vunpack.c.l.b16 %v602
  %v747 = vunpack.c.l.b16 %v603
  %v748 = vunpack.c.l.b16 %v604
  %v749 = vunpack.c.l.b16 %v605
  %v750 = vunpack.c.l.b16 %v606
  %v751 = vunpack.c.l.b16 %v607
  %v752 = vunpack.c.l.b16 %v608
  %v753 = vunpack.c.l.b16 %v609
  %v754 = vunpack.c.l.b16 %v610
  %v755 = vunpack.c.l.b16 %v611
  %v756 = vunpack.c.l.b16 %v612
  %v757 = vunpack.c.l.b16 %v613
  %v758 = vunpack.c.l.b16 %v614
  %v759 = vunpack.c.l.b16 %v615
  %v760 = vunpack.c.l.b16 %v616
  %v761 = vunpack.c.l.b16 %v617
  %v762 = vunpack.c.l.b16 %v618
  %v763 = vunpack.c.l.b16 %v619
  %v764 = vunpack.c.l.b16 %v620
  %v765 = vunpack.c.l.b16 %v621
  %v766 = vunpack.c.l.b16 %v622
  %v767 = vunpack.c.l.b16 %v623
  %v768 = vunpack.c.l.b16 %v624
  %v769 = vunpack.c.l.b16 %v625
  %v770 = vunpack.c.l.b16 %v626
  %v771 = vunpack.c.l.b16 %v627
  %v772 = vunpack.c.l.b16 %v628
  %v773 = vunpack.c.l.b16 %v629
  %v774 = vunpack.c.l.b16 %v630
  %v775 = vunpack.c.l.b16 %v631
  %v776 = vunpack.c.l.b16 %v632
  %v777 = vunpack.c.l.b16 %v633
  %v778 = vunpack.c.l.b16 %v634
  %v779 = vunpack.c.l.b16 %v635
  %v780 = vunpack.c.l.b16 %v636
  %v781 = vunpack.c.l.b16 %v637
  %v782 = vunpack.c.l.b16 %v638
  %v783 = vunpack.c.l.b16 %v639
  %v784 = vunpack.c.l.b16 %v640
  %v785 = vunpack.c.l.b16 %v641
  %v786 = vunpack.c.l.b16 %v642
  %v787 = vunpack.c.l.b16 %v643
  %v788 = vunpack.c.l.b16 %v644
  %v789 = vunpack.c.l.b16 %v645
  %v790 = vunpack.c.l.b16 %v646
  %v791 = vunpack.c.l.b16 %v647
  %v792 = vunpack.c.l.b16 %v648
  %v793 = vunpack.c.l.b16 %v649
  %v794 = vunpack.c.l.b16 %v650
  %v795 = vunpack.c.l.b16 %v651
  %v796 = vunpack.c.l.b16 %v652
  %v797 = vunpack.c.l.b16 %v653
  %v798 = vunpack.c.l.b16 %v654
  %v799 = vunpack.c.l.b16 %v655
  %v800 = vunpack.c.l.b16 %v656
  %v801 = vunpack.c.l.b16 %v657
  %v802 = vunpack.c.l.b16 %v658
  %v803 = vunpack.c.l.b16 %v659
  %v804 = vunpack.c.l.b16 %v660
  %v805 = vunpack.c.l.b16 %v661
  %v806 = vunpack.c.l.b16 %v662
  %v807 = vunpack.c.l.b16 %v663
  %v808 = vunpack.c.l.b16 %v664
  %v809 = vunpack.c.l.b16 %v665
  %v810 = vpack.c.b16 %v739, %v738
  %v811 = vpack.c.b16 %v741, %v740
  %v812 = vpack.c.b16 %v743, %v742
  %v813 = vpack.c.b16 %v745, %v744
  %v814 = vpack.c.b16 %v747, %v746
  %v815 = vpack.c.b16 %v749, %v748
  %v816 = vpack.c.b16 %v751, %v750
  %v817 = vpack.c.b16 %v753, %v752
  %v818 = vpack.c.b16 %v755, %v754
  %v819 = vpack.c.b16 %v757, %v756
  %v820 = vpack.c.b16 %v759, %v758
  %v821 = vpack.c.b16 %v761, %v760
  %v822 = vpack.c.b16 %v763, %v762
  %v823 = vpack.c.b16 %v765, %v764
  %v824 = vpack.c.b16 %v767, %v766
  %v825 = vpack.c.b16 %v769, %v768
  %v826 = vpack.c.b16 %v771, %v770
  %v827 = vpack.c.b16 %v773, %v772
  %v828 = vpack.c.b16 %v775, %v774
  %v829 = vpack.c.b16 %v777, %v776
  %v830 = vpack.c.b16 %v779, %v778
  %v831 = vpack.c.b16 %v781, %v780
  %v832 = vpack.c.b16 %v783, %v782
  %v833 = vpack.c.b16 %v785, %v784
  %v834 = vpack.c.b16 %v787, %v786
  %v835 = vpack.c.b16 %v789, %v788
  %v836 = vpack.c.b16 %v791, %v790
  %v837 = vpack.c.b16 %v793, %v792
  %v838 = vpack.c.b16 %v795, %v794
  %v839 = vpack.c.b16 %v797, %v796
  %v840 = vpack.c.b16 %v799, %v798
  %v841 = vpack.c.b16 %v801, %v800
  %v842 = vpack.c.b16 %v803, %v802
  %v843 = vpack.c.b16 %v805, %v804
  %v844 = vpack.c.b16 %v807, %v806
  %v845 = vpack.c.b16 %v809, %v808
  %882 = vmatpush.bf16.msra.mxu0 %v817
  %883 = vmatpush.bf16.msra.mxu0 %v816
  %884 = vmatpush.bf16.msra.mxu0 %v815
  %885 = vmatpush.bf16.msra.mxu0 %v814
  %886 = vmatpush.bf16.msra.mxu0 %v813
  %887 = vmatpush.bf16.msra.mxu0 %v812
  %888 = vmatpush.bf16.msra.mxu0 %v811
  %889 = vmatpush.bf16.msra.mxu0 %v810
  %890 = vmatmul.bf16.gmra.mxu0 %v184
  %v891 = vpop.f32.mrf.mxu0
  %v892 = vadd.f32 0.0, %v891
  %v893 = vpop.f32.mrf.mxu0
  %v894 = vadd.f32 0.0, %v893
  %895 = vmatmul.bf16.gmra.mxu0 %v189
  %v896 = vpop.f32.mrf.mxu0
  %v897 = vadd.f32 0.0, %v896
  %v898 = vpop.f32.mrf.mxu0
  %v899 = vadd.f32 0.0, %v898
  %900 = vmatmul.bf16.gmra.mxu0 %v194
  %v901 = vpop.f32.mrf.mxu0
  %v902 = vadd.f32 0.0, %v901
  %v903 = vpop.f32.mrf.mxu0
  %v904 = vadd.f32 0.0, %v903
  %905 = vmatmul.bf16.gmra.mxu0 %v199
  %v906 = vpop.f32.mrf.mxu0
  %v907 = vadd.f32 0.0, %v906
  %v908 = vpop.f32.mrf.mxu0
  %v909 = vadd.f32 0.0, %v908
  %910 = vdwg.mxu0
  %911 = vmatpush.bf16.msra.mxu0 %v825
  %912 = vmatpush.bf16.msra.mxu0 %v824
  %913 = vmatpush.bf16.msra.mxu0 %v823
  %914 = vmatpush.bf16.msra.mxu0 %v822
  %915 = vmatpush.bf16.msra.mxu0 %v821
  %916 = vmatpush.bf16.msra.mxu0 %v820
  %917 = vmatpush.bf16.msra.mxu0 %v819
  %918 = vmatpush.bf16.msra.mxu0 %v818
  %919 = vmatmul.bf16.gmra.mxu0 %v185
  %v920 = vpop.f32.mrf.mxu0
  %v921 = vadd.f32 %v892, %v920
  %v922 = vpop.f32.mrf.mxu0
  %v923 = vadd.f32 %v894, %v922
  %924 = vmatmul.bf16.gmra.mxu0 %v190
  %v925 = vpop.f32.mrf.mxu0
  %v926 = vadd.f32 %v897, %v925
  %v927 = vpop.f32.mrf.mxu0
  %v928 = vadd.f32 %v899, %v927
  %929 = vmatmul.bf16.gmra.mxu0 %v195
  %v930 = vpop.f32.mrf.mxu0
  %v931 = vadd.f32 %v902, %v930
  %v932 = vpop.f32.mrf.mxu0
  %v933 = vadd.f32 %v904, %v932
  %934 = vmatmul.bf16.gmra.mxu0 %v200
  %v935 = vpop.f32.mrf.mxu0
  %v936 = vadd.f32 %v907, %v935
  %v937 = vpop.f32.mrf.mxu0
  %v938 = vadd.f32 %v909, %v937
  %939 = vdwg.mxu0
  %940 = vmatpush.bf16.msra.mxu0 %v833
  %941 = vmatpush.bf16.msra.mxu0 %v832
  %942 = vmatpush.bf16.msra.mxu0 %v831
  %943 = vmatpush.bf16.msra.mxu0 %v830
  %944 = vmatpush.bf16.msra.mxu0 %v829
  %945 = vmatpush.bf16.msra.mxu0 %v828
  %946 = vmatpush.bf16.msra.mxu0 %v827
  %947 = vmatpush.bf16.msra.mxu0 %v826
  %948 = vmatmul.bf16.gmra.mxu0 %v186
  %v949 = vpop.f32.mrf.mxu0
  %v950 = vadd.f32 %v921, %v949
  %v951 = vpop.f32.mrf.mxu0
  %v952 = vadd.f32 %v923, %v951
  %953 = vmatmul.bf16.gmra.mxu0 %v191
  %v954 = vpop.f32.mrf.mxu0
  %v955 = vadd.f32 %v926, %v954
  %v956 = vpop.f32.mrf.mxu0
  %v957 = vadd.f32 %v928, %v956
  %958 = vmatmul.bf16.gmra.mxu0 %v196
  %v959 = vpop.f32.mrf.mxu0
  %v960 = vadd.f32 %v931, %v959
  %v961 = vpop.f32.mrf.mxu0
  %v962 = vadd.f32 %v933, %v961
  %963 = vmatmul.bf16.gmra.mxu0 %v201
  %v964 = vpop.f32.mrf.mxu0
  %v965 = vadd.f32 %v936, %v964
  %v966 = vpop.f32.mrf.mxu0
  %v967 = vadd.f32 %v938, %v966
  %968 = vdwg.mxu0
  %969 = vmatpush.bf16.msra.mxu0 %v841
  %970 = vmatpush.bf16.msra.mxu0 %v840
  %971 = vmatpush.bf16.msra.mxu0 %v839
  %972 = vmatpush.bf16.msra.mxu0 %v838
  %973 = vmatpush.bf16.msra.mxu0 %v837
  %974 = vmatpush.bf16.msra.mxu0 %v836
  %975 = vmatpush.bf16.msra.mxu0 %v835
  %976 = vmatpush.bf16.msra.mxu0 %v834
  %977 = vmatmul.bf16.gmra.mxu0 %v187
  %v978 = vpop.f32.mrf.mxu0
  %v979 = vadd.f32 %v950, %v978
  %v980 = vpop.f32.mrf.mxu0
  %v981 = vadd.f32 %v952, %v980
  %982 = vmatmul.bf16.gmra.mxu0 %v192
  %v983 = vpop.f32.mrf.mxu0
  %v984 = vadd.f32 %v955, %v983
  %v985 = vpop.f32.mrf.mxu0
  %v986 = vadd.f32 %v957, %v985
  %987 = vmatmul.bf16.gmra.mxu0 %v197
  %v988 = vpop.f32.mrf.mxu0
  %v989 = vadd.f32 %v960, %v988
  %v990 = vpop.f32.mrf.mxu0
  %v991 = vadd.f32 %v962, %v990
  %992 = vmatmul.bf16.gmra.mxu0 %v202
  %v993 = vpop.f32.mrf.mxu0
  %v994 = vadd.f32 %v965, %v993
  %v995 = vpop.f32.mrf.mxu0
  %v996 = vadd.f32 %v967, %v995
  %997 = vdwg.mxu0
  %998 = vmatpush.bf16.msra.mxu0 0
  %999 = vmatpush.bf16.msra.mxu0 0
  %1000 = vmatpush.bf16.msra.mxu0 0
  %1001 = vmatpush.bf16.msra.mxu0 0
  %1002 = vmatpush.bf16.msra.mxu0 %v845
  %1003 = vmatpush.bf16.msra.mxu0 %v844
  %1004 = vmatpush.bf16.msra.mxu0 %v843
  %1005 = vmatpush.bf16.msra.mxu0 %v842
  %1006 = vmatmul.bf16.gmra.mxu0 %v438
  %v1007 = vpop.f32.mrf.mxu0
  %v1008 = vadd.f32 %v979, %v1007
  %v1009 = vpop.f32.mrf.mxu0
  %v1010 = vadd.f32 %v981, %v1009
  %1011 = vmatmul.bf16.gmra.mxu0 %v441
  %v1012 = vpop.f32.mrf.mxu0
  %v1013 = vadd.f32 %v984, %v1012
  %v1014 = vpop.f32.mrf.mxu0
  %v1015 = vadd.f32 %v986, %v1014
  %1016 = vmatmul.bf16.gmra.mxu0 %v444
  %v1017 = vpop.f32.mrf.mxu0
  %v1018 = vadd.f32 %v989, %v1017
  %v1019 = vpop.f32.mrf.mxu0
  %v1020 = vadd.f32 %v991, %v1019
  %1021 = vmatmul.bf16.gmra.mxu0 %v447
  %v1022 = vpop.f32.mrf.mxu0
  %v1023 = vadd.f32 %v994, %v1022
  %v1024 = vpop.f32.mrf.mxu0
  %v1025 = vadd.f32 %v996, %v1024
  %1026 = vdwg.mxu0
  %v1027 = vmax.f32 %v575, %v1008
  %v1028 = vmax.f32 %v577, %v1010
  %v1029 = vmax.f32 %v580, %v1013
  %v1030 = vmax.f32 %v582, %v1015
  %v1031 = vmax.f32 %v585, %v1018
  %v1032 = vmax.f32 %v587, %v1020
  %v1033 = vmax.f32 %v590, %v1023
  %v1034 = vmax.f32 %v592, %v1025
  %v1035 = vld [vmem:[%s2] sm:$0xf]
  %v1036 = vld [vmem:[%s2 + $0x4] sm:$0xf]
  %v1037 = vld [vmem:[%s2 + $0x8] sm:$0xf]
  %v1038 = vld [vmem:[%s2 + $0xc] sm:$0xf]
  %v1039 = vld [vmem:[%s2 + $0x10] sm:$0xf]
  %v1040 = vld [vmem:[%s2 + $0x14] sm:$0xf]
  %v1041 = vld [vmem:[%s2 + $0x18] sm:$0xf]
  %v1042 = vld [vmem:[%s2 + $0x1c] sm:$0xf]
  %v1043 = vld [vmem:[%s2 + $0x20] sm:$0xf]
  %v1044 = vld [vmem:[%s2 + $0x24] sm:$0xf]
  %v1045 = vld [vmem:[%s2 + $0x28] sm:$0xf]
  %v1046 = vld [vmem:[%s2 + $0x2c] sm:$0xf]
  %v1047 = vld [vmem:[%s2 + $0x30] sm:$0xf]
  %v1048 = vld [vmem:[%s2 + $0x34] sm:$0xf]
  %v1049 = vld [vmem:[%s2 + $0x38] sm:$0xf]
  %v1050 = vld [vmem:[%s2 + $0x3c] sm:$0xf]
  %v1051 = vld [vmem:[%s2 + $0x40] sm:$0xf]
  %v1052 = vld [vmem:[%s2 + $0x44] sm:$0xf]
  %v1053 = vld [vmem:[%s2 + $0x48] sm:$0xf]
  %v1054 = vld [vmem:[%s2 + $0x4c] sm:$0xf]
  %v1055 = vld [vmem:[%s2 + $0x50] sm:$0xf]
  %v1056 = vld [vmem:[%s2 + $0x54] sm:$0xf]
  %v1057 = vld [vmem:[%s2 + $0x58] sm:$0xf]
  %v1058 = vld [vmem:[%s2 + $0x5c] sm:$0xf]
  %v1059 = vld [vmem:[%s2 + $0x60] sm:$0xf]
  %v1060 = vld [vmem:[%s2 + $0x64] sm:$0xf]
  %v1061 = vld [vmem:[%s2 + $0x68] sm:$0xf]
  %v1062 = vld [vmem:[%s2 + $0x6c] sm:$0xf]
  %v1063 = vld [vmem:[%s2 + $0x70] sm:$0xf]
  %v1064 = vld [vmem:[%s2 + $0x74] sm:$0xf]
  %v1065 = vld [vmem:[%s2 + $0x78] sm:$0xf]
  %v1066 = vld [vmem:[%s2 + $0x7c] sm:$0xf]
  %v1067 = vld [vmem:[%s2 + $0x80] sm:$0xf]
  %v1068 = vld [vmem:[%s2 + $0x84] sm:$0xf]
  %v1069 = vld [vmem:[%s2 + $0x88] sm:$0xf]
  %v1070 = vld [vmem:[%s2 + $0x8c] sm:$0xf]
  %v1071 = vld [vmem:[%s2 + $0x90] sm:$0xf]
  %v1072 = vld [vmem:[%s2 + $0x94] sm:$0xf]
  %v1073 = vld [vmem:[%s2 + $0x98] sm:$0xf]
  %v1074 = vld [vmem:[%s2 + $0x9c] sm:$0xf]
  %v1075 = vld [vmem:[%s2 + $0xa0] sm:$0xf]
  %v1076 = vld [vmem:[%s2 + $0xa4] sm:$0xf]
  %v1077 = vld [vmem:[%s2 + $0xa8] sm:$0xf]
  %v1078 = vld [vmem:[%s2 + $0xac] sm:$0xf]
  %v1079 = vld [vmem:[%s2 + $0xb0] sm:$0xf]
  %v1080 = vld [vmem:[%s2 + $0xb4] sm:$0xf]
  %v1081 = vld [vmem:[%s2 + $0xb8] sm:$0xf]
  %v1082 = vld [vmem:[%s2 + $0xbc] sm:$0xf]
  %v1083 = vld [vmem:[%s2 + $0xc0] sm:$0xf]
  %v1084 = vld [vmem:[%s2 + $0xc4] sm:$0xf]
  %v1085 = vld [vmem:[%s2 + $0xc8] sm:$0xf]
  %v1086 = vld [vmem:[%s2 + $0xcc] sm:$0xf]
  %v1087 = vld [vmem:[%s2 + $0xd0] sm:$0xf]
  %v1088 = vld [vmem:[%s2 + $0xd4] sm:$0xf]
  %v1089 = vld [vmem:[%s2 + $0xd8] sm:$0xf]
  %v1090 = vld [vmem:[%s2 + $0xdc] sm:$0xf]
  %v1091 = vld [vmem:[%s2 + $0xe0] sm:$0xf]
  %v1092 = vld [vmem:[%s2 + $0xe4] sm:$0xf]
  %v1093 = vld [vmem:[%s2 + $0xe8] sm:$0xf]
  %v1094 = vld [vmem:[%s2 + $0xec] sm:$0xf]
  %v1095 = vld [vmem:[%s2 + $0xf0] sm:$0xf]
  %v1096 = vld [vmem:[%s2 + $0xf4] sm:$0xf]
  %v1097 = vld [vmem:[%s2 + $0xf8] sm:$0xf]
  %v1098 = vld [vmem:[%s2 + $0xfc] sm:$0xf]
  %v1099 = vld [vmem:[%s2 + $0x100] sm:$0xf]
  %v1100 = vld [vmem:[%s2 + $0x104] sm:$0xf]
  %v1101 = vld [vmem:[%s2 + $0x108] sm:$0xf]
  %v1102 = vld [vmem:[%s2 + $0x10c] sm:$0xf]
  %v1103 = vld [vmem:[%s2 + $0x110] sm:$0xf]
  %v1104 = vld [vmem:[%s2 + $0x114] sm:$0xf]
  %v1105 = vld [vmem:[%s2 + $0x118] sm:$0xf]
  %v1106 = vld [vmem:[%s2 + $0x11c] sm:$0xf]
  %v1179 = vunpack.c.l.b16 %v1035
  %v1180 = vunpack.c.l.b16 %v1036
  %v1181 = vunpack.c.l.b16 %v1037
  %v1182 = vunpack.c.l.b16 %v1038
  %v1183 = vunpack.c.l.b16 %v1039
  %v1184 = vunpack.c.l.b16 %v1040
  %v1185 = vunpack.c.l.b16 %v1041
  %v1186 = vunpack.c.l.b16 %v1042
  %v1187 = vunpack.c.l.b16 %v1043
  %v1188 = vunpack.c.l.b16 %v1044
  %v1189 = vunpack.c.l.b16 %v1045
  %v1190 = vunpack.c.l.b16 %v1046
  %v1191 = vunpack.c.l.b16 %v1047
  %v1192 = vunpack.c.l.b16 %v1048
  %v1193 = vunpack.c.l.b16 %v1049
  %v1194 = vunpack.c.l.b16 %v1050
  %v1195 = vunpack.c.l.b16 %v1051
  %v1196 = vunpack.c.l.b16 %v1052
  %v1197 = vunpack.c.l.b16 %v1053
  %v1198 = vunpack.c.l.b16 %v1054
  %v1199 = vunpack.c.l.b16 %v1055
  %v1200 = vunpack.c.l.b16 %v1056
  %v1201 = vunpack.c.l.b16 %v1057
  %v1202 = vunpack.c.l.b16 %v1058
  %v1203 = vunpack.c.l.b16 %v1059
  %v1204 = vunpack.c.l.b16 %v1060
  %v1205 = vunpack.c.l.b16 %v1061
  %v1206 = vunpack.c.l.b16 %v1062
  %v1207 = vunpack.c.l.b16 %v1063
  %v1208 = vunpack.c.l.b16 %v1064
  %v1209 = vunpack.c.l.b16 %v1065
  %v1210 = vunpack.c.l.b16 %v1066
  %v1211 = vunpack.c.l.b16 %v1067
  %v1212 = vunpack.c.l.b16 %v1068
  %v1213 = vunpack.c.l.b16 %v1069
  %v1214 = vunpack.c.l.b16 %v1070
  %v1215 = vunpack.c.l.b16 %v1071
  %v1216 = vunpack.c.l.b16 %v1072
  %v1217 = vunpack.c.l.b16 %v1073
  %v1218 = vunpack.c.l.b16 %v1074
  %v1219 = vunpack.c.l.b16 %v1075
  %v1220 = vunpack.c.l.b16 %v1076
  %v1221 = vunpack.c.l.b16 %v1077
  %v1222 = vunpack.c.l.b16 %v1078
  %v1223 = vunpack.c.l.b16 %v1079
  %v1224 = vunpack.c.l.b16 %v1080
  %v1225 = vunpack.c.l.b16 %v1081
  %v1226 = vunpack.c.l.b16 %v1082
  %v1227 = vunpack.c.l.b16 %v1083
  %v1228 = vunpack.c.l.b16 %v1084
  %v1229 = vunpack.c.l.b16 %v1085
  %v1230 = vunpack.c.l.b16 %v1086
  %v1231 = vunpack.c.l.b16 %v1087
  %v1232 = vunpack.c.l.b16 %v1088
  %v1233 = vunpack.c.l.b16 %v1089
  %v1234 = vunpack.c.l.b16 %v1090
  %v1235 = vunpack.c.l.b16 %v1091
  %v1236 = vunpack.c.l.b16 %v1092
  %v1237 = vunpack.c.l.b16 %v1093
  %v1238 = vunpack.c.l.b16 %v1094
  %v1239 = vunpack.c.l.b16 %v1095
  %v1240 = vunpack.c.l.b16 %v1096
  %v1241 = vunpack.c.l.b16 %v1097
  %v1242 = vunpack.c.l.b16 %v1098
  %v1243 = vunpack.c.l.b16 %v1099
  %v1244 = vunpack.c.l.b16 %v1100
  %v1245 = vunpack.c.l.b16 %v1101
  %v1246 = vunpack.c.l.b16 %v1102
  %v1247 = vunpack.c.l.b16 %v1103
  %v1248 = vunpack.c.l.b16 %v1104
  %v1249 = vunpack.c.l.b16 %v1105
  %v1250 = vunpack.c.l.b16 %v1106
  %v1251 = vpack.c.b16 %v1180, %v1179
  %v1252 = vpack.c.b16 %v1182, %v1181
  %v1253 = vpack.c.b16 %v1184, %v1183
  %v1254 = vpack.c.b16 %v1186, %v1185
  %v1255 = vpack.c.b16 %v1188, %v1187
  %v1256 = vpack.c.b16 %v1190, %v1189
  %v1257 = vpack.c.b16 %v1192, %v1191
  %v1258 = vpack.c.b16 %v1194, %v1193
  %v1259 = vpack.c.b16 %v1196, %v1195
  %v1260 = vpack.c.b16 %v1198, %v1197
  %v1261 = vpack.c.b16 %v1200, %v1199
  %v1262 = vpack.c.b16 %v1202, %v1201
  %v1263 = vpack.c.b16 %v1204, %v1203
  %v1264 = vpack.c.b16 %v1206, %v1205
  %v1265 = vpack.c.b16 %v1208, %v1207
  %v1266 = vpack.c.b16 %v1210, %v1209
  %v1267 = vpack.c.b16 %v1212, %v1211
  %v1268 = vpack.c.b16 %v1214, %v1213
  %v1269 = vpack.c.b16 %v1216, %v1215
  %v1270 = vpack.c.b16 %v1218, %v1217
  %v1271 = vpack.c.b16 %v1220, %v1219
  %v1272 = vpack.c.b16 %v1222, %v1221
  %v1273 = vpack.c.b16 %v1224, %v1223
  %v1274 = vpack.c.b16 %v1226, %v1225
  %v1275 = vpack.c.b16 %v1228, %v1227
  %v1276 = vpack.c.b16 %v1230, %v1229
  %v1277 = vpack.c.b16 %v1232, %v1231
  %v1278 = vpack.c.b16 %v1234, %v1233
  %v1279 = vpack.c.b16 %v1236, %v1235
  %v1280 = vpack.c.b16 %v1238, %v1237
  %v1281 = vpack.c.b16 %v1240, %v1239
  %v1282 = vpack.c.b16 %v1242, %v1241
  %v1283 = vpack.c.b16 %v1244, %v1243
  %v1284 = vpack.c.b16 %v1246, %v1245
  %v1285 = vpack.c.b16 %v1248, %v1247
  %v1286 = vpack.c.b16 %v1250, %v1249
  %1323 = vmatpush.bf16.msra.mxu0 %v1258
  %1324 = vmatpush.bf16.msra.mxu0 %v1257
  %1325 = vmatpush.bf16.msra.mxu0 %v1256
  %1326 = vmatpush.bf16.msra.mxu0 %v1255
  %1327 = vmatpush.bf16.msra.mxu0 %v1254
  %1328 = vmatpush.bf16.msra.mxu0 %v1253
  %1329 = vmatpush.bf16.msra.mxu0 %v1252
  %1330 = vmatpush.bf16.msra.mxu0 %v1251
  %1331 = vmatmul.bf16.gmra.mxu0 %v184
  %v1332 = vpop.f32.mrf.mxu0
  %v1333 = vadd.f32 0.0, %v1332
  %v1334 = vpop.f32.mrf.mxu0
  %v1335 = vadd.f32 0.0, %v1334
  %1336 = vmatmul.bf16.gmra.mxu0 %v189
  %v1337 = vpop.f32.mrf.mxu0
  %v1338 = vadd.f32 0.0, %v1337
  %v1339 = vpop.f32.mrf.mxu0
  %v1340 = vadd.f32 0.0, %v1339
  %1341 = vmatmul.bf16.gmra.mxu0 %v194
  %v1342 = vpop.f32.mrf.mxu0
  %v1343 = vadd.f32 0.0, %v1342
  %v1344 = vpop.f32.mrf.mxu0
  %v1345 = vadd.f32 0.0, %v1344
  %1346 = vmatmul.bf16.gmra.mxu0 %v199
  %v1347 = vpop.f32.mrf.mxu0
  %v1348 = vadd.f32 0.0, %v1347
  %v1349 = vpop.f32.mrf.mxu0
  %v1350 = vadd.f32 0.0, %v1349
  %1351 = vdwg.mxu0
  %1352 = vmatpush.bf16.msra.mxu0 %v1266
  %1353 = vmatpush.bf16.msra.mxu0 %v1265
  %1354 = vmatpush.bf16.msra.mxu0 %v1264
  %1355 = vmatpush.bf16.msra.mxu0 %v1263
  %1356 = vmatpush.bf16.msra.mxu0 %v1262
  %1357 = vmatpush.bf16.msra.mxu0 %v1261
  %1358 = vmatpush.bf16.msra.mxu0 %v1260
  %1359 = vmatpush.bf16.msra.mxu0 %v1259
  %1360 = vmatmul.bf16.gmra.mxu0 %v185
  %v1361 = vpop.f32.mrf.mxu0
  %v1362 = vadd.f32 %v1333, %v1361
  %v1363 = vpop.f32.mrf.mxu0
  %v1364 = vadd.f32 %v1335, %v1363
  %1365 = vmatmul.bf16.gmra.mxu0 %v190
  %v1366 = vpop.f32.mrf.mxu0
  %v1367 = vadd.f32 %v1338, %v1366
  %v1368 = vpop.f32.mrf.mxu0
  %v1369 = vadd.f32 %v1340, %v1368
  %1370 = vmatmul.bf16.gmra.mxu0 %v195
  %v1371 = vpop.f32.mrf.mxu0
  %v1372 = vadd.f32 %v1343, %v1371
  %v1373 = vpop.f32.mrf.mxu0
  %v1374 = vadd.f32 %v1345, %v1373
  %1375 = vmatmul.bf16.gmra.mxu0 %v200
  %v1376 = vpop.f32.mrf.mxu0
  %v1377 = vadd.f32 %v1348, %v1376
  %v1378 = vpop.f32.mrf.mxu0
  %v1379 = vadd.f32 %v1350, %v1378
  %1380 = vdwg.mxu0
  %1381 = vmatpush.bf16.msra.mxu0 %v1274
  %1382 = vmatpush.bf16.msra.mxu0 %v1273
  %1383 = vmatpush.bf16.msra.mxu0 %v1272
  %1384 = vmatpush.bf16.msra.mxu0 %v1271
  %1385 = vmatpush.bf16.msra.mxu0 %v1270
  %1386 = vmatpush.bf16.msra.mxu0 %v1269
  %1387 = vmatpush.bf16.msra.mxu0 %v1268
  %1388 = vmatpush.bf16.msra.mxu0 %v1267
  %1389 = vmatmul.bf16.gmra.mxu0 %v186
  %v1390 = vpop.f32.mrf.mxu0
  %v1391 = vadd.f32 %v1362, %v1390
  %v1392 = vpop.f32.mrf.mxu0
  %v1393 = vadd.f32 %v1364, %v1392
  %1394 = vmatmul.bf16.gmra.mxu0 %v191
  %v1395 = vpop.f32.mrf.mxu0
  %v1396 = vadd.f32 %v1367, %v1395
  %v1397 = vpop.f32.mrf.mxu0
  %v1398 = vadd.f32 %v1369, %v1397
  %1399 = vmatmul.bf16.gmra.mxu0 %v196
  %v1400 = vpop.f32.mrf.mxu0
  %v1401 = vadd.f32 %v1372, %v1400
  %v1402 = vpop.f32.mrf.mxu0
  %v1403 = vadd.f32 %v1374, %v1402
  %1404 = vmatmul.bf16.gmra.mxu0 %v201
  %v1405 = vpop.f32.mrf.mxu0
  %v1406 = vadd.f32 %v1377, %v1405
  %v1407 = vpop.f32.mrf.mxu0
  %v1408 = vadd.f32 %v1379, %v1407
  %1409 = vdwg.mxu0
  %1410 = vmatpush.bf16.msra.mxu0 %v1282
  %1411 = vmatpush.bf16.msra.mxu0 %v1281
  %1412 = vmatpush.bf16.msra.mxu0 %v1280
  %1413 = vmatpush.bf16.msra.mxu0 %v1279
  %1414 = vmatpush.bf16.msra.mxu0 %v1278
  %1415 = vmatpush.bf16.msra.mxu0 %v1277
  %1416 = vmatpush.bf16.msra.mxu0 %v1276
  %1417 = vmatpush.bf16.msra.mxu0 %v1275
  %1418 = vmatmul.bf16.gmra.mxu0 %v187
  %v1419 = vpop.f32.mrf.mxu0
  %v1420 = vadd.f32 %v1391, %v1419
  %v1421 = vpop.f32.mrf.mxu0
  %v1422 = vadd.f32 %v1393, %v1421
  %1423 = vmatmul.bf16.gmra.mxu0 %v192
  %v1424 = vpop.f32.mrf.mxu0
  %v1425 = vadd.f32 %v1396, %v1424
  %v1426 = vpop.f32.mrf.mxu0
  %v1427 = vadd.f32 %v1398, %v1426
  %1428 = vmatmul.bf16.gmra.mxu0 %v197
  %v1429 = vpop.f32.mrf.mxu0
  %v1430 = vadd.f32 %v1401, %v1429
  %v1431 = vpop.f32.mrf.mxu0
  %v1432 = vadd.f32 %v1403, %v1431
  %1433 = vmatmul.bf16.gmra.mxu0 %v202
  %v1434 = vpop.f32.mrf.mxu0
  %v1435 = vadd.f32 %v1406, %v1434
  %v1436 = vpop.f32.mrf.mxu0
  %v1437 = vadd.f32 %v1408, %v1436
  %1438 = vdwg.mxu0
  %1439 = vmatpush.bf16.msra.mxu0 0
  %1440 = vmatpush.bf16.msra.mxu0 0
  %1441 = vmatpush.bf16.msra.mxu0 0
  %1442 = vmatpush.bf16.msra.mxu0 0
  %1443 = vmatpush.bf16.msra.mxu0 %v1286
  %1444 = vmatpush.bf16.msra.mxu0 %v1285
  %1445 = vmatpush.bf16.msra.mxu0 %v1284
  %1446 = vmatpush.bf16.msra.mxu0 %v1283
  %1447 = vmatmul.bf16.gmra.mxu0 %v438
  %v1448 = vpop.f32.mrf.mxu0
  %v1449 = vadd.f32 %v1420, %v1448
  %v1450 = vpop.f32.mrf.mxu0
  %v1451 = vadd.f32 %v1422, %v1450
  %1452 = vmatmul.bf16.gmra.mxu0 %v441
  %v1453 = vpop.f32.mrf.mxu0
  %v1454 = vadd.f32 %v1425, %v1453
  %v1455 = vpop.f32.mrf.mxu0
  %v1456 = vadd.f32 %v1427, %v1455
  %1457 = vmatmul.bf16.gmra.mxu0 %v444
  %v1458 = vpop.f32.mrf.mxu0
  %v1459 = vadd.f32 %v1430, %v1458
  %v1460 = vpop.f32.mrf.mxu0
  %v1461 = vadd.f32 %v1432, %v1460
  %1462 = vmatmul.bf16.gmra.mxu0 %v447
  %v1463 = vpop.f32.mrf.mxu0
  %v1464 = vadd.f32 %v1435, %v1463
  %v1465 = vpop.f32.mrf.mxu0
  %v1466 = vadd.f32 %v1437, %v1465
  %1467 = vdwg.mxu0
  %v1468 = vld [vmem:[%s3] sm:$0xf]
  %v1469 = vld [vmem:[%s3 + $0x4] sm:$0xf]
  %v1470 = vld [vmem:[%s3 + $0x8] sm:$0xf]
  %v1471 = vld [vmem:[%s3 + $0xc] sm:$0xf]
  %v1472 = vld [vmem:[%s3 + $0x10] sm:$0xf]
  %v1473 = vld [vmem:[%s3 + $0x14] sm:$0xf]
  %v1474 = vld [vmem:[%s3 + $0x18] sm:$0xf]
  %v1475 = vld [vmem:[%s3 + $0x1c] sm:$0xf]
  %v1476 = vld [vmem:[%s3 + $0x20] sm:$0xf]
  %v1477 = vld [vmem:[%s3 + $0x24] sm:$0xf]
  %v1478 = vld [vmem:[%s3 + $0x28] sm:$0xf]
  %v1479 = vld [vmem:[%s3 + $0x2c] sm:$0xf]
  %v1480 = vld [vmem:[%s3 + $0x30] sm:$0xf]
  %v1481 = vld [vmem:[%s3 + $0x34] sm:$0xf]
  %v1482 = vld [vmem:[%s3 + $0x38] sm:$0xf]
  %v1483 = vld [vmem:[%s3 + $0x3c] sm:$0xf]
  %v1484 = vld [vmem:[%s3 + $0x40] sm:$0xf]
  %v1485 = vld [vmem:[%s3 + $0x44] sm:$0xf]
  %v1486 = vld [vmem:[%s3 + $0x48] sm:$0xf]
  %v1487 = vld [vmem:[%s3 + $0x4c] sm:$0xf]
  %v1488 = vld [vmem:[%s3 + $0x50] sm:$0xf]
  %v1489 = vld [vmem:[%s3 + $0x54] sm:$0xf]
  %v1490 = vld [vmem:[%s3 + $0x58] sm:$0xf]
  %v1491 = vld [vmem:[%s3 + $0x5c] sm:$0xf]
  %v1492 = vld [vmem:[%s3 + $0x60] sm:$0xf]
  %v1493 = vld [vmem:[%s3 + $0x64] sm:$0xf]
  %v1494 = vld [vmem:[%s3 + $0x68] sm:$0xf]
  %v1495 = vld [vmem:[%s3 + $0x6c] sm:$0xf]
  %v1496 = vld [vmem:[%s3 + $0x70] sm:$0xf]
  %v1497 = vld [vmem:[%s3 + $0x74] sm:$0xf]
  %v1498 = vld [vmem:[%s3 + $0x78] sm:$0xf]
  %v1499 = vld [vmem:[%s3 + $0x7c] sm:$0xf]
  %v1500 = vld [vmem:[%s3 + $0x80] sm:$0xf]
  %v1501 = vld [vmem:[%s3 + $0x84] sm:$0xf]
  %v1502 = vld [vmem:[%s3 + $0x88] sm:$0xf]
  %v1503 = vld [vmem:[%s3 + $0x8c] sm:$0xf]
  %v1504 = vld [vmem:[%s3 + $0x90] sm:$0xf]
  %v1505 = vld [vmem:[%s3 + $0x94] sm:$0xf]
  %v1506 = vld [vmem:[%s3 + $0x98] sm:$0xf]
  %v1507 = vld [vmem:[%s3 + $0x9c] sm:$0xf]
  %v1508 = vld [vmem:[%s3 + $0xa0] sm:$0xf]
  %v1509 = vld [vmem:[%s3 + $0xa4] sm:$0xf]
  %v1510 = vld [vmem:[%s3 + $0xa8] sm:$0xf]
  %v1511 = vld [vmem:[%s3 + $0xac] sm:$0xf]
  %v1512 = vld [vmem:[%s3 + $0xb0] sm:$0xf]
  %v1513 = vld [vmem:[%s3 + $0xb4] sm:$0xf]
  %v1514 = vld [vmem:[%s3 + $0xb8] sm:$0xf]
  %v1515 = vld [vmem:[%s3 + $0xbc] sm:$0xf]
  %v1516 = vld [vmem:[%s3 + $0xc0] sm:$0xf]
  %v1517 = vld [vmem:[%s3 + $0xc4] sm:$0xf]
  %v1518 = vld [vmem:[%s3 + $0xc8] sm:$0xf]
  %v1519 = vld [vmem:[%s3 + $0xcc] sm:$0xf]
  %v1520 = vld [vmem:[%s3 + $0xd0] sm:$0xf]
  %v1521 = vld [vmem:[%s3 + $0xd4] sm:$0xf]
  %v1522 = vld [vmem:[%s3 + $0xd8] sm:$0xf]
  %v1523 = vld [vmem:[%s3 + $0xdc] sm:$0xf]
  %v1524 = vld [vmem:[%s3 + $0xe0] sm:$0xf]
  %v1525 = vld [vmem:[%s3 + $0xe4] sm:$0xf]
  %v1526 = vld [vmem:[%s3 + $0xe8] sm:$0xf]
  %v1527 = vld [vmem:[%s3 + $0xec] sm:$0xf]
  %v1528 = vld [vmem:[%s3 + $0xf0] sm:$0xf]
  %v1529 = vld [vmem:[%s3 + $0xf4] sm:$0xf]
  %v1530 = vld [vmem:[%s3 + $0xf8] sm:$0xf]
  %v1531 = vld [vmem:[%s3 + $0xfc] sm:$0xf]
  %v1532 = vld [vmem:[%s3 + $0x100] sm:$0xf]
  %v1533 = vld [vmem:[%s3 + $0x104] sm:$0xf]
  %v1534 = vld [vmem:[%s3 + $0x108] sm:$0xf]
  %v1535 = vld [vmem:[%s3 + $0x10c] sm:$0xf]
  %v1536 = vld [vmem:[%s3 + $0x110] sm:$0xf]
  %v1537 = vld [vmem:[%s3 + $0x114] sm:$0xf]
  %v1538 = vld [vmem:[%s3 + $0x118] sm:$0xf]
  %v1539 = vld [vmem:[%s3 + $0x11c] sm:$0xf]
  %v1612 = vunpack.c.l.b16 %v1468
  %v1613 = vunpack.c.l.b16 %v1469
  %v1614 = vunpack.c.l.b16 %v1470
  %v1615 = vunpack.c.l.b16 %v1471
  %v1616 = vunpack.c.l.b16 %v1472
  %v1617 = vunpack.c.l.b16 %v1473
  %v1618 = vunpack.c.l.b16 %v1474
  %v1619 = vunpack.c.l.b16 %v1475
  %v1620 = vunpack.c.l.b16 %v1476
  %v1621 = vunpack.c.l.b16 %v1477
  %v1622 = vunpack.c.l.b16 %v1478
  %v1623 = vunpack.c.l.b16 %v1479
  %v1624 = vunpack.c.l.b16 %v1480
  %v1625 = vunpack.c.l.b16 %v1481
  %v1626 = vunpack.c.l.b16 %v1482
  %v1627 = vunpack.c.l.b16 %v1483
  %v1628 = vunpack.c.l.b16 %v1484
  %v1629 = vunpack.c.l.b16 %v1485
  %v1630 = vunpack.c.l.b16 %v1486
  %v1631 = vunpack.c.l.b16 %v1487
  %v1632 = vunpack.c.l.b16 %v1488
  %v1633 = vunpack.c.l.b16 %v1489
  %v1634 = vunpack.c.l.b16 %v1490
  %v1635 = vunpack.c.l.b16 %v1491
  %v1636 = vunpack.c.l.b16 %v1492
  %v1637 = vunpack.c.l.b16 %v1493
  %v1638 = vunpack.c.l.b16 %v1494
  %v1639 = vunpack.c.l.b16 %v1495
  %v1640 = vunpack.c.l.b16 %v1496
  %v1641 = vunpack.c.l.b16 %v1497
  %v1642 = vunpack.c.l.b16 %v1498
  %v1643 = vunpack.c.l.b16 %v1499
  %v1644 = vunpack.c.l.b16 %v1500
  %v1645 = vunpack.c.l.b16 %v1501
  %v1646 = vunpack.c.l.b16 %v1502
  %v1647 = vunpack.c.l.b16 %v1503
  %v1648 = vunpack.c.l.b16 %v1504
  %v1649 = vunpack.c.l.b16 %v1505
  %v1650 = vunpack.c.l.b16 %v1506
  %v1651 = vunpack.c.l.b16 %v1507
  %v1652 = vunpack.c.l.b16 %v1508
  %v1653 = vunpack.c.l.b16 %v1509
  %v1654 = vunpack.c.l.b16 %v1510
  %v1655 = vunpack.c.l.b16 %v1511
  %v1656 = vunpack.c.l.b16 %v1512
  %v1657 = vunpack.c.l.b16 %v1513
  %v1658 = vunpack.c.l.b16 %v1514
  %v1659 = vunpack.c.l.b16 %v1515
  %v1660 = vunpack.c.l.b16 %v1516
  %v1661 = vunpack.c.l.b16 %v1517
  %v1662 = vunpack.c.l.b16 %v1518
  %v1663 = vunpack.c.l.b16 %v1519
  %v1664 = vunpack.c.l.b16 %v1520
  %v1665 = vunpack.c.l.b16 %v1521
  %v1666 = vunpack.c.l.b16 %v1522
  %v1667 = vunpack.c.l.b16 %v1523
  %v1668 = vunpack.c.l.b16 %v1524
  %v1669 = vunpack.c.l.b16 %v1525
  %v1670 = vunpack.c.l.b16 %v1526
  %v1671 = vunpack.c.l.b16 %v1527
  %v1672 = vunpack.c.l.b16 %v1528
  %v1673 = vunpack.c.l.b16 %v1529
  %v1674 = vunpack.c.l.b16 %v1530
  %v1675 = vunpack.c.l.b16 %v1531
  %v1676 = vunpack.c.l.b16 %v1532
  %v1677 = vunpack.c.l.b16 %v1533
  %v1678 = vunpack.c.l.b16 %v1534
  %v1679 = vunpack.c.l.b16 %v1535
  %v1680 = vunpack.c.l.b16 %v1536
  %v1681 = vunpack.c.l.b16 %v1537
  %v1682 = vunpack.c.l.b16 %v1538
  %v1683 = vunpack.c.l.b16 %v1539
  %v1684 = vpack.c.b16 %v1613, %v1612
  %v1685 = vpack.c.b16 %v1615, %v1614
  %v1686 = vpack.c.b16 %v1617, %v1616
  %v1687 = vpack.c.b16 %v1619, %v1618
  %v1688 = vpack.c.b16 %v1621, %v1620
  %v1689 = vpack.c.b16 %v1623, %v1622
  %v1690 = vpack.c.b16 %v1625, %v1624
  %v1691 = vpack.c.b16 %v1627, %v1626
  %v1692 = vpack.c.b16 %v1629, %v1628
  %v1693 = vpack.c.b16 %v1631, %v1630
  %v1694 = vpack.c.b16 %v1633, %v1632
  %v1695 = vpack.c.b16 %v1635, %v1634
  %v1696 = vpack.c.b16 %v1637, %v1636
  %v1697 = vpack.c.b16 %v1639, %v1638
  %v1698 = vpack.c.b16 %v1641, %v1640
  %v1699 = vpack.c.b16 %v1643, %v1642
  %v1700 = vpack.c.b16 %v1645, %v1644
  %v1701 = vpack.c.b16 %v1647, %v1646
  %v1702 = vpack.c.b16 %v1649, %v1648
  %v1703 = vpack.c.b16 %v1651, %v1650
  %v1704 = vpack.c.b16 %v1653, %v1652
  %v1705 = vpack.c.b16 %v1655, %v1654
  %v1706 = vpack.c.b16 %v1657, %v1656
  %v1707 = vpack.c.b16 %v1659, %v1658
  %v1708 = vpack.c.b16 %v1661, %v1660
  %v1709 = vpack.c.b16 %v1663, %v1662
  %v1710 = vpack.c.b16 %v1665, %v1664
  %v1711 = vpack.c.b16 %v1667, %v1666
  %v1712 = vpack.c.b16 %v1669, %v1668
  %v1713 = vpack.c.b16 %v1671, %v1670
  %v1714 = vpack.c.b16 %v1673, %v1672
  %v1715 = vpack.c.b16 %v1675, %v1674
  %v1716 = vpack.c.b16 %v1677, %v1676
  %v1717 = vpack.c.b16 %v1679, %v1678
  %v1718 = vpack.c.b16 %v1681, %v1680
  %v1719 = vpack.c.b16 %v1683, %v1682
  %1756 = vmatpush.bf16.msra.mxu0 %v1691
  %1757 = vmatpush.bf16.msra.mxu0 %v1690
  %1758 = vmatpush.bf16.msra.mxu0 %v1689
  %1759 = vmatpush.bf16.msra.mxu0 %v1688
  %1760 = vmatpush.bf16.msra.mxu0 %v1687
  %1761 = vmatpush.bf16.msra.mxu0 %v1686
  %1762 = vmatpush.bf16.msra.mxu0 %v1685
  %1763 = vmatpush.bf16.msra.mxu0 %v1684
  %1764 = vmatmul.bf16.gmra.mxu0 %v184
  %v1765 = vpop.f32.mrf.mxu0
  %v1766 = vadd.f32 0.0, %v1765
  %v1767 = vpop.f32.mrf.mxu0
  %v1768 = vadd.f32 0.0, %v1767
  %1769 = vmatmul.bf16.gmra.mxu0 %v189
  %v1770 = vpop.f32.mrf.mxu0
  %v1771 = vadd.f32 0.0, %v1770
  %v1772 = vpop.f32.mrf.mxu0
  %v1773 = vadd.f32 0.0, %v1772
  %1774 = vmatmul.bf16.gmra.mxu0 %v194
  %v1775 = vpop.f32.mrf.mxu0
  %v1776 = vadd.f32 0.0, %v1775
  %v1777 = vpop.f32.mrf.mxu0
  %v1778 = vadd.f32 0.0, %v1777
  %1779 = vmatmul.bf16.gmra.mxu0 %v199
  %v1780 = vpop.f32.mrf.mxu0
  %v1781 = vadd.f32 0.0, %v1780
  %v1782 = vpop.f32.mrf.mxu0
  %v1783 = vadd.f32 0.0, %v1782
  %1784 = vdwg.mxu0
  %1785 = vmatpush.bf16.msra.mxu0 %v1699
  %1786 = vmatpush.bf16.msra.mxu0 %v1698
  %1787 = vmatpush.bf16.msra.mxu0 %v1697
  %1788 = vmatpush.bf16.msra.mxu0 %v1696
  %1789 = vmatpush.bf16.msra.mxu0 %v1695
  %1790 = vmatpush.bf16.msra.mxu0 %v1694
  %1791 = vmatpush.bf16.msra.mxu0 %v1693
  %1792 = vmatpush.bf16.msra.mxu0 %v1692
  %1793 = vmatmul.bf16.gmra.mxu0 %v185
  %v1794 = vpop.f32.mrf.mxu0
  %v1795 = vadd.f32 %v1766, %v1794
  %v1796 = vpop.f32.mrf.mxu0
  %v1797 = vadd.f32 %v1768, %v1796
  %1798 = vmatmul.bf16.gmra.mxu0 %v190
  %v1799 = vpop.f32.mrf.mxu0
  %v1800 = vadd.f32 %v1771, %v1799
  %v1801 = vpop.f32.mrf.mxu0
  %v1802 = vadd.f32 %v1773, %v1801
  %1803 = vmatmul.bf16.gmra.mxu0 %v195
  %v1804 = vpop.f32.mrf.mxu0
  %v1805 = vadd.f32 %v1776, %v1804
  %v1806 = vpop.f32.mrf.mxu0
  %v1807 = vadd.f32 %v1778, %v1806
  %1808 = vmatmul.bf16.gmra.mxu0 %v200
  %v1809 = vpop.f32.mrf.mxu0
  %v1810 = vadd.f32 %v1781, %v1809
  %v1811 = vpop.f32.mrf.mxu0
  %v1812 = vadd.f32 %v1783, %v1811
  %1813 = vdwg.mxu0
  %1814 = vmatpush.bf16.msra.mxu0 %v1707
  %1815 = vmatpush.bf16.msra.mxu0 %v1706
  %1816 = vmatpush.bf16.msra.mxu0 %v1705
  %1817 = vmatpush.bf16.msra.mxu0 %v1704
  %1818 = vmatpush.bf16.msra.mxu0 %v1703
  %1819 = vmatpush.bf16.msra.mxu0 %v1702
  %1820 = vmatpush.bf16.msra.mxu0 %v1701
  %1821 = vmatpush.bf16.msra.mxu0 %v1700
  %1822 = vmatmul.bf16.gmra.mxu0 %v186
  %v1823 = vpop.f32.mrf.mxu0
  %v1824 = vadd.f32 %v1795, %v1823
  %v1825 = vpop.f32.mrf.mxu0
  %v1826 = vadd.f32 %v1797, %v1825
  %1827 = vmatmul.bf16.gmra.mxu0 %v191
  %v1828 = vpop.f32.mrf.mxu0
  %v1829 = vadd.f32 %v1800, %v1828
  %v1830 = vpop.f32.mrf.mxu0
  %v1831 = vadd.f32 %v1802, %v1830
  %1832 = vmatmul.bf16.gmra.mxu0 %v196
  %v1833 = vpop.f32.mrf.mxu0
  %v1834 = vadd.f32 %v1805, %v1833
  %v1835 = vpop.f32.mrf.mxu0
  %v1836 = vadd.f32 %v1807, %v1835
  %1837 = vmatmul.bf16.gmra.mxu0 %v201
  %v1838 = vpop.f32.mrf.mxu0
  %v1839 = vadd.f32 %v1810, %v1838
  %v1840 = vpop.f32.mrf.mxu0
  %v1841 = vadd.f32 %v1812, %v1840
  %1842 = vdwg.mxu0
  %1843 = vmatpush.bf16.msra.mxu0 %v1715
  %1844 = vmatpush.bf16.msra.mxu0 %v1714
  %1845 = vmatpush.bf16.msra.mxu0 %v1713
  %1846 = vmatpush.bf16.msra.mxu0 %v1712
  %1847 = vmatpush.bf16.msra.mxu0 %v1711
  %1848 = vmatpush.bf16.msra.mxu0 %v1710
  %1849 = vmatpush.bf16.msra.mxu0 %v1709
  %1850 = vmatpush.bf16.msra.mxu0 %v1708
  %1851 = vmatmul.bf16.gmra.mxu0 %v187
  %v1852 = vpop.f32.mrf.mxu0
  %v1853 = vadd.f32 %v1824, %v1852
  %v1854 = vpop.f32.mrf.mxu0
  %v1855 = vadd.f32 %v1826, %v1854
  %1856 = vmatmul.bf16.gmra.mxu0 %v192
  %v1857 = vpop.f32.mrf.mxu0
  %v1858 = vadd.f32 %v1829, %v1857
  %v1859 = vpop.f32.mrf.mxu0
  %v1860 = vadd.f32 %v1831, %v1859
  %1861 = vmatmul.bf16.gmra.mxu0 %v197
  %v1862 = vpop.f32.mrf.mxu0
  %v1863 = vadd.f32 %v1834, %v1862
  %v1864 = vpop.f32.mrf.mxu0
  %v1865 = vadd.f32 %v1836, %v1864
  %1866 = vmatmul.bf16.gmra.mxu0 %v202
  %v1867 = vpop.f32.mrf.mxu0
  %v1868 = vadd.f32 %v1839, %v1867
  %v1869 = vpop.f32.mrf.mxu0
  %v1870 = vadd.f32 %v1841, %v1869
  %1871 = vdwg.mxu0
  %1872 = vmatpush.bf16.msra.mxu0 0
  %1873 = vmatpush.bf16.msra.mxu0 0
  %1874 = vmatpush.bf16.msra.mxu0 0
  %1875 = vmatpush.bf16.msra.mxu0 0
  %1876 = vmatpush.bf16.msra.mxu0 %v1719
  %1877 = vmatpush.bf16.msra.mxu0 %v1718
  %1878 = vmatpush.bf16.msra.mxu0 %v1717
  %1879 = vmatpush.bf16.msra.mxu0 %v1716
  %1880 = vmatmul.bf16.gmra.mxu0 %v438
  %v1881 = vpop.f32.mrf.mxu0
  %v1882 = vadd.f32 %v1853, %v1881
  %v1883 = vpop.f32.mrf.mxu0
  %v1884 = vadd.f32 %v1855, %v1883
  %1885 = vmatmul.bf16.gmra.mxu0 %v441
  %v1886 = vpop.f32.mrf.mxu0
  %v1887 = vadd.f32 %v1858, %v1886
  %v1888 = vpop.f32.mrf.mxu0
  %v1889 = vadd.f32 %v1860, %v1888
  %1890 = vmatmul.bf16.gmra.mxu0 %v444
  %v1891 = vpop.f32.mrf.mxu0
  %v1892 = vadd.f32 %v1863, %v1891
  %v1893 = vpop.f32.mrf.mxu0
  %v1894 = vadd.f32 %v1865, %v1893
  %1895 = vmatmul.bf16.gmra.mxu0 %v447
  %v1896 = vpop.f32.mrf.mxu0
  %v1897 = vadd.f32 %v1868, %v1896
  %v1898 = vpop.f32.mrf.mxu0
  %v1899 = vadd.f32 %v1870, %v1898
  %1900 = vdwg.mxu0
  %v1901 = vmax.f32 %v1449, %v1882
  %v1902 = vmax.f32 %v1451, %v1884
  %v1903 = vmax.f32 %v1454, %v1887
  %v1904 = vmax.f32 %v1456, %v1889
  %v1905 = vmax.f32 %v1459, %v1892
  %v1906 = vmax.f32 %v1461, %v1894
  %v1907 = vmax.f32 %v1464, %v1897
  %v1908 = vmax.f32 %v1466, %v1899
  %v1909 = vmax.f32 %v1027, %v1901
  %v1910 = vmax.f32 %v1028, %v1902
  %v1911 = vmax.f32 %v1029, %v1903
  %v1912 = vmax.f32 %v1030, %v1904
  %v1913 = vmax.f32 %v1031, %v1905
  %v1914 = vmax.f32 %v1032, %v1906
  %v1915 = vmax.f32 %v1033, %v1907
  %v1916 = vmax.f32 %v1034, %v1908
  %v1917 = vld [vmem:[%s5] sm:$0xff]
  %v1918 = vld [vmem:[%s5 + $0x8] sm:$0xff]
  %v1919 = vld [vmem:[%s5 + $0x10] sm:$0xff]
  %v1920 = vld [vmem:[%s5 + $0x18] sm:$0xff]
  %v1921 = vld [vmem:[%s5 + $0x20] sm:$0xff]
  %v1922 = vld [vmem:[%s5 + $0x28] sm:$0xff]
  %v1923 = vld [vmem:[%s5 + $0x30] sm:$0xff]
  %v1924 = vld [vmem:[%s5 + $0x38] sm:$0xff]
  %1926 = vset.pattern.permute.xlu0 0
  %1927 = vperm.xlu0 %1926, %v1917
  %v1928 = vpop.permute.xlu0 %1927
  %1931 = vset.pattern.permute.xlu0 0
  %1932 = vperm.xlu0 %1931, %v1918
  %v1933 = vpop.permute.xlu0 %1932
  %1936 = vset.pattern.permute.xlu0 0
  %1937 = vperm.xlu0 %1936, %v1919
  %v1938 = vpop.permute.xlu0 %1937
  %1941 = vset.pattern.permute.xlu0 0
  %1942 = vperm.xlu0 %1941, %v1920
  %v1943 = vpop.permute.xlu0 %1942
  %1946 = vset.pattern.permute.xlu0 0
  %1947 = vperm.xlu0 %1946, %v1921
  %v1948 = vpop.permute.xlu0 %1947
  %1951 = vset.pattern.permute.xlu0 0
  %1952 = vperm.xlu0 %1951, %v1922
  %v1953 = vpop.permute.xlu0 %1952
  %1956 = vset.pattern.permute.xlu0 0
  %1957 = vperm.xlu0 %1956, %v1923
  %v1958 = vpop.permute.xlu0 %1957
  %1961 = vset.pattern.permute.xlu0 0
  %1962 = vperm.xlu0 %1961, %v1924
  %v1963 = vpop.permute.xlu0 %1962
  %v1965 = vadd.f32 %v1909, %v1928
  %v1966 = vadd.f32 %v1910, %v1933
  %v1967 = vadd.f32 %v1911, %v1938
  %v1968 = vadd.f32 %v1912, %v1943
  %v1969 = vadd.f32 %v1913, %v1948
  %v1970 = vadd.f32 %v1914, %v1953
  %v1971 = vadd.f32 %v1915, %v1958
  %v1972 = vadd.f32 %v1916, %v1963
  %v1973 = vmax.f32 %v1965, 0.0
  %v1974 = vmax.f32 %v1966, 0.0
  %v1975 = vmax.f32 %v1967, 0.0
  %v1976 = vmax.f32 %v1968, 0.0
  %v1977 = vmax.f32 %v1969, 0.0
  %v1978 = vmax.f32 %v1970, 0.0
  %v1979 = vmax.f32 %v1971, 0.0
  %v1980 = vmax.f32 %v1972, 0.0
  %v1981 = vpack.c.bf16 %v1973, %v1973
  %v1982 = vpack.c.bf16 %v1974, %v1974
  %v1983 = vpack.c.bf16 %v1975, %v1975
  %v1984 = vpack.c.bf16 %v1976, %v1976
  %v1985 = vpack.c.bf16 %v1977, %v1977
  %v1986 = vpack.c.bf16 %v1978, %v1978
  %v1987 = vpack.c.bf16 %v1979, %v1979
  %v1988 = vpack.c.bf16 %v1980, %v1980
  %vm1989 = vcmask 257024
  %1990 = vst.msk [vmem:[%s6] sm:$0xf] %vm1989, %v1981
  %1991 = vst.msk [vmem:[%s6 + $0x4] sm:$0xf] %vm1989, %v1982
  %1992 = vst.msk [vmem:[%s6 + $0x8] sm:$0xf] %vm1989, %v1983
  %1993 = vst.msk [vmem:[%s6 + $0xc] sm:$0xf] %vm1989, %v1984
  %1994 = vst.msk [vmem:[%s6 + $0x10] sm:$0xf] %vm1989, %v1985
  %1995 = vst.msk [vmem:[%s6 + $0x14] sm:$0xf] %vm1989, %v1986
  %1996 = vst.msk [vmem:[%s6 + $0x18] sm:$0xf] %vm1989, %v1987
  %1997 = vst.msk [vmem:[%s6 + $0x1c] sm:$0xf] %vm1989, %v1988
  // Predicated region
  $region26: #{simple_cnn_forward.6} parent=0 // pred_check
    _
  $region27: #{simple_cnn_forward.6} parent=0 // pred_check_branch
    %1999 = sbr.rel (0) target = $region29
  $region28: #{simple_cnn_forward.6} parent=0 // pred_region
    _
  $region29: #{simple_cnn_forward.6} parent=0 // pred_fallthru
    _
  // Predicated region
  $region30: #{simple_cnn_forward.6} parent=0 // pred_check
    _
  $region31: #{simple_cnn_forward.6} parent=0 // pred_check_branch
    %2001 = sbr.rel (0) target = $region33
  $region32: #{simple_cnn_forward.6} parent=0 // pred_region
    _
  $region33: #{simple_cnn_forward.6} parent=0 // pred_fallthru
    _

// kernel: simple_cnn_forward.7
$region0: #{simple_cnn_forward.7}
  #allocation0 [shape = 'u32[]', space=smem, size = 0x4, offset = 0x4, fixed_abs, tag = 'smem constant byte address 0x4 - core index']
  #allocation1 [shape = 'u32[72,128]{1,0:T(1,128)}', space=vmem, size = 0x9000, scoped, tag = 'internal scratch']
  %s0 = inlined_call_operand.vmem [shape: bf16[2,1024], index: 0, kind: input, shape index: {}]
  %s1 = inlined_call_operand.vmem [shape: bf16[1024,64], index: 1, kind: input, shape index: {}]
  %s2 = inlined_call_operand.vmem [shape: f32[1,64], index: 2, kind: input, shape index: {}]
  %s3 = inlined_call_operand.vmem [shape: bf16[64,128], index: 3, kind: input, shape index: {}]
  %s4 = inlined_call_operand.vmem [shape: f32[1,128], index: 4, kind: input, shape index: {}]
  %s5 = inlined_call_operand.hbm [shape: f32[2,128], index: 5, kind: output, shape index: {}]
  %s6 = sld [smem:[#allocation0]]
  $region30: #{simple_cnn_forward.7} parent=0
    _
  %s8 = ssub.s32 1, %s6
  %s9 = scalar_select 0, %s8, %s6
  $region1: #{simple_cnn_forward.7} parent=0
    #allocation2 [shape = 'u8[1024]{0}', space=vmem, size = 0x400, scoped, tag = 'output window, operand 0, single buffered']
    #allocation3 [shape = 's32[1]{0}', space=sflag, size = 0x4, scoped, tag = 'scoped memory for simple_cnn_forward.7']
    %10 = vsyncpa [#allocation3], 0
    // Predicated region
    $region2: #{simple_cnn_forward.7} parent=1 // pred_check
      _
    $region3: #{simple_cnn_forward.7} parent=1 // pred_check_branch
      %12 = sbr.rel (0) target = $region5
    $region4: #{simple_cnn_forward.7} parent=1 // pred_region
      _
    $region5: #{simple_cnn_forward.7} parent=1 // pred_fallthru
      _
    // Predicated region
    $region6: #{simple_cnn_forward.7} parent=1 // pred_check
      _
    $region7: #{simple_cnn_forward.7} parent=1 // pred_check_branch
      %14 = sbr.rel (0) target = $region9
    $region8: #{simple_cnn_forward.7} parent=1 // pred_region
      _
    $region9: #{simple_cnn_forward.7} parent=1 // pred_fallthru
      _
    // Predicated region
    $region10: #{simple_cnn_forward.7} parent=1 // pred_check
      _
    $region11: #{simple_cnn_forward.7} parent=1 // pred_check_branch
      %16 = sbr.rel (0) target = $region13
    $region12: #{simple_cnn_forward.7} parent=1 // pred_region
      _
    $region13: #{simple_cnn_forward.7} parent=1 // pred_fallthru
      _
    // Predicated region
    $region14: #{simple_cnn_forward.7} parent=1 // pred_check
      _
    $region15: #{simple_cnn_forward.7} parent=1 // pred_check_branch
      %18 = sbr.rel (0) target = $region17
    $region16: #{simple_cnn_forward.7} parent=1 // pred_region
      _
    $region17: #{simple_cnn_forward.7} parent=1 // pred_fallthru
      _
    // Predicated region
    $region18: #{simple_cnn_forward.7} parent=1 // pred_check
      _
    $region19: #{simple_cnn_forward.7} parent=1 // pred_check_branch
      %20 = sbr.rel (0) target = $region21
    $region20: #{simple_cnn_forward.7} parent=1 // pred_region
      _
    $region21: #{simple_cnn_forward.7} parent=1 // pred_fallthru
      _
    %v22 = vld [vmem:[%s0] sm:$0xff]
    %v23 = vld [vmem:[%s1] sm:$0xf]
    %v24 = vld [vmem:[%s1 + $0x4] sm:$0xf]
    %v25 = vld [vmem:[%s1 + $0x8] sm:$0xf]
    %v26 = vld [vmem:[%s1 + $0xc] sm:$0xf]
    %v27 = vld [vmem:[%s1 + $0x10] sm:$0xf]
    %v28 = vld [vmem:[%s1 + $0x14] sm:$0xf]
    %v29 = vld [vmem:[%s1 + $0x18] sm:$0xf]
    %v30 = vld [vmem:[%s1 + $0x1c] sm:$0xf]
    %v31 = vld [vmem:[%s1 + $0x20] sm:$0xf]
    %v32 = vld [vmem:[%s1 + $0x24] sm:$0xf]
    %v33 = vld [vmem:[%s1 + $0x28] sm:$0xf]
    %v34 = vld [vmem:[%s1 + $0x2c] sm:$0xf]
    %v35 = vld [vmem:[%s1 + $0x30] sm:$0xf]
    %v36 = vld [vmem:[%s1 + $0x34] sm:$0xf]
    %v37 = vld [vmem:[%s1 + $0x38] sm:$0xf]
    %v38 = vld [vmem:[%s1 + $0x3c] sm:$0xf]
    %v39 = vld [vmem:[%s1 + $0x40] sm:$0xf]
    %v40 = vld [vmem:[%s1 + $0x44] sm:$0xf]
    %v41 = vld [vmem:[%s1 + $0x48] sm:$0xf]
    %v42 = vld [vmem:[%s1 + $0x4c] sm:$0xf]
    %v43 = vld [vmem:[%s1 + $0x50] sm:$0xf]
    %v44 = vld [vmem:[%s1 + $0x54] sm:$0xf]
    %v45 = vld [vmem:[%s1 + $0x58] sm:$0xf]
    %v46 = vld [vmem:[%s1 + $0x5c] sm:$0xf]
    %v47 = vld [vmem:[%s1 + $0x60] sm:$0xf]
    %v48 = vld [vmem:[%s1 + $0x64] sm:$0xf]
    %v49 = vld [vmem:[%s1 + $0x68] sm:$0xf]
    %v50 = vld [vmem:[%s1 + $0x6c] sm:$0xf]
    %v51 = vld [vmem:[%s1 + $0x70] sm:$0xf]
    %v52 = vld [vmem:[%s1 + $0x74] sm:$0xf]
    %v53 = vld [vmem:[%s1 + $0x78] sm:$0xf]
    %v54 = vld [vmem:[%s1 + $0x7c] sm:$0xf]
    %v55 = vld [vmem:[%s1 + $0x80] sm:$0xf]
    %v56 = vld [vmem:[%s1 + $0x84] sm:$0xf]
    %v57 = vld [vmem:[%s1 + $0x88] sm:$0xf]
    %v58 = vld [vmem:[%s1 + $0x8c] sm:$0xf]
    %v59 = vld [vmem:[%s1 + $0x90] sm:$0xf]
    %v60 = vld [vmem:[%s1 + $0x94] sm:$0xf]
    %v61 = vld [vmem:[%s1 + $0x98] sm:$0xf]
    %v62 = vld [vmem:[%s1 + $0x9c] sm:$0xf]
    %v63 = vld [vmem:[%s1 + $0xa0] sm:$0xf]
    %v64 = vld [vmem:[%s1 + $0xa4] sm:$0xf]
    %v65 = vld [vmem:[%s1 + $0xa8] sm:$0xf]
    %v66 = vld [vmem:[%s1 + $0xac] sm:$0xf]
    %v67 = vld [vmem:[%s1 + $0xb0] sm:$0xf]
    %v68 = vld [vmem:[%s1 + $0xb4] sm:$0xf]
    %v69 = vld [vmem:[%s1 + $0xb8] sm:$0xf]
    %v70 = vld [vmem:[%s1 + $0xbc] sm:$0xf]
    %v71 = vld [vmem:[%s1 + $0xc0] sm:$0xf]
    %v72 = vld [vmem:[%s1 + $0xc4] sm:$0xf]
    %v73 = vld [vmem:[%s1 + $0xc8] sm:$0xf]
    %v74 = vld [vmem:[%s1 + $0xcc] sm:$0xf]
    %v75 = vld [vmem:[%s1 + $0xd0] sm:$0xf]
    %v76 = vld [vmem:[%s1 + $0xd4] sm:$0xf]
    %v77 = vld [vmem:[%s1 + $0xd8] sm:$0xf]
    %v78 = vld [vmem:[%s1 + $0xdc] sm:$0xf]
    %v79 = vld [vmem:[%s1 + $0xe0] sm:$0xf]
    %v80 = vld [vmem:[%s1 + $0xe4] sm:$0xf]
    %v81 = vld [vmem:[%s1 + $0xe8] sm:$0xf]
    %v82 = vld [vmem:[%s1 + $0xec] sm:$0xf]
    %v83 = vld [vmem:[%s1 + $0xf0] sm:$0xf]
    %v84 = vld [vmem:[%s1 + $0xf4] sm:$0xf]
    %v85 = vld [vmem:[%s1 + $0xf8] sm:$0xf]
    %v86 = vld [vmem:[%s1 + $0xfc] sm:$0xf]
    %v87 = vld [vmem:[%s1 + $0x100] sm:$0xf]
    %v88 = vld [vmem:[%s1 + $0x104] sm:$0xf]
    %v89 = vld [vmem:[%s1 + $0x108] sm:$0xf]
    %v90 = vld [vmem:[%s1 + $0x10c] sm:$0xf]
    %v91 = vld [vmem:[%s1 + $0x110] sm:$0xf]
    %v92 = vld [vmem:[%s1 + $0x114] sm:$0xf]
    %v93 = vld [vmem:[%s1 + $0x118] sm:$0xf]
    %v94 = vld [vmem:[%s1 + $0x11c] sm:$0xf]
    %v95 = vld [vmem:[%s1 + $0x120] sm:$0xf]
    %v96 = vld [vmem:[%s1 + $0x124] sm:$0xf]
    %v97 = vld [vmem:[%s1 + $0x128] sm:$0xf]
    %v98 = vld [vmem:[%s1 + $0x12c] sm:$0xf]
    %v99 = vld [vmem:[%s1 + $0x130] sm:$0xf]
    %v100 = vld [vmem:[%s1 + $0x134] sm:$0xf]
    %v101 = vld [vmem:[%s1 + $0x138] sm:$0xf]
    %v102 = vld [vmem:[%s1 + $0x13c] sm:$0xf]
    %v103 = vld [vmem:[%s1 + $0x140] sm:$0xf]
    %v104 = vld [vmem:[%s1 + $0x144] sm:$0xf]
    %v105 = vld [vmem:[%s1 + $0x148] sm:$0xf]
    %v106 = vld [vmem:[%s1 + $0x14c] sm:$0xf]
    %v107 = vld [vmem:[%s1 + $0x150] sm:$0xf]
    %v108 = vld [vmem:[%s1 + $0x154] sm:$0xf]
    %v109 = vld [vmem:[%s1 + $0x158] sm:$0xf]
    %v110 = vld [vmem:[%s1 + $0x15c] sm:$0xf]
    %v111 = vld [vmem:[%s1 + $0x160] sm:$0xf]
    %v112 = vld [vmem:[%s1 + $0x164] sm:$0xf]
    %v113 = vld [vmem:[%s1 + $0x168] sm:$0xf]
    %v114 = vld [vmem:[%s1 + $0x16c] sm:$0xf]
    %v115 = vld [vmem:[%s1 + $0x170] sm:$0xf]
    %v116 = vld [vmem:[%s1 + $0x174] sm:$0xf]
    %v117 = vld [vmem:[%s1 + $0x178] sm:$0xf]
    %v118 = vld [vmem:[%s1 + $0x17c] sm:$0xf]
    %v119 = vld [vmem:[%s1 + $0x180] sm:$0xf]
    %v120 = vld [vmem:[%s1 + $0x184] sm:$0xf]
    %v121 = vld [vmem:[%s1 + $0x188] sm:$0xf]
    %v122 = vld [vmem:[%s1 + $0x18c] sm:$0xf]
    %v123 = vld [vmem:[%s1 + $0x190] sm:$0xf]
    %v124 = vld [vmem:[%s1 + $0x194] sm:$0xf]
    %v125 = vld [vmem:[%s1 + $0x198] sm:$0xf]
    %v126 = vld [vmem:[%s1 + $0x19c] sm:$0xf]
    %v127 = vld [vmem:[%s1 + $0x1a0] sm:$0xf]
    %v128 = vld [vmem:[%s1 + $0x1a4] sm:$0xf]
    %v129 = vld [vmem:[%s1 + $0x1a8] sm:$0xf]
    %v130 = vld [vmem:[%s1 + $0x1ac] sm:$0xf]
    %v131 = vld [vmem:[%s1 + $0x1b0] sm:$0xf]
    %v132 = vld [vmem:[%s1 + $0x1b4] sm:$0xf]
    %v133 = vld [vmem:[%s1 + $0x1b8] sm:$0xf]
    %v134 = vld [vmem:[%s1 + $0x1bc] sm:$0xf]
    %v135 = vld [vmem:[%s1 + $0x1c0] sm:$0xf]
    %v136 = vld [vmem:[%s1 + $0x1c4] sm:$0xf]
    %v137 = vld [vmem:[%s1 + $0x1c8] sm:$0xf]
    %v138 = vld [vmem:[%s1 + $0x1cc] sm:$0xf]
    %v139 = vld [vmem:[%s1 + $0x1d0] sm:$0xf]
    %v140 = vld [vmem:[%s1 + $0x1d4] sm:$0xf]
    %v141 = vld [vmem:[%s1 + $0x1d8] sm:$0xf]
    %v142 = vld [vmem:[%s1 + $0x1dc] sm:$0xf]
    %v143 = vld [vmem:[%s1 + $0x1e0] sm:$0xf]
    %v144 = vld [vmem:[%s1 + $0x1e4] sm:$0xf]
    %v145 = vld [vmem:[%s1 + $0x1e8] sm:$0xf]
    %v146 = vld [vmem:[%s1 + $0x1ec] sm:$0xf]
    %v147 = vld [vmem:[%s1 + $0x1f0] sm:$0xf]
    %v148 = vld [vmem:[%s1 + $0x1f4] sm:$0xf]
    %v149 = vld [vmem:[%s1 + $0x1f8] sm:$0xf]
    %v150 = vld [vmem:[%s1 + $0x1fc] sm:$0xf]
    %v151 = vld [vmem:[%s2] sm:$0x1]
    %v153 = vperm.slane %v151, 0
    %156 = vst [vmem:[#allocation1] ss:$9 sm:$0xff] %v22
    %v157 = vld [vmem:[#allocation1] sm:$0xff]
    %v158 = vld [vmem:[#allocation1 + $0x9] sm:$0xff]
    %v159 = vld [vmem:[#allocation1 + $0x12] sm:$0xff]
    %v160 = vld [vmem:[#allocation1 + $0x1b] sm:$0xff]
    %v161 = vld [vmem:[#allocation1 + $0x24] sm:$0xff]
    %v162 = vld [vmem:[#allocation1 + $0x2d] sm:$0xff]
    %v163 = vld [vmem:[#allocation1 + $0x36] sm:$0xff]
    %v164 = vld [vmem:[#allocation1 + $0x3f] sm:$0xff]
    %v301 = vunpack.c.l.b16 %v23
    %v302 = vunpack.c.l.b16 %v24
    %v303 = vunpack.c.l.b16 %v25
    %v304 = vunpack.c.l.b16 %v26
    %v305 = vunpack.c.l.b16 %v27
    %v306 = vunpack.c.l.b16 %v28
    %v307 = vunpack.c.l.b16 %v29
    %v308 = vunpack.c.l.b16 %v30
    %v309 = vunpack.c.l.b16 %v31
    %v310 = vunpack.c.l.b16 %v32
    %v311 = vunpack.c.l.b16 %v33
    %v312 = vunpack.c.l.b16 %v34
    %v313 = vunpack.c.l.b16 %v35
    %v314 = vunpack.c.l.b16 %v36
    %v315 = vunpack.c.l.b16 %v37
    %v316 = vunpack.c.l.b16 %v38
    %v317 = vunpack.c.l.b16 %v39
    %v318 = vunpack.c.l.b16 %v40
    %v319 = vunpack.c.l.b16 %v41
    %v320 = vunpack.c.l.b16 %v42
    %v321 = vunpack.c.l.b16 %v43
    %v322 = vunpack.c.l.b16 %v44
    %v323 = vunpack.c.l.b16 %v45
    %v324 = vunpack.c.l.b16 %v46
    %v325 = vunpack.c.l.b16 %v47
    %v326 = vunpack.c.l.b16 %v48
    %v327 = vunpack.c.l.b16 %v49
    %v328 = vunpack.c.l.b16 %v50
    %v329 = vunpack.c.l.b16 %v51
    %v330 = vunpack.c.l.b16 %v52
    %v331 = vunpack.c.l.b16 %v53
    %v332 = vunpack.c.l.b16 %v54
    %v333 = vunpack.c.l.b16 %v55
    %v334 = vunpack.c.l.b16 %v56
    %v335 = vunpack.c.l.b16 %v57
    %v336 = vunpack.c.l.b16 %v58
    %v337 = vunpack.c.l.b16 %v59
    %v338 = vunpack.c.l.b16 %v60
    %v339 = vunpack.c.l.b16 %v61
    %v340 = vunpack.c.l.b16 %v62
    %v341 = vunpack.c.l.b16 %v63
    %v342 = vunpack.c.l.b16 %v64
    %v343 = vunpack.c.l.b16 %v65
    %v344 = vunpack.c.l.b16 %v66
    %v345 = vunpack.c.l.b16 %v67
    %v346 = vunpack.c.l.b16 %v68
    %v347 = vunpack.c.l.b16 %v69
    %v348 = vunpack.c.l.b16 %v70
    %v349 = vunpack.c.l.b16 %v71
    %v350 = vunpack.c.l.b16 %v72
    %v351 = vunpack.c.l.b16 %v73
    %v352 = vunpack.c.l.b16 %v74
    %v353 = vunpack.c.l.b16 %v75
    %v354 = vunpack.c.l.b16 %v76
    %v355 = vunpack.c.l.b16 %v77
    %v356 = vunpack.c.l.b16 %v78
    %v357 = vunpack.c.l.b16 %v79
    %v358 = vunpack.c.l.b16 %v80
    %v359 = vunpack.c.l.b16 %v81
    %v360 = vunpack.c.l.b16 %v82
    %v361 = vunpack.c.l.b16 %v83
    %v362 = vunpack.c.l.b16 %v84
    %v363 = vunpack.c.l.b16 %v85
    %v364 = vunpack.c.l.b16 %v86
    %v365 = vunpack.c.l.b16 %v87
    %v366 = vunpack.c.l.b16 %v88
    %v367 = vunpack.c.l.b16 %v89
    %v368 = vunpack.c.l.b16 %v90
    %v369 = vunpack.c.l.b16 %v91
    %v370 = vunpack.c.l.b16 %v92
    %v371 = vunpack.c.l.b16 %v93
    %v372 = vunpack.c.l.b16 %v94
    %v373 = vunpack.c.l.b16 %v95
    %v374 = vunpack.c.l.b16 %v96
    %v375 = vunpack.c.l.b16 %v97
    %v376 = vunpack.c.l.b16 %v98
    %v377 = vunpack.c.l.b16 %v99
    %v378 = vunpack.c.l.b16 %v100
    %v379 = vunpack.c.l.b16 %v101
    %v380 = vunpack.c.l.b16 %v102
    %v381 = vunpack.c.l.b16 %v103
    %v382 = vunpack.c.l.b16 %v104
    %v383 = vunpack.c.l.b16 %v105
    %v384 = vunpack.c.l.b16 %v106
    %v385 = vunpack.c.l.b16 %v107
    %v386 = vunpack.c.l.b16 %v108
    %v387 = vunpack.c.l.b16 %v109
    %v388 = vunpack.c.l.b16 %v110
    %v389 = vunpack.c.l.b16 %v111
    %v390 = vunpack.c.l.b16 %v112
    %v391 = vunpack.c.l.b16 %v113
    %v392 = vunpack.c.l.b16 %v114
    %v393 = vunpack.c.l.b16 %v115
    %v394 = vunpack.c.l.b16 %v116
    %v395 = vunpack.c.l.b16 %v117
    %v396 = vunpack.c.l.b16 %v118
    %v397 = vunpack.c.l.b16 %v119
    %v398 = vunpack.c.l.b16 %v120
    %v399 = vunpack.c.l.b16 %v121
    %v400 = vunpack.c.l.b16 %v122
    %v401 = vunpack.c.l.b16 %v123
    %v402 = vunpack.c.l.b16 %v124
    %v403 = vunpack.c.l.b16 %v125
    %v404 = vunpack.c.l.b16 %v126
    %v405 = vunpack.c.l.b16 %v127
    %v406 = vunpack.c.l.b16 %v128
    %v407 = vunpack.c.l.b16 %v129
    %v408 = vunpack.c.l.b16 %v130
    %v409 = vunpack.c.l.b16 %v131
    %v410 = vunpack.c.l.b16 %v132
    %v411 = vunpack.c.l.b16 %v133
    %v412 = vunpack.c.l.b16 %v134
    %v413 = vunpack.c.l.b16 %v135
    %v414 = vunpack.c.l.b16 %v136
    %v415 = vunpack.c.l.b16 %v137
    %v416 = vunpack.c.l.b16 %v138
    %v417 = vunpack.c.l.b16 %v139
    %v418 = vunpack.c.l.b16 %v140
    %v419 = vunpack.c.l.b16 %v141
    %v420 = vunpack.c.l.b16 %v142
    %v421 = vunpack.c.l.b16 %v143
    %v422 = vunpack.c.l.b16 %v144
    %v423 = vunpack.c.l.b16 %v145
    %v424 = vunpack.c.l.b16 %v146
    %v425 = vunpack.c.l.b16 %v147
    %v426 = vunpack.c.l.b16 %v148
    %v427 = vunpack.c.l.b16 %v149
    %v428 = vunpack.c.l.b16 %v150
    %v429 = vpack.c.b16 %v302, %v301
    %v430 = vpack.c.b16 %v304, %v303
    %v431 = vpack.c.b16 %v306, %v305
    %v432 = vpack.c.b16 %v308, %v307
    %v433 = vpack.c.b16 %v310, %v309
    %v434 = vpack.c.b16 %v312, %v311
    %v435 = vpack.c.b16 %v314, %v313
    %v436 = vpack.c.b16 %v316, %v315
    %v437 = vpack.c.b16 %v318, %v317
    %v438 = vpack.c.b16 %v320, %v319
    %v439 = vpack.c.b16 %v322, %v321
    %v440 = vpack.c.b16 %v324, %v323
    %v441 = vpack.c.b16 %v326, %v325
    %v442 = vpack.c.b16 %v328, %v327
    %v443 = vpack.c.b16 %v330, %v329
    %v444 = vpack.c.b16 %v332, %v331
    %v445 = vpack.c.b16 %v334, %v333
    %v446 = vpack.c.b16 %v336, %v335
    %v447 = vpack.c.b16 %v338, %v337
    %v448 = vpack.c.b16 %v340, %v339
    %v449 = vpack.c.b16 %v342, %v341
    %v450 = vpack.c.b16 %v344, %v343
    %v451 = vpack.c.b16 %v346, %v345
    %v452 = vpack.c.b16 %v348, %v347
    %v453 = vpack.c.b16 %v350, %v349
    %v454 = vpack.c.b16 %v352, %v351
    %v455 = vpack.c.b16 %v354, %v353
    %v456 = vpack.c.b16 %v356, %v355
    %v457 = vpack.c.b16 %v358, %v357
    %v458 = vpack.c.b16 %v360, %v359
    %v459 = vpack.c.b16 %v362, %v361
    %v460 = vpack.c.b16 %v364, %v363
    %v461 = vpack.c.b16 %v366, %v365
    %v462 = vpack.c.b16 %v368, %v367
    %v463 = vpack.c.b16 %v370, %v369
    %v464 = vpack.c.b16 %v372, %v371
    %v465 = vpack.c.b16 %v374, %v373
    %v466 = vpack.c.b16 %v376, %v375
    %v467 = vpack.c.b16 %v378, %v377
    %v468 = vpack.c.b16 %v380, %v379
    %v469 = vpack.c.b16 %v382, %v381
    %v470 = vpack.c.b16 %v384, %v383
    %v471 = vpack.c.b16 %v386, %v385
    %v472 = vpack.c.b16 %v388, %v387
    %v473 = vpack.c.b16 %v390, %v389
    %v474 = vpack.c.b16 %v392, %v391
    %v475 = vpack.c.b16 %v394, %v393
    %v476 = vpack.c.b16 %v396, %v395
    %v477 = vpack.c.b16 %v398, %v397
    %v478 = vpack.c.b16 %v400, %v399
    %v479 = vpack.c.b16 %v402, %v401
    %v480 = vpack.c.b16 %v404, %v403
    %v481 = vpack.c.b16 %v406, %v405
    %v482 = vpack.c.b16 %v408, %v407
    %v483 = vpack.c.b16 %v410, %v409
    %v484 = vpack.c.b16 %v412, %v411
    %v485 = vpack.c.b16 %v414, %v413
    %v486 = vpack.c.b16 %v416, %v415
    %v487 = vpack.c.b16 %v418, %v417
    %v488 = vpack.c.b16 %v420, %v419
    %v489 = vpack.c.b16 %v422, %v421
    %v490 = vpack.c.b16 %v424, %v423
    %v491 = vpack.c.b16 %v426, %v425
    %v492 = vpack.c.b16 %v428, %v427
    %557 = vmatpush.bf16.msra.mxu0 %v436
    %558 = vmatpush.bf16.msra.mxu0 %v435
    %559 = vmatpush.bf16.msra.mxu0 %v434
    %560 = vmatpush.bf16.msra.mxu0 %v433
    %561 = vmatpush.bf16.msra.mxu0 %v432
    %562 = vmatpush.bf16.msra.mxu0 %v431
    %563 = vmatpush.bf16.msra.mxu0 %v430
    %564 = vmatpush.bf16.msra.mxu0 %v429
    %565 = vmatmul.bf16.gmra.mxu0 %v157
    %v566 = vpop.f32.mrf.mxu0
    %v567 = vadd.f32 %v153, %v566
    %v568 = vpop.f32.mrf.mxu0
    %569 = vdwg.mxu0
    %570 = vmatpush.bf16.msra.mxu0 %v444
    %571 = vmatpush.bf16.msra.mxu0 %v443
    %572 = vmatpush.bf16.msra.mxu0 %v442
    %573 = vmatpush.bf16.msra.mxu0 %v441
    %574 = vmatpush.bf16.msra.mxu0 %v440
    %575 = vmatpush.bf16.msra.mxu0 %v439
    %576 = vmatpush.bf16.msra.mxu0 %v438
    %577 = vmatpush.bf16.msra.mxu0 %v437
    %578 = vmatmul.bf16.gmra.mxu0 %v158
    %v579 = vpop.f32.mrf.mxu0
    %v580 = vadd.f32 %v567, %v579
    %v581 = vpop.f32.mrf.mxu0
    %582 = vdwg.mxu0
    %583 = vmatpush.bf16.msra.mxu0 %v452
    %584 = vmatpush.bf16.msra.mxu0 %v451
    %585 = vmatpush.bf16.msra.mxu0 %v450
    %586 = vmatpush.bf16.msra.mxu0 %v449
    %587 = vmatpush.bf16.msra.mxu0 %v448
    %588 = vmatpush.bf16.msra.mxu0 %v447
    %589 = vmatpush.bf16.msra.mxu0 %v446
    %590 = vmatpush.bf16.msra.mxu0 %v445
    %591 = vmatmul.bf16.gmra.mxu0 %v159
    %v592 = vpop.f32.mrf.mxu0
    %v593 = vadd.f32 %v580, %v592
    %v594 = vpop.f32.mrf.mxu0
    %595 = vdwg.mxu0
    %596 = vmatpush.bf16.msra.mxu0 %v460
    %597 = vmatpush.bf16.msra.mxu0 %v459
    %598 = vmatpush.bf16.msra.mxu0 %v458
    %599 = vmatpush.bf16.msra.mxu0 %v457
    %600 = vmatpush.bf16.msra.mxu0 %v456
    %601 = vmatpush.bf16.msra.mxu0 %v455
    %602 = vmatpush.bf16.msra.mxu0 %v454
    %603 = vmatpush.bf16.msra.mxu0 %v453
    %604 = vmatmul.bf16.gmra.mxu0 %v160
    %v605 = vpop.f32.mrf.mxu0
    %v606 = vadd.f32 %v593, %v605
    %v607 = vpop.f32.mrf.mxu0
    %608 = vdwg.mxu0
    %609 = vmatpush.bf16.msra.mxu0 %v468
    %610 = vmatpush.bf16.msra.mxu0 %v467
    %611 = vmatpush.bf16.msra.mxu0 %v466
    %612 = vmatpush.bf16.msra.mxu0 %v465
    %613 = vmatpush.bf16.msra.mxu0 %v464
    %614 = vmatpush.bf16.msra.mxu0 %v463
    %615 = vmatpush.bf16.msra.mxu0 %v462
    %616 = vmatpush.bf16.msra.mxu0 %v461
    %617 = vmatmul.bf16.gmra.mxu0 %v161
    %v618 = vpop.f32.mrf.mxu0
    %v619 = vadd.f32 %v606, %v618
    %v620 = vpop.f32.mrf.mxu0
    %621 = vdwg.mxu0
    %622 = vmatpush.bf16.msra.mxu0 %v476
    %623 = vmatpush.bf16.msra.mxu0 %v475
    %624 = vmatpush.bf16.msra.mxu0 %v474
    %625 = vmatpush.bf16.msra.mxu0 %v473
    %626 = vmatpush.bf16.msra.mxu0 %v472
    %627 = vmatpush.bf16.msra.mxu0 %v471
    %628 = vmatpush.bf16.msra.mxu0 %v470
    %629 = vmatpush.bf16.msra.mxu0 %v469
    %630 = vmatmul.bf16.gmra.mxu0 %v162
    %v631 = vpop.f32.mrf.mxu0
    %v632 = vadd.f32 %v619, %v631
    %v633 = vpop.f32.mrf.mxu0
    %634 = vdwg.mxu0
    %635 = vmatpush.bf16.msra.mxu0 %v484
    %636 = vmatpush.bf16.msra.mxu0 %v483
    %637 = vmatpush.bf16.msra.mxu0 %v482
    %638 = vmatpush.bf16.msra.mxu0 %v481
    %639 = vmatpush.bf16.msra.mxu0 %v480
    %640 = vmatpush.bf16.msra.mxu0 %v479
    %641 = vmatpush.bf16.msra.mxu0 %v478
    %642 = vmatpush.bf16.msra.mxu0 %v477
    %643 = vmatmul.bf16.gmra.mxu0 %v163
    %v644 = vpop.f32.mrf.mxu0
    %v645 = vadd.f32 %v632, %v644
    %v646 = vpop.f32.mrf.mxu0
    %647 = vdwg.mxu0
    %648 = vmatpush.bf16.msra.mxu0 %v492
    %649 = vmatpush.bf16.msra.mxu0 %v491
    %650 = vmatpush.bf16.msra.mxu0 %v490
    %651 = vmatpush.bf16.msra.mxu0 %v489
    %652 = vmatpush.bf16.msra.mxu0 %v488
    %653 = vmatpush.bf16.msra.mxu0 %v487
    %654 = vmatpush.bf16.msra.mxu0 %v486
    %655 = vmatpush.bf16.msra.mxu0 %v485
    %656 = vmatmul.bf16.gmra.mxu0 %v164
    %v657 = vpop.f32.mrf.mxu0
    %v658 = vadd.f32 %v645, %v657
    %v659 = vpop.f32.mrf.mxu0
    %660 = vdwg.mxu0
    %v661 = vmax.f32 %v658, 0.0
    %v662 = vpack.c.bf16 %v661, %v661
    %v663 = vld [vmem:[%s3] sm:$0xf]
    %v664 = vld [vmem:[%s3 + $0x4] sm:$0xf]
    %v665 = vld [vmem:[%s3 + $0x8] sm:$0xf]
    %v666 = vld [vmem:[%s3 + $0xc] sm:$0xf]
    %v667 = vld [vmem:[%s3 + $0x10] sm:$0xf]
    %v668 = vld [vmem:[%s3 + $0x14] sm:$0xf]
    %v669 = vld [vmem:[%s3 + $0x18] sm:$0xf]
    %v670 = vld [vmem:[%s3 + $0x1c] sm:$0xf]
    %v671 = vld [vmem:[%s4] sm:$0x1]
    %v673 = vperm.slane %v671, 0
    %v683 = vunpack.c.l.b16 %v663
    %v684 = vunpack.c.l.b16 %v664
    %v685 = vunpack.c.l.b16 %v665
    %v686 = vunpack.c.l.b16 %v666
    %v687 = vunpack.c.l.b16 %v667
    %v688 = vunpack.c.l.b16 %v668
    %v689 = vunpack.c.l.b16 %v669
    %v690 = vunpack.c.l.b16 %v670
    %v691 = vpack.c.b16 %v684, %v683
    %v692 = vpack.c.b16 %v686, %v685
    %v693 = vpack.c.b16 %v688, %v687
    %v694 = vpack.c.b16 %v690, %v689
    %vm699 = vcmask 523264
    %v701 = vsel %vm699, %v662, 0
    %703 = vmatpush.bf16.msra.mxu0 0
    %704 = vmatpush.bf16.msra.mxu0 0
    %705 = vmatpush.bf16.msra.mxu0 0
    %706 = vmatpush.bf16.msra.mxu0 0
    %707 = vmatpush.bf16.msra.mxu0 %v694
    %708 = vmatpush.bf16.msra.mxu0 %v693
    %709 = vmatpush.bf16.msra.mxu0 %v692
    %710 = vmatpush.bf16.msra.mxu0 %v691
    %711 = vmatmul.bf16.gmra.mxu0 %v701
    %v712 = vpop.f32.mrf.mxu0
    %v713 = vadd.f32 %v673, %v712
    %v714 = vpop.f32.mrf.mxu0
    %715 = vdwg.mxu0
    %716 = vst [vmem:[#allocation2] sm:$0x3] %v713
    // Predicated region
    $region22: #{simple_cnn_forward.7} parent=1 // pred_check
      _
    $region23: #{simple_cnn_forward.7} parent=1 // pred_check_branch
      %718 = sbr.rel (0) target = $region25
    $region24: #{simple_cnn_forward.7} parent=1 // pred_region
      %720 = vsyncadd [#allocation3], 0
      %s722 = sshll.u32 [#allocation2], 4
      %s723 = int_to_ptr.vmem [resolvable:$true] %s722
      %s724 = sshll.u32 %s5, 4
      %s725 = int_to_ptr.hbm [resolvable:$true] %s724
      %727 = dma.vmem_to_hbm [thread:$0]  %s723, 32, %s725, [#allocation3]
    $region25: #{simple_cnn_forward.7} parent=1 // pred_fallthru
      _
    // Predicated region
    $region26: #{simple_cnn_forward.7} parent=1 // pred_check
      _
    $region27: #{simple_cnn_forward.7} parent=1 // pred_check_branch
      %729 = sbr.rel (0) target = $region29
    $region28: #{simple_cnn_forward.7} parent=1 // pred_region
      %731 = dma.done [#allocation3], 32
    $region29: #{simple_cnn_forward.7} parent=1 // pred_fallthru
      _
    %732 = vsyncpa [#allocation3], 1

</llo_original>
